<compile_context>
chip_gen: v5e
topology: v5e:2x2
jax: 0.10.0
libtpu: 0.0.40
codegen_flags: <defaults>
</compile_context>

<pallas_src>
from collections import defaultdict

import numpy as np
import jax
import jax.numpy as jnp
from jax.experimental import pallas as pl
from jax.experimental.pallas import tpu as pltpu

EPS = float(np.finfo(np.float32).eps)  # == torch.finfo(torch.float32).eps


# ----------------------------------------------------------------------------
# VMEM-aware tile selection
# ----------------------------------------------------------------------------
def _physical_vmem_bytes():
    try:
        info = pltpu.get_tpu_info()
        cap = getattr(info, "vmem_capacity_bytes", None)
        if cap:
            return int(cap)
    except Exception:
        pass
    return 64 * 1024 * 1024  # conservative default (v7x per-TC VMEM)


def _choose_tk(N, D, itemsize=4):
    """Largest K-tile (multiple of 128, or full D) that fits the VMEM budget."""
    phys = _physical_vmem_bytes()
    budget = phys // 2                       # headroom for compiler scratch
    out_bytes = 2 * 2 * N * N * 4            # two NxN f32 outputs, double-buffered
    avail = budget - out_bytes
    if avail <= 0:
        return min(D, 128)
    tk_max = avail // (2 * N * itemsize)     # double-buffered (N, tk) input tile
    if tk_max >= D:
        return int(D)                        # single grid step along K
    tk = max((tk_max // 128) * 128, 128)
    return int(min(tk, D))


# ----------------------------------------------------------------------------
# Pallas kernel: batched tiled Gramian + row-normalized Gramian
# ----------------------------------------------------------------------------
def _make_gramian_kernel(d_valid, tk):
    needs_mask = (d_valid % tk) != 0

    def kernel(g_ref, gram_ref, cos_ref):
        k = pl.program_id(1)

        @pl.when(k == 0)
        def _():
            gram_ref[...] = jnp.zeros_like(gram_ref)

        g = g_ref[...]                                           # (N, tk) f32
        if needs_mask:
            # zero out the out-of-range columns of the final partial K-tile
            col = jax.lax.broadcasted_iota(jnp.int32, g.shape, 1)
            valid = d_valid - k * tk
            g = jnp.where(col < valid, g, 0.0)

        # Accumulate directly into the (VMEM-resident across k) output block.
        gram_ref[...] += jax.lax.dot_general(
            g, g, dimension_numbers=(((1,), (1,)), ((), ())),
            preferred_element_type=jnp.float32)                  # G_k @ G_k^T

        @pl.when(k == pl.num_programs(1) - 1)
        def _():
            gram = gram_ref[...]
            n = gram.shape[0]
            rows = jax.lax.broadcasted_iota(jnp.int32, (n, n), 0)
            cols = jax.lax.broadcasted_iota(jnp.int32, (n, n), 1)
            masked = jnp.where(rows == cols, gram, 0.0)          # diag only
            diag_r = jnp.sum(masked, axis=1, keepdims=True)      # (N, 1)
            diag_c = jnp.sum(masked, axis=0, keepdims=True)      # (1, N)
            inv_r = 1.0 / (jnp.sqrt(diag_r) + EPS)               # eps placement == torch
            inv_c = 1.0 / (jnp.sqrt(diag_c) + EPS)
            cos_ref[...] = gram * inv_r * inv_c

    return kernel


def pallas_gramian_batched(G_stack, tk=None):
    """G_stack: (P, N, D) f32.  Returns (gram, cos), each (P, N, N) f32."""
    G_stack = jnp.asarray(G_stack, jnp.float32)
    P, N, D = G_stack.shape
    if tk is None:
        tk = _choose_tk(N, D)
    kt = pl.cdiv(D, tk)
    kernel = _make_gramian_kernel(D, tk)

    need = 2 * N * tk * 4 + 4 * N * N * 4 + (4 << 20)
    vmem_limit = int(min(max(need, 32 << 20), _physical_vmem_bytes() * 3 // 4))

    cost = pl.CostEstimate(flops=int(2 * P * N * N * D),
                           transcendentals=0,
                           bytes_accessed=int(4 * P * (N * D + 2 * N * N)))

    gram, cos = pl.pallas_call(
        kernel,
        out_shape=(jax.ShapeDtypeStruct((P, N, N), jnp.float32),
                   jax.ShapeDtypeStruct((P, N, N), jnp.float32)),
        grid_spec=pltpu.PrefetchScalarGridSpec(
            num_scalar_prefetch=0,
            grid=(P, kt),
            in_specs=[pl.BlockSpec((None, N, tk), lambda p, k: (p, 0, k))],
            out_specs=[pl.BlockSpec((None, N, N), lambda p, k: (p, 0, 0)),
                       pl.BlockSpec((None, N, N), lambda p, k: (p, 0, 0))]),
        compiler_params=pltpu.CompilerParams(
            dimension_semantics=("parallel", "arbitrary"),
            vmem_limit_bytes=vmem_limit),
        cost_estimate=cost,
    )(G_stack)
    return gram, cos


def pallas_gramian(G, tk=None):
    gram, cos = pallas_gramian_batched(jnp.asarray(G, jnp.float32)[None], tk=tk)
    return gram[0], cos[0]


# ----------------------------------------------------------------------------
# Gramian chain cache: Gramian of row-normalized G == row-normalized Gramian,
# so the torch module's repeated in-place normalizations of G only ever rescale
# the cached N x N matrix — no further passes over G are needed.
# ----------------------------------------------------------------------------
def _normalize_gram(gram):
    diag = jnp.diagonal(gram)
    inv = 1.0 / (jnp.sqrt(diag) + EPS)
    return gram * inv[:, None] * inv[None, :]


class _GramChain:
    __slots__ = ("gram", "cos")

    def __init__(self, gram, cos):
        self.gram = gram   # Gramian of the *current* (possibly normalized) G
        self.cos = cos     # Gramian of the row-normalized current G

    def advance(self):
        # replicate torch's in-place  gradients /= (||g_i|| + eps)
        self.gram = self.cos
        self.cos = _normalize_gram(self.gram)


def gram_chains_multi(grad_dicts, concat_key='concatenated_grads'):
    """grad_dicts: list of {name: (N, D)}.  All matrices (across all dicts)
    sharing a shape go through ONE batched pallas_call.  Each returned chain
    dict also contains `concat_key`, whose Gramian is derived as the sum of the
    per-parameter Gramians (Gram of column-concat == sum of Grams), so the
    concatenated matrix is never materialized or re-read from HBM."""
    groups = defaultdict(list)
    for di, grads in enumerate(grad_dicts):
        for name, G in grads.items():
            groups[tuple(G.shape)].append((di, name))

    per_dict = [dict() for _ in grad_dicts]
    for _, keys in groups.items():
        stack = jnp.stack(
            [jnp.asarray(grad_dicts[di][name], jnp.float32) for di, name in keys], axis=0)
        gram_b, cos_b = pallas_gramian_batched(stack)
        for i, (di, name) in enumerate(keys):
            per_dict[di][name] = (gram_b[i], cos_b[i])

    chains_list = []
    for di, grads in enumerate(grad_dicts):
        chains = {}
        gram_cat = None
        for name in grads:                       # preserve insertion order
            g, c = per_dict[di][name]
            chains[name] = _GramChain(g, c)
            gram_cat = g if gram_cat is None else gram_cat + g
        chains[concat_key] = _GramChain(gram_cat, _normalize_gram(gram_cat))
        chains_list.append(chains)
    return chains_list


# ----------------------------------------------------------------------------
# Metric functions (faithful ports of the torch module, driven by cached grams)
# All stored scalars stay lazy (jax.Array); fetched once in _finalize_evaluators.
# ----------------------------------------------------------------------------
def gradient_direction_error(chains, evaluators, label, phase):
    for name, ch in chains.items():
        gram = ch.gram
        norms = jnp.sqrt(jnp.diagonal(gram))                 # ||g_i||
        g_dot_m = gram.mean(axis=1)                          # g_i . mean(G)
        m_norm = jnp.sqrt(jnp.maximum(gram.mean(), 0.0))     # ||mean(G)||
        cos = g_dot_m / ((norms + EPS) * (m_norm + EPS))
        gde = (1.0 - cos.mean()) / 2.0
        evaluators[f'gradient_direction_error_{label}_{phase}/{name}'] = gde
        ch.advance()                                         # in-place normalize


def gradient_direction_variance(chains, evaluators, label, phase):
    for name, ch in chains.items():
        cos = ch.cos                                         # Gramian of normalized G
        n = cos.shape[0]
        triu = jnp.triu(jnp.ones((n, n), dtype=bool), k=1)
        mask = triu & (cos != 0)
        cnt = jnp.sum(mask).astype(jnp.float32)
        mean_cos = jnp.sum(jnp.where(mask, cos, 0.0)) / cnt  # nan when empty (== torch)
        gdv = (1.0 - mean_cos) / 2.0
        evaluators[f'gradient_direction_variance_{label}_{phase}/{name}'] = gdv
        ch.advance()
    return evaluators


def gradient_ssr_and_largest_eigenvalue(chains, evaluators, label, phase, cutoff=1000):
    for name, ch in chains.items():
        gram, cos = ch.gram, ch.cos
        # TODO(synk): eigendecomposition has no Pallas equivalent; Gramian is
        # symmetric PSD, so eigvalsh == torch.linalg.eig real eigenvalues here.
        eig = jnp.linalg.eigvalsh(gram).astype(jnp.float32)
        evaluators[f'square_stable_rank_gradients_{label}_{phase}/{name}'] = eig.sum() / eig.max()
        evaluators[f'the_largest_eigenvalue_gradients_{label}_{phase}/{name}'] = eig.max()
        eig_n = jnp.linalg.eigvalsh(cos).astype(jnp.float32)
        evaluators[f'square_stable_rank_gradients_normalized_{label}_{phase}/{name}'] = eig_n.sum() / eig_n.max()
        evaluators[f'the_largest_eigenvalue_gradients_normalized_{label}_{phase}/{name}'] = eig_n.max()
        ch.advance()
    return evaluators


def variance_with_gradient_general_mean_and_class_mean(chains, y_true, evaluators, label, phase):
    y = np.asarray(y_true)
    classes = np.unique(y)
    denom_class = classes.shape[0]
    for name, ch in chains.items():
        gram = ch.gram
        norms = jnp.sqrt(jnp.diagonal(gram)) + EPS                # ||g_i|| + eps
        gm_norm = jnp.sqrt(jnp.maximum(gram.mean(), 0.0)) + EPS
        gm_dot_g = gram.mean(axis=0)                              # general_mean . g_j
        wcc = 0.0
        bcc = 0.0
        tcc = 0.0
        for c in classes:
            idx = np.where(y == c)[0]
            sub = gram[idx][:, idx]
            cm_norm = jnp.sqrt(jnp.maximum(sub.mean(), 0.0)) + EPS
            cm_dot_sub = sub.mean(axis=0)                         # class_mean . g_j
            wcc = wcc + jnp.mean(((1.0 - cm_dot_sub / (cm_norm * norms[idx])) / 2.0) ** 2)
            cm_dot_gm = gram[idx].mean()                          # class_mean . general_mean
            bcc = bcc + ((1.0 - cm_dot_gm / (cm_norm * gm_norm)) / 2.0) ** 2
            tcc = tcc + jnp.mean(((1.0 - gm_dot_g[idx] / (gm_norm * norms[idx])) / 2.0) ** 2)
        wcc = wcc / denom_class
        bcc = bcc / denom_class
        tcc = tcc / denom_class
        evaluators[f'within_class_gradient_disparity_{label}_{phase}/{name}'] = wcc
        evaluators[f'between_class_gradient_disparity_{label}_{phase}/{name}'] = bcc
        evaluators[f'total_class_gradient_disparity_{label}_{phase}/{name}'] = tcc
        evaluators[f'within_class_gradient_disparity_normalized_{label}_{phase}/{name}'] = wcc / (tcc + EPS)
        evaluators[f'between_class_gradient_disparity_normalized_{label}_{phase}/{name}'] = bcc / (tcc + EPS)
    return evaluators


def cosine_stiffness(sims, evaluators, prefix, postfix):
    for k, v in sims.items():
        n = v.shape[0]
        evaluators[f'cosine_stiffness_{prefix}/{k}{postfix}'] = \
            (jnp.sum(v) - jnp.trace(v)) / (n * n - n)
    return evaluators


def sign_stiffness(sims, evaluators, prefix, postfix):
    for k, v in sims.items():
        n = v.shape[0]
        s = jnp.sign(v)
        evaluators[f'sign_stiffness_{prefix}/{k}{postfix}'] = \
            (jnp.sum(s) - jnp.trace(s)) / (n * n - n)
    return evaluators


def class_stiffness(sims, y_true, evaluators, prefix, postfix, whether_sign=False):
    y = np.asarray(y_true)
    classes = np.unique(y)
    num_classes = len(classes)
    indices = {int(c): np.where(y == c)[0] for c in classes}
    indices = {c: t for c, t in indices.items() if t.shape[0] > 0}
    for k, sim in sims.items():
        rows = []
        for c1, i1 in indices.items():
            row = []
            for c2, i2 in indices.items():
                sub = sim[i1][:, i2]
                if whether_sign:
                    sub = jnp.sign(sub)
                if c1 != c2:
                    row.append(jnp.mean(sub))
                else:
                    m = sub.shape[0]
                    row.append((jnp.sum(sub) - m) / (m * m - m))
            rows.append(jnp.stack(row))
        cst = jnp.stack(rows)
        between = (jnp.sum(cst) - jnp.trace(cst)) / (num_classes ** 2 - num_classes)
        within = jnp.trace(cst) / num_classes
        evaluators[f'stiffness_between_classes_{prefix}/{k}{postfix}'] = between
        evaluators[f'stiffness_within_classes_{prefix}/{k}{postfix}'] = within
    return evaluators


def prepare_and_calculate(chains, y_true, evaluators, prefix, postfix,
                          to_normalize=False, batch_first=True, risky_names=()):
    sims = {}
    for name, ch in chains.items():
        if name in risky_names and (not batch_first):
            continue
        S = ch.cos if to_normalize else ch.gram        # prepare_matrix (batch_first=True)
        sims[name] = S
        # TODO(synk): matrix rank (SVD) has no Pallas equivalent; done with jnp.linalg.
        rank = jnp.linalg.matrix_rank(S)
        denom = S.shape[0]
        evaluators[f'ranks_grads_{prefix}/{name}{postfix}'] = rank
        evaluators[f'ranks_grads_{prefix}_ratio/{name}{postfix}'] = rank / denom
    evaluators = cosine_stiffness(sims, evaluators, prefix, postfix)
    evaluators = sign_stiffness(sims, evaluators, prefix, postfix)
    evaluators = class_stiffness(sims, y_true, evaluators, prefix, postfix)
    return evaluators


def _finalize_evaluators(evaluators):
    """One bulk device->host transfer for all lazily stored scalars."""
    keys = [k for k, v in evaluators.items() if isinstance(v, jax.Array)]
    if keys:
        host_vals = jax.device_get([evaluators[k] for k in keys])
        for k, v in zip(keys, host_vals):
            arr = np.asarray(v)
            if np.issubdtype(arr.dtype, np.integer):
                evaluators[k] = int(arr)
            else:
                evaluators[k] = float(arr)
    return evaluators


# ----------------------------------------------------------------------------
# Synthetic two-branch model + per-sample gradients (glue, plain JAX)
# ----------------------------------------------------------------------------
N_SAMPLES, N_CLASSES, C, H, W, HID = 8, 4, 4, 16, 16, 32
CHUNK = 4  # reference uses 250; scaled down with the synthetic held-out set


def model_forward(params, xl, xr):
    hl = jax.nn.relu(params['left_branch.weight'] @ xl.reshape(-1))
    hr = jax.nn.relu(params['right_branch.weight'] @ xr.reshape(-1))
    h = jnp.concatenate([hl, hr])
    return params['main_branch.weight'] @ h


def compute_loss(diff_params, frozen_params, xl, xr, y):
    p = dict(frozen_params)
    p.update(diff_params)
    logits = model_forward(p, xl, xr)
    loss = -jax.nn.log_softmax(logits)[y]   # CrossEntropyLoss on a batch of 1
    return loss, logits


ft_criterion = jax.jit(jax.vmap(jax.grad(compute_loss, argnums=0, has_aux=True),
                                in_axes=(None, None, 0, 0, 0)))


def _update(old_g, old_p, new_g, new_p):
    if old_g is None:
        return new_g, new_p
    for k in old_g:
        old_g[k] = jnp.concatenate([old_g[k], new_g[k]], axis=0)
    return old_g, jnp.concatenate([old_p, new_p], axis=0)


def gradients_spectral_stiffness_forward(held_out, all_params, step, scope, phase, kind):
    xl = held_out['proper_x_left']
    xr = held_out['proper_x_right'] if kind == 'proper' else held_out['blurred_x_right']
    y = held_out['y']
    classes = np.unique(np.asarray(y))
    prefix = lambda a, b, c: f'{a}_{b}_{c}_branch_{phase}'
    postfix = f'____{scope}____{phase}'

    params1 = {k: v for k, v in all_params.items() if 'left_branch' in k}
    params2 = {k: v for k, v in all_params.items() if 'right_branch' in k}
    evaluators = defaultdict(float)

    n_chunks = y.shape[0] // CHUNK
    grads1, y_pred, last_g1_chunk = None, None, None
    for i in range(n_chunks):
        sl = slice(i * CHUNK, (i + 1) * CHUNK)
        g1c, ypc = ft_criterion(params1, all_params, xl[sl], xr[sl], y[sl])
        g1c = {k: v.reshape(v.shape[0], -1) for k, v in g1c.items()}
        last_g1_chunk = g1c
        grads1, y_pred = _update(grads1, y_pred, g1c, ypc)

    grads2, y_pred = None, None
    for i in range(n_chunks):
        sl = slice(i * CHUNK, (i + 1) * CHUNK)
        _g2c, ypc = ft_criterion(params2, all_params, xl[sl], xr[sl], y[sl])
        # NOTE: replicates the upstream bug where the right-branch per-sample
        # gradients are overwritten with the LAST left-branch chunk.
        g2c = {k: v for k, v in last_g1_chunk.items()}
        grads2, y_pred = _update(grads2, y_pred, g2c, ypc)

    y_pred_label = jnp.argmax(y_pred, axis=1)
    for c in classes:
        mask = y_pred_label == c
        cnt = jnp.sum(mask)
        mis = jnp.where(cnt > 0,
                        jnp.sum((y_pred_label != y) & mask) / jnp.maximum(cnt, 1),
                        jnp.nan)
        evaluators[f'misclassification_per_class/{c}{postfix}'] = mis

    # One batched Pallas pass over every per-parameter gradient matrix of BOTH
    # branches (the 'concatenated_grads' Gramian is the sum of per-param
    # Gramians, so it never touches HBM); everything downstream is driven from
    # the cached (gram, cos) chains.
    chains1, chains2 = gram_chains_multi([grads1, grads2])

    gradient_direction_variance(chains1, evaluators, label='left_branch', phase=phase)
    gradient_direction_variance(chains2, evaluators, label='right_branch', phase=phase)
    gradient_direction_error(chains1, evaluators, label='left_branch', phase=phase)
    gradient_direction_error(chains2, evaluators, label='right_branch', phase=phase)
    gradient_ssr_and_largest_eigenvalue(chains1, evaluators, label='left_branch', phase=phase)
    gradient_ssr_and_largest_eigenvalue(chains2, evaluators, label='right_branch', phase=phase)
    variance_with_gradient_general_mean_and_class_mean(chains1, y, evaluators, 'left_branch', phase)
    variance_with_gradient_general_mean_and_class_mean(chains2, y, evaluators, 'right_branch', phase)

    evaluators = prepare_and_calculate(
        chains1, y, evaluators, prefix('normalized', 'batch_first', 'left'), postfix,
        to_normalize=True, batch_first=True, risky_names='concatenated_grads')
    evaluators = prepare_and_calculate(
        chains2, y, evaluators, prefix('normalized', 'batch_first', 'right'), postfix,
        to_normalize=True, batch_first=True, risky_names='concatenated_grads')

    evaluators[f'steps/tunnel_grads_{phase}'] = step
    # TODO(synk): self.logger.log_scalars(evaluators, step) is external logging.
    return _finalize_evaluators(evaluators)


# ----------------------------------------------------------------------------
if __name__ == "__main__":
    key = jax.random.PRNGKey(0)
    k1, k2, k3, k4, k5 = jax.random.split(key, 5)

    x_left = jax.random.normal(k1, (N_SAMPLES, C, H, W), jnp.float32)
    x_right = jax.random.normal(k2, (N_SAMPLES, C, H, W), jnp.float32)
    blurred_x_right = 0.5 * (x_right + jnp.roll(x_right, shift=1, axis=-1))
    y = jnp.array([0, 1, 2, 3, 0, 1, 2, 3], dtype=jnp.int32)

    held_out = {'proper_x_left': x_left, 'proper_x_right': x_right,
                'blurred_x_right': blurred_x_right, 'y': y}

    # Deterministic synthetic model parameters (no bias / downsample params).
    all_params = {
        'left_branch.weight': 0.02 * jax.random.normal(k3, (HID, C * H * W), jnp.float32),
        'right_branch.weight': 0.02 * jax.random.normal(k4, (HID, C * H * W), jnp.float32),
        'main_branch.weight': 0.1 * jax.random.normal(k5, (N_CLASSES, 2 * HID), jnp.float32),
    }

    # Sanity-run the batched Pallas Gramian kernel once and block on its result.
    g_probe = jax.random.normal(jax.random.PRNGKey(1),
                                (2, N_SAMPLES, HID * C * H * W), jnp.float32)
    gram_probe, cos_probe = pallas_gramian_batched(g_probe)
    jax.block_until_ready((gram_probe, cos_probe))

    evaluators = gradients_spectral_stiffness_forward(
        held_out, all_params, step=0, scope='periodic', phase='test', kind='proper')

    jax.block_until_ready(jnp.asarray(
        [float(v) for v in evaluators.values() if isinstance(v, (int, float))],
        dtype=jnp.float32))
    print("KERNEL_OK")
</pallas_src>

<mosaic_0001>
module attributes {stable_mosaic.version = 11 : i64} {
  func.func @kernel(%arg0: i32, %arg1: i32, %arg2: memref<1x8x32768xf32, #tpu.memory_space<vmem>>, %arg3: memref<1x8x8xf32, #tpu.memory_space<vmem>>, %arg4: memref<1x8x8xf32, #tpu.memory_space<vmem>>) attributes {dimension_semantics = [#tpu.dimension_semantics<parallel>, #tpu.dimension_semantics<arbitrary>], iteration_bounds = array<i64: 2, 1>, scalar_prefetch = 0 : i64, scratch_operands = 0 : i64, tpu.core_type = #tpu.core_type<tc>, window_params = [{transform_indices = @transform_0, window_bounds = array<i64: 1, 8, 32768>}, {transform_indices = @transform_1, window_bounds = array<i64: 1, 8, 8>}, {transform_indices = @transform_2, window_bounds = array<i64: 1, 8, 8>}]} {
    %c0_i32 = arith.constant 0 : i32
    %0 = arith.cmpi eq, %arg1, %c0_i32 : i32
    %1 = arith.extui %0 : i1 to i32
    %c0_i32_0 = arith.constant 0 : i32
    %2 = arith.cmpi ne, %1, %c0_i32_0 : i32
    scf.if %2 {
      %cst_11 = arith.constant 0.000000e+00 : f32
      %15 = vector.broadcast %cst_11 : f32 to vector<8x8xf32>
      %c0_12 = arith.constant 0 : index
      %c0_13 = arith.constant 0 : index
      %c0_14 = arith.constant 0 : index
      %16 = vector.load %arg3[%c0_12, %c0_13, %c0_14] : memref<1x8x8xf32, #tpu.memory_space<vmem>>, vector<1x8x8xf32>
      %17 = vector.shape_cast %16 : vector<1x8x8xf32> to vector<8x8xf32>
      %18 = vector.shape_cast %15 : vector<8x8xf32> to vector<1x8x8xf32>
      tpu.vector_store %arg3[%c0_12, %c0_13, %c0_14], %18 {strides = array<i32>} : memref<1x8x8xf32, #tpu.memory_space<vmem>>, vector<1x8x8xf32>,
    } else {
    }
    %c0 = arith.constant 0 : index
    %c0_1 = arith.constant 0 : index
    %c0_2 = arith.constant 0 : index
    %3 = vector.load %arg2[%c0, %c0_1, %c0_2] : memref<1x8x32768xf32, #tpu.memory_space<vmem>>, vector<1x8x32768xf32>
    %4 = vector.shape_cast %3 : vector<1x8x32768xf32> to vector<8x32768xf32>
    %c0_3 = arith.constant 0 : index
    %c0_4 = arith.constant 0 : index
    %c0_5 = arith.constant 0 : index
    %5 = vector.load %arg3[%c0_3, %c0_4, %c0_5] : memref<1x8x8xf32, #tpu.memory_space<vmem>>, vector<1x8x8xf32>
    %6 = vector.shape_cast %5 : vector<1x8x8xf32> to vector<8x8xf32>
    %cst = arith.constant dense<0.000000e+00> : vector<8x8xf32>
    %7 = tpu.matmul %4, %4, %cst {dimension_numbers = #tpu.dot_dimension_numbers<[1], [1], [0], [0], [0, 0, 1, 0], [], []>} : vector<8x32768xf32>, vector<8x32768xf32>, vector<8x8xf32> -> vector<8x8xf32>
    %8 = arith.addf %6, %7 : vector<8x8xf32>
    %c0_6 = arith.constant 0 : index
    %c0_7 = arith.constant 0 : index
    %c0_8 = arith.constant 0 : index
    %9 = vector.load %arg3[%c0_6, %c0_7, %c0_8] : memref<1x8x8xf32, #tpu.memory_space<vmem>>, vector<1x8x8xf32>
    %10 = vector.shape_cast %9 : vector<1x8x8xf32> to vector<8x8xf32>
    %11 = vector.shape_cast %8 : vector<8x8xf32> to vector<1x8x8xf32>
    tpu.vector_store %arg3[%c0_6, %c0_7, %c0_8], %11 {strides = array<i32>} : memref<1x8x8xf32, #tpu.memory_space<vmem>>, vector<1x8x8xf32>,
    %c0_i32_9 = arith.constant 0 : i32
    %12 = arith.cmpi eq, %arg1, %c0_i32_9 : i32
    %13 = arith.extui %12 : i1 to i32
    %c0_i32_10 = arith.constant 0 : i32
    %14 = arith.cmpi ne, %13, %c0_i32_10 : i32
    scf.if %14 {
      %c0_11 = arith.constant 0 : index
      %c0_12 = arith.constant 0 : index
      %c0_13 = arith.constant 0 : index
      %15 = vector.load %arg3[%c0_11, %c0_12, %c0_13] : memref<1x8x8xf32, #tpu.memory_space<vmem>>, vector<1x8x8xf32>
      %16 = vector.shape_cast %15 : vector<1x8x8xf32> to vector<8x8xf32>
      %17 = tpu.iota {dimensions = array<i32: 0>} : vector<8x8xi32>
      %18 = tpu.iota {dimensions = array<i32: 1>} : vector<8x8xi32>
      %19 = arith.cmpi eq, %17, %18 : vector<8x8xi32>
      %cst_14 = arith.constant 0.000000e+00 : f32
      %20 = vector.broadcast %cst_14 : f32 to vector<8x8xf32>
      %21 = arith.select %19, %16, %20 : vector<8x8xi1>, vector<8x8xf32>
      %cst_15 = arith.constant dense<0.000000e+00> : vector<8xf32>
      %22 = vector.multi_reduction <add>, %21, %cst_15 [1] : vector<8x8xf32> to vector<8xf32>
      %23 = vector.shape_cast %22 : vector<8xf32> to vector<8x1xf32>
      %cst_16 = arith.constant dense<0.000000e+00> : vector<8xf32>
      %24 = vector.multi_reduction <add>, %21, %cst_16 [0] : vector<8x8xf32> to vector<8xf32>
      %25 = vector.shape_cast %24 : vector<8xf32> to vector<1x8xf32>
      %26 = math.sqrt %23 : vector<8x1xf32>
      %cst_17 = arith.constant 1.1920929E-7 : f32
      %27 = vector.broadcast %cst_17 : f32 to vector<8x1xf32>
      %28 = arith.addf %26, %27 : vector<8x1xf32>
      %cst_18 = arith.constant 1.000000e+00 : f32
      %29 = vector.broadcast %cst_18 : f32 to vector<8x1xf32>
      %30 = arith.divf %29, %28 : vector<8x1xf32>
      %31 = math.sqrt %25 : vector<1x8xf32>
      %cst_19 = arith.constant 1.1920929E-7 : f32
      %32 = vector.broadcast %cst_19 : f32 to vector<1x8xf32>
      %33 = arith.addf %31, %32 : vector<1x8xf32>
      %cst_20 = arith.constant 1.000000e+00 : f32
      %34 = vector.broadcast %cst_20 : f32 to vector<1x8xf32>
      %35 = arith.divf %34, %33 : vector<1x8xf32>
      %36 = vector.broadcast %30 : vector<8x1xf32> to vector<8x8xf32>
      %37 = arith.mulf %16, %36 : vector<8x8xf32>
      %38 = vector.broadcast %35 : vector<1x8xf32> to vector<8x8xf32>
      %39 = arith.mulf %37, %38 : vector<8x8xf32>
      %c0_21 = arith.constant 0 : index
      %c0_22 = arith.constant 0 : index
      %c0_23 = arith.constant 0 : index
      %40 = vector.load %arg4[%c0_21, %c0_22, %c0_23] : memref<1x8x8xf32, #tpu.memory_space<vmem>>, vector<1x8x8xf32>
      %41 = vector.shape_cast %40 : vector<1x8x8xf32> to vector<8x8xf32>
      %42 = vector.shape_cast %39 : vector<8x8xf32> to vector<1x8x8xf32>
      tpu.vector_store %arg4[%c0_21, %c0_22, %c0_23], %42 {strides = array<i32>} : memref<1x8x8xf32, #tpu.memory_space<vmem>>, vector<1x8x8xf32>,
    } else {
    }
    return
  }
  func.func @transform_0(%arg0: i32, %arg1: i32) -> (i32, i32, i32) {
    %c0_i32 = arith.constant 0 : i32
    %c0_i32_0 = arith.constant 0 : i32
    return %arg0, %c0_i32, %arg1 : i32, i32, i32
  }
  func.func @transform_1(%arg0: i32, %arg1: i32) -> (i32, i32, i32) {
    %c0_i32 = arith.constant 0 : i32
    %c0_i32_0 = arith.constant 0 : i32
    %c0_i32_1 = arith.constant 0 : i32
    return %arg0, %c0_i32, %c0_i32_0 : i32, i32, i32
  }
  func.func @transform_2(%arg0: i32, %arg1: i32) -> (i32, i32, i32) {
    %c0_i32 = arith.constant 0 : i32
    %c0_i32_0 = arith.constant 0 : i32
    %c0_i32_1 = arith.constant 0 : i32
    return %arg0, %c0_i32, %c0_i32_0 : i32, i32, i32
  }
}

</mosaic_0001>

<llo_original>
// kernel: tpu_custom_call.1
$region0: #{tpu_custom_call.1}
  #allocation0 [shape = 'u32[]', space=smem, size = 0x4, offset = 0x4, fixed_abs, tag = 'smem constant byte address 0x4 - core index']
  #allocation1 [shape = 'u32[72,128]{1,0:T(1,128)}', space=vmem, size = 0x9000, scoped, tag = 'internal scratch']
  %s0 = inlined_call_operand.hbm [shape: f32[2,8,32768], index: 0, kind: input, shape index: {}]
  %s1 = inlined_call_operand.hbm [shape: f32[2,8,8], index: 1, kind: output, shape index: {0}]
  %s2 = inlined_call_operand.hbm [shape: f32[2,8,8], index: 2, kind: output, shape index: {1}]
  %3 = xla_tuple %s1, %s2
  %s4 = sld [smem:[#allocation0]]
  $region57: #{tpu_custom_call.1} parent=0
    _
  %s6 = ssub.s32 1, %s4
  %s7 = scalar_select 0, %s6, %s4
  $region1: #{tpu_custom_call.1} parent=0
    #allocation2 [shape = 'u8[2097152]{0}', space=vmem, size = 0x200000, scoped, tag = 'input window, operand 0']
    #allocation3 [shape = 's32[2]{0}', space=sflag, size = 0x8, scoped, tag = 'scoped memory for tpu_custom_call.1']
    #allocation4 [shape = 's32[2]{0}', space=sflag, size = 0x8, scoped, tag = 'scoped memory for tpu_custom_call.1']
    #allocation5 [shape = 'u8[8192]{0}', space=vmem, size = 0x2000, scoped, tag = 'output window, operand 0']
    #allocation6 [shape = 'u8[8192]{0}', space=vmem, size = 0x2000, scoped, tag = 'output window, operand 1']
    #allocation7 [shape = 's32[2]{0}', space=sflag, size = 0x8, scoped, tag = 'scoped memory for tpu_custom_call.1']
    %8 = vsyncpa [#allocation3], 0
    %s9 = scalar_lea.sflag [#allocation3], 1
    %10 = vsyncpa %s9, 0
    %11 = vsyncpa [#allocation4], 0
    %s12 = scalar_lea.sflag [#allocation4], 1
    %13 = vsyncpa %s12, 0
    %14 = vsyncpa [#allocation7], 0
    %s15 = scalar_lea.sflag [#allocation7], 1
    %16 = vsyncpa %s15, 0
    loop: start=0, step=1, limit=4
    $region2: #{tpu_custom_call.1} parent=1 // loop_pre_header
      _
    $region3: #{tpu_custom_call.1} parent=1 // loop_header
      %s18 = sphi 0, %s22
      %p19 = scmp.ge.s32.totalorder %s18, 4
      %s25 = sphi 0, %s37
      %s26 = sphi 0, %s33
      %s27 = sphi 0, %s25
      %s28 = sphi 0, %s26
      %s29 = sphi 0, %s27
      %s30 = sphi 0, %s28
      %s42 = sphi 0, %s44
      %s45 = sphi 0, %s42
      %s46 = sphi 0, %s45
      %s62 = sphi 0, %s46
      %s68 = sphi 0, %s70
      %s71 = sphi 0, %s68
      %s72 = sphi 0, %s71
      %s88 = sphi 0, %s72
      %s94 = sphi 0, %s96
      %s97 = sphi 0, %s94
      %s98 = sphi 0, %s97
      %s114 = sphi 0, %s98
    $region4: #{tpu_custom_call.1} parent=1 // loop_header_branch
      %21 = sbr.rel (%p19) target = $region8
    $region5: #{tpu_custom_call.1} parent=1 // loop_body
      %s23 = ssub.s32 %s18, 1
      %s24 = ssub.s32 %s18, 2
      %s31 = sadd.s32 1, %s26
      %p32 = scmp.ge.s32.totalorder %s31, 1
      %s33 = scalar_select %p32, 0, %s31
      %s34 = sadd.s32 1, %s25
      %s35 = scalar_select %p32, %s34, %s25
      %p36 = scmp.ge.s32.totalorder %s35, 2
      %s37 = scalar_select %p36, 0, %s35
      %s38 = ssub.s32 %s25, %s37
      %s39 = ssub.s32 %s26, %s33
      %s40 = sor.u32 %s38, %s39
      %p41 = scmp.eq.s32.totalorder %s40, 0
      %s43 = sadd.s32 %s42, 1
      %s44 = scalar_select %p41, %s42, %s43
      %p47 = pneg %p41
      %p48 = scmp.eq.s32.totalorder %s18, 1
      %p49 = por %p47, %p48
      %p50 = scmp.ne.s32.totalorder %s42, %s45
      %p51 = scmp.eq.s32.totalorder %s18, 0
      %p52 = por %p50, %p51
      %p53 = scmp.ne.s32.totalorder %s42, %s45
      %p54 = scmp.eq.s32.totalorder %s23, 1
      %p55 = por %p53, %p54
      %p56 = scmp.ne.s32.totalorder %s45, %s46
      %p57 = scmp.eq.s32.totalorder %s23, 0
      %p58 = por %p56, %p57
      %p59 = scmp.ne.s32.totalorder %s45, %s46
      %p60 = scmp.eq.s32.totalorder %s24, 1
      %p61 = por %p59, %p60
      %p63 = scmp.ne.s32.totalorder %s46, %s62
      %p64 = scmp.eq.s32.totalorder %s24, 0
      %p65 = por %p63, %p64
      %s66 = ssub.s32 %s25, %s37
      %p67 = scmp.eq.s32.totalorder %s66, 0
      %s69 = sadd.s32 %s68, 1
      %s70 = scalar_select %p67, %s68, %s69
      %p73 = pneg %p67
      %p74 = scmp.eq.s32.totalorder %s18, 1
      %p75 = por %p73, %p74
      %p76 = scmp.ne.s32.totalorder %s68, %s71
      %p77 = scmp.eq.s32.totalorder %s18, 0
      %p78 = por %p76, %p77
      %p79 = scmp.ne.s32.totalorder %s68, %s71
      %p80 = scmp.eq.s32.totalorder %s23, 1
      %p81 = por %p79, %p80
      %p82 = scmp.ne.s32.totalorder %s71, %s72
      %p83 = scmp.eq.s32.totalorder %s23, 0
      %p84 = por %p82, %p83
      %p85 = scmp.ne.s32.totalorder %s71, %s72
      %p86 = scmp.eq.s32.totalorder %s24, 1
      %p87 = por %p85, %p86
      %p89 = scmp.ne.s32.totalorder %s72, %s88
      %p90 = scmp.eq.s32.totalorder %s24, 0
      %p91 = por %p89, %p90
      %s92 = ssub.s32 %s25, %s37
      %p93 = scmp.eq.s32.totalorder %s92, 0
      %s95 = sadd.s32 %s94, 1
      %s96 = scalar_select %p93, %s94, %s95
      %p99 = pneg %p93
      %p100 = scmp.eq.s32.totalorder %s18, 1
      %p101 = por %p99, %p100
      %p102 = scmp.ne.s32.totalorder %s94, %s97
      %p103 = scmp.eq.s32.totalorder %s18, 0
      %p104 = por %p102, %p103
      %p105 = scmp.ne.s32.totalorder %s94, %s97
      %p106 = scmp.eq.s32.totalorder %s23, 1
      %p107 = por %p105, %p106
      %p108 = scmp.ne.s32.totalorder %s97, %s98
      %p109 = scmp.eq.s32.totalorder %s23, 0
      %p110 = por %p108, %p109
      %p111 = scmp.ne.s32.totalorder %s97, %s98
      %p112 = scmp.eq.s32.totalorder %s24, 1
      %p113 = por %p111, %p112
      %p115 = scmp.ne.s32.totalorder %s98, %s114
      %p116 = scmp.eq.s32.totalorder %s24, 0
      %p117 = por %p115, %p116
      %p118 = scmp.le.s32.totalorder 1, %s18
      %p119 = scmp.lt.s32.totalorder %s18, 3
      %p120 = pnand %p118, %p119
      %p121 = pneg %p120
      // Predicated region
      $region9: #{tpu_custom_call.1} parent=5 // pred_check
        _
      $region10: #{tpu_custom_call.1} parent=5 // pred_check_branch
        %123 = sbr.rel (%p120) target = $region12
      $region11: #{tpu_custom_call.1} parent=5 // pred_region
        %s124 = ssub.s32 %s18, 1
      $region12: #{tpu_custom_call.1} parent=5 // pred_fallthru
        _
      %p125 = scmp.lt.s32.totalorder %s18, 2
      // Predicated region
      $region13: #{tpu_custom_call.1} parent=5 // pred_check
        %p126 = pneg %p125
      $region14: #{tpu_custom_call.1} parent=5 // pred_check_branch
        %128 = sbr.rel (%p126) target = $region16
      $region15: #{tpu_custom_call.1} parent=5 // pred_region
        // Predicated region
        $region17: #{tpu_custom_call.1} parent=15 // pred_check
          %p129 = pneg %p52
        $region18: #{tpu_custom_call.1} parent=15 // pred_check_branch
          %131 = sbr.rel (%p129) target = $region20
        $region19: #{tpu_custom_call.1} parent=15 // pred_region
          %s132 = sand.u32 %s42, 1
          %s133 = scalar_lea.sflag [#allocation3], %s132
          %s134 = sand.u32 %s42, 1
          %s135 = smul.addr %s134, 2048
          %s136 = scalar_lea.vmem [#allocation2], %s135
          %s137 = smul.u32 256, %s26
          %139 = vsyncadd %s133, 0
          %s140 = smul.addr %s25, 256
          %s141 = sadd.s32 %s137, %s140
          %s142 = smul.addr %s141, 8
          %s143 = scalar_lea.hbm %s0, %s142
          %s145 = sshll.u32 %s143, 4
          %s146 = int_to_ptr.hbm [resolvable:$true] %s145
          %s147 = sshll.u32 %s136, 4
          %s148 = int_to_ptr.vmem [resolvable:$true] %s147
          %150 = dma.hbm_to_vmem [thread:$0]  %s146, 32768, %s148, %s133
        $region20: #{tpu_custom_call.1} parent=15 // pred_fallthru
          _
      $region16: #{tpu_custom_call.1} parent=5 // pred_fallthru
        _
      %p151 = scmp.le.s32.totalorder 1, %s18
      %p152 = scmp.lt.s32.totalorder %s18, 3
      %p153 = pnand %p151, %p152
      %p154 = pneg %p153
      // Predicated region
      $region21: #{tpu_custom_call.1} parent=5 // pred_check
        _
      $region22: #{tpu_custom_call.1} parent=5 // pred_check_branch
        %156 = sbr.rel (%p153) target = $region24
      $region23: #{tpu_custom_call.1} parent=5 // pred_region
        %s157 = ssub.s32 %s18, 1
        %s158 = sand.u32 %s45, 1
        %s159 = scalar_lea.sflag [#allocation3], %s158
        %s160 = sand.u32 %s45, 1
        %s161 = smul.addr %s160, 2048
        %s162 = scalar_lea.vmem [#allocation2], %s161
        // Predicated region
        $region25: #{tpu_custom_call.1} parent=23 // pred_check
          %p163 = pneg %p58
        $region26: #{tpu_custom_call.1} parent=23 // pred_check_branch
          %165 = sbr.rel (%p163) target = $region28
        $region27: #{tpu_custom_call.1} parent=23 // pred_region
          %167 = dma.done %s159, 32768
        $region28: #{tpu_custom_call.1} parent=23 // pred_fallthru
          _
        %s168 = sand.u32 %s45, 1
        %s169 = scalar_lea.sflag [#allocation3], %s168
        %s170 = sand.u32 %s45, 1
        %s171 = smul.addr %s170, 2048
        %s172 = scalar_lea.vmem [#allocation2], %s171
        %p173 = pneg %p58
        %p174 = pneg %p55
        %p175 = pneg %p84
        %p176 = pneg %p81
        %s177 = sand.u32 %s71, 1
        %s178 = scalar_lea.sflag [#allocation4], %s177
        %s179 = sand.u32 %s71, 1
        %s180 = smul.addr %s179, 8
        %s181 = scalar_lea.vmem [#allocation5], %s180
        %p182 = pneg %p110
        %p183 = pneg %p107
        %s184 = sand.u32 %s97, 1
        %s185 = scalar_lea.sflag [#allocation7], %s184
        %s186 = sand.u32 %s97, 1
        %s187 = smul.addr %s186, 8
        %s188 = scalar_lea.vmem [#allocation6], %s187
        %s189 = smul.u32 256, %s28
        %p190 = scmp.eq.s32.totalorder %s28, 0
        // Predicated region
        $region29: #{tpu_custom_call.1} parent=23 // pred_check
          %p191 = pneg %p190
        $region30: #{tpu_custom_call.1} parent=23 // pred_check_branch
          %193 = sbr.rel (%p191) target = $region32
        $region31: #{tpu_custom_call.1} parent=23 // pred_region
          %vm194 = vcmask 64512
          %195 = vst.msk [vmem:[%s181] sm:$0xff] %vm194, 0.0
        $region32: #{tpu_custom_call.1} parent=23 // pred_fallthru
          _
        %v196 = vld [vmem:[%s162] sm:$0xff]
        %v197 = vld [vmem:[%s162 + $0x8] sm:$0xff]
        %v198 = vld [vmem:[%s162 + $0x10] sm:$0xff]
        %v199 = vld [vmem:[%s162 + $0x18] sm:$0xff]
        %v200 = vld [vmem:[%s162 + $0x20] sm:$0xff]
        %v201 = vld [vmem:[%s162 + $0x28] sm:$0xff]
        %v202 = vld [vmem:[%s162 + $0x30] sm:$0xff]
        %v203 = vld [vmem:[%s162 + $0x38] sm:$0xff]
        %v204 = vld [vmem:[%s162 + $0x40] sm:$0xff]
        %v205 = vld [vmem:[%s162 + $0x48] sm:$0xff]
        %v206 = vld [vmem:[%s162 + $0x50] sm:$0xff]
        %v207 = vld [vmem:[%s162 + $0x58] sm:$0xff]
        %v208 = vld [vmem:[%s162 + $0x60] sm:$0xff]
        %v209 = vld [vmem:[%s162 + $0x68] sm:$0xff]
        %v210 = vld [vmem:[%s162 + $0x70] sm:$0xff]
        %v211 = vld [vmem:[%s162 + $0x78] sm:$0xff]
        %v212 = vld [vmem:[%s162 + $0x80] sm:$0xff]
        %v213 = vld [vmem:[%s162 + $0x88] sm:$0xff]
        %v214 = vld [vmem:[%s162 + $0x90] sm:$0xff]
        %v215 = vld [vmem:[%s162 + $0x98] sm:$0xff]
        %v216 = vld [vmem:[%s162 + $0xa0] sm:$0xff]
        %v217 = vld [vmem:[%s162 + $0xa8] sm:$0xff]
        %v218 = vld [vmem:[%s162 + $0xb0] sm:$0xff]
        %v219 = vld [vmem:[%s162 + $0xb8] sm:$0xff]
        %v220 = vld [vmem:[%s162 + $0xc0] sm:$0xff]
        %v221 = vld [vmem:[%s162 + $0xc8] sm:$0xff]
        %v222 = vld [vmem:[%s162 + $0xd0] sm:$0xff]
        %v223 = vld [vmem:[%s162 + $0xd8] sm:$0xff]
        %v224 = vld [vmem:[%s162 + $0xe0] sm:$0xff]
        %v225 = vld [vmem:[%s162 + $0xe8] sm:$0xff]
        %v226 = vld [vmem:[%s162 + $0xf0] sm:$0xff]
        %v227 = vld [vmem:[%s162 + $0xf8] sm:$0xff]
        %v228 = vld [vmem:[%s162 + $0x100] sm:$0xff]
        %v229 = vld [vmem:[%s162 + $0x108] sm:$0xff]
        %v230 = vld [vmem:[%s162 + $0x110] sm:$0xff]
        %v231 = vld [vmem:[%s162 + $0x118] sm:$0xff]
        %v232 = vld [vmem:[%s162 + $0x120] sm:$0xff]
        %v233 = vld [vmem:[%s162 + $0x128] sm:$0xff]
        %v234 = vld [vmem:[%s162 + $0x130] sm:$0xff]
        %v235 = vld [vmem:[%s162 + $0x138] sm:$0xff]
        %v236 = vld [vmem:[%s162 + $0x140] sm:$0xff]
        %v237 = vld [vmem:[%s162 + $0x148] sm:$0xff]
        %v238 = vld [vmem:[%s162 + $0x150] sm:$0xff]
        %v239 = vld [vmem:[%s162 + $0x158] sm:$0xff]
        %v240 = vld [vmem:[%s162 + $0x160] sm:$0xff]
        %v241 = vld [vmem:[%s162 + $0x168] sm:$0xff]
        %v242 = vld [vmem:[%s162 + $0x170] sm:$0xff]
        %v243 = vld [vmem:[%s162 + $0x178] sm:$0xff]
        %v244 = vld [vmem:[%s162 + $0x180] sm:$0xff]
        %v245 = vld [vmem:[%s162 + $0x188] sm:$0xff]
        %v246 = vld [vmem:[%s162 + $0x190] sm:$0xff]
        %v247 = vld [vmem:[%s162 + $0x198] sm:$0xff]
        %v248 = vld [vmem:[%s162 + $0x1a0] sm:$0xff]
        %v249 = vld [vmem:[%s162 + $0x1a8] sm:$0xff]
        %v250 = vld [vmem:[%s162 + $0x1b0] sm:$0xff]
        %v251 = vld [vmem:[%s162 + $0x1b8] sm:$0xff]
        %v252 = vld [vmem:[%s162 + $0x1c0] sm:$0xff]
        %v253 = vld [vmem:[%s162 + $0x1c8] sm:$0xff]
        %v254 = vld [vmem:[%s162 + $0x1d0] sm:$0xff]
        %v255 = vld [vmem:[%s162 + $0x1d8] sm:$0xff]
        %v256 = vld [vmem:[%s162 + $0x1e0] sm:$0xff]
        %v257 = vld [vmem:[%s162 + $0x1e8] sm:$0xff]
        %v258 = vld [vmem:[%s162 + $0x1f0] sm:$0xff]
        %v259 = vld [vmem:[%s162 + $0x1f8] sm:$0xff]
        %v260 = vld [vmem:[%s162 + $0x200] sm:$0xff]
        %v261 = vld [vmem:[%s162 + $0x208] sm:$0xff]
        %v262 = vld [vmem:[%s162 + $0x210] sm:$0xff]
        %v263 = vld [vmem:[%s162 + $0x218] sm:$0xff]
        %v264 = vld [vmem:[%s162 + $0x220] sm:$0xff]
        %v265 = vld [vmem:[%s162 + $0x228] sm:$0xff]
        %v266 = vld [vmem:[%s162 + $0x230] sm:$0xff]
        %v267 = vld [vmem:[%s162 + $0x238] sm:$0xff]
        %v268 = vld [vmem:[%s162 + $0x240] sm:$0xff]
        %v269 = vld [vmem:[%s162 + $0x248] sm:$0xff]
        %v270 = vld [vmem:[%s162 + $0x250] sm:$0xff]
        %v271 = vld [vmem:[%s162 + $0x258] sm:$0xff]
        %v272 = vld [vmem:[%s162 + $0x260] sm:$0xff]
        %v273 = vld [vmem:[%s162 + $0x268] sm:$0xff]
        %v274 = vld [vmem:[%s162 + $0x270] sm:$0xff]
        %v275 = vld [vmem:[%s162 + $0x278] sm:$0xff]
        %v276 = vld [vmem:[%s162 + $0x280] sm:$0xff]
        %v277 = vld [vmem:[%s162 + $0x288] sm:$0xff]
        %v278 = vld [vmem:[%s162 + $0x290] sm:$0xff]
        %v279 = vld [vmem:[%s162 + $0x298] sm:$0xff]
        %v280 = vld [vmem:[%s162 + $0x2a0] sm:$0xff]
        %v281 = vld [vmem:[%s162 + $0x2a8] sm:$0xff]
        %v282 = vld [vmem:[%s162 + $0x2b0] sm:$0xff]
        %v283 = vld [vmem:[%s162 + $0x2b8] sm:$0xff]
        %v284 = vld [vmem:[%s162 + $0x2c0] sm:$0xff]
        %v285 = vld [vmem:[%s162 + $0x2c8] sm:$0xff]
        %v286 = vld [vmem:[%s162 + $0x2d0] sm:$0xff]
        %v287 = vld [vmem:[%s162 + $0x2d8] sm:$0xff]
        %v288 = vld [vmem:[%s162 + $0x2e0] sm:$0xff]
        %v289 = vld [vmem:[%s162 + $0x2e8] sm:$0xff]
        %v290 = vld [vmem:[%s162 + $0x2f0] sm:$0xff]
        %v291 = vld [vmem:[%s162 + $0x2f8] sm:$0xff]
        %v292 = vld [vmem:[%s162 + $0x300] sm:$0xff]
        %v293 = vld [vmem:[%s162 + $0x308] sm:$0xff]
        %v294 = vld [vmem:[%s162 + $0x310] sm:$0xff]
        %v295 = vld [vmem:[%s162 + $0x318] sm:$0xff]
        %v296 = vld [vmem:[%s162 + $0x320] sm:$0xff]
        %v297 = vld [vmem:[%s162 + $0x328] sm:$0xff]
        %v298 = vld [vmem:[%s162 + $0x330] sm:$0xff]
        %v299 = vld [vmem:[%s162 + $0x338] sm:$0xff]
        %v300 = vld [vmem:[%s162 + $0x340] sm:$0xff]
        %v301 = vld [vmem:[%s162 + $0x348] sm:$0xff]
        %v302 = vld [vmem:[%s162 + $0x350] sm:$0xff]
        %v303 = vld [vmem:[%s162 + $0x358] sm:$0xff]
        %v304 = vld [vmem:[%s162 + $0x360] sm:$0xff]
        %v305 = vld [vmem:[%s162 + $0x368] sm:$0xff]
        %v306 = vld [vmem:[%s162 + $0x370] sm:$0xff]
        %v307 = vld [vmem:[%s162 + $0x378] sm:$0xff]
        %v308 = vld [vmem:[%s162 + $0x380] sm:$0xff]
        %v309 = vld [vmem:[%s162 + $0x388] sm:$0xff]
        %v310 = vld [vmem:[%s162 + $0x390] sm:$0xff]
        %v311 = vld [vmem:[%s162 + $0x398] sm:$0xff]
        %v312 = vld [vmem:[%s162 + $0x3a0] sm:$0xff]
        %v313 = vld [vmem:[%s162 + $0x3a8] sm:$0xff]
        %v314 = vld [vmem:[%s162 + $0x3b0] sm:$0xff]
        %v315 = vld [vmem:[%s162 + $0x3b8] sm:$0xff]
        %v316 = vld [vmem:[%s162 + $0x3c0] sm:$0xff]
        %v317 = vld [vmem:[%s162 + $0x3c8] sm:$0xff]
        %v318 = vld [vmem:[%s162 + $0x3d0] sm:$0xff]
        %v319 = vld [vmem:[%s162 + $0x3d8] sm:$0xff]
        %v320 = vld [vmem:[%s162 + $0x3e0] sm:$0xff]
        %v321 = vld [vmem:[%s162 + $0x3e8] sm:$0xff]
        %v322 = vld [vmem:[%s162 + $0x3f0] sm:$0xff]
        %v323 = vld [vmem:[%s162 + $0x3f8] sm:$0xff]
        %v324 = vld [vmem:[%s162 + $0x400] sm:$0xff]
        %v325 = vld [vmem:[%s162 + $0x408] sm:$0xff]
        %v326 = vld [vmem:[%s162 + $0x410] sm:$0xff]
        %v327 = vld [vmem:[%s162 + $0x418] sm:$0xff]
        %v328 = vld [vmem:[%s162 + $0x420] sm:$0xff]
        %v329 = vld [vmem:[%s162 + $0x428] sm:$0xff]
        %v330 = vld [vmem:[%s162 + $0x430] sm:$0xff]
        %v331 = vld [vmem:[%s162 + $0x438] sm:$0xff]
        %v332 = vld [vmem:[%s162 + $0x440] sm:$0xff]
        %v333 = vld [vmem:[%s162 + $0x448] sm:$0xff]
        %v334 = vld [vmem:[%s162 + $0x450] sm:$0xff]
        %v335 = vld [vmem:[%s162 + $0x458] sm:$0xff]
        %v336 = vld [vmem:[%s162 + $0x460] sm:$0xff]
        %v337 = vld [vmem:[%s162 + $0x468] sm:$0xff]
        %v338 = vld [vmem:[%s162 + $0x470] sm:$0xff]
        %v339 = vld [vmem:[%s162 + $0x478] sm:$0xff]
        %v340 = vld [vmem:[%s162 + $0x480] sm:$0xff]
        %v341 = vld [vmem:[%s162 + $0x488] sm:$0xff]
        %v342 = vld [vmem:[%s162 + $0x490] sm:$0xff]
        %v343 = vld [vmem:[%s162 + $0x498] sm:$0xff]
        %v344 = vld [vmem:[%s162 + $0x4a0] sm:$0xff]
        %v345 = vld [vmem:[%s162 + $0x4a8] sm:$0xff]
        %v346 = vld [vmem:[%s162 + $0x4b0] sm:$0xff]
        %v347 = vld [vmem:[%s162 + $0x4b8] sm:$0xff]
        %v348 = vld [vmem:[%s162 + $0x4c0] sm:$0xff]
        %v349 = vld [vmem:[%s162 + $0x4c8] sm:$0xff]
        %v350 = vld [vmem:[%s162 + $0x4d0] sm:$0xff]
        %v351 = vld [vmem:[%s162 + $0x4d8] sm:$0xff]
        %v352 = vld [vmem:[%s162 + $0x4e0] sm:$0xff]
        %v353 = vld [vmem:[%s162 + $0x4e8] sm:$0xff]
        %v354 = vld [vmem:[%s162 + $0x4f0] sm:$0xff]
        %v355 = vld [vmem:[%s162 + $0x4f8] sm:$0xff]
        %v356 = vld [vmem:[%s162 + $0x500] sm:$0xff]
        %v357 = vld [vmem:[%s162 + $0x508] sm:$0xff]
        %v358 = vld [vmem:[%s162 + $0x510] sm:$0xff]
        %v359 = vld [vmem:[%s162 + $0x518] sm:$0xff]
        %v360 = vld [vmem:[%s162 + $0x520] sm:$0xff]
        %v361 = vld [vmem:[%s162 + $0x528] sm:$0xff]
        %v362 = vld [vmem:[%s162 + $0x530] sm:$0xff]
        %v363 = vld [vmem:[%s162 + $0x538] sm:$0xff]
        %v364 = vld [vmem:[%s162 + $0x540] sm:$0xff]
        %v365 = vld [vmem:[%s162 + $0x548] sm:$0xff]
        %v366 = vld [vmem:[%s162 + $0x550] sm:$0xff]
        %v367 = vld [vmem:[%s162 + $0x558] sm:$0xff]
        %v368 = vld [vmem:[%s162 + $0x560] sm:$0xff]
        %v369 = vld [vmem:[%s162 + $0x568] sm:$0xff]
        %v370 = vld [vmem:[%s162 + $0x570] sm:$0xff]
        %v371 = vld [vmem:[%s162 + $0x578] sm:$0xff]
        %v372 = vld [vmem:[%s162 + $0x580] sm:$0xff]
        %v373 = vld [vmem:[%s162 + $0x588] sm:$0xff]
        %v374 = vld [vmem:[%s162 + $0x590] sm:$0xff]
        %v375 = vld [vmem:[%s162 + $0x598] sm:$0xff]
        %v376 = vld [vmem:[%s162 + $0x5a0] sm:$0xff]
        %v377 = vld [vmem:[%s162 + $0x5a8] sm:$0xff]
        %v378 = vld [vmem:[%s162 + $0x5b0] sm:$0xff]
        %v379 = vld [vmem:[%s162 + $0x5b8] sm:$0xff]
        %v380 = vld [vmem:[%s162 + $0x5c0] sm:$0xff]
        %v381 = vld [vmem:[%s162 + $0x5c8] sm:$0xff]
        %v382 = vld [vmem:[%s162 + $0x5d0] sm:$0xff]
        %v383 = vld [vmem:[%s162 + $0x5d8] sm:$0xff]
        %v384 = vld [vmem:[%s162 + $0x5e0] sm:$0xff]
        %v385 = vld [vmem:[%s162 + $0x5e8] sm:$0xff]
        %v386 = vld [vmem:[%s162 + $0x5f0] sm:$0xff]
        %v387 = vld [vmem:[%s162 + $0x5f8] sm:$0xff]
        %v388 = vld [vmem:[%s162 + $0x600] sm:$0xff]
        %v389 = vld [vmem:[%s162 + $0x608] sm:$0xff]
        %v390 = vld [vmem:[%s162 + $0x610] sm:$0xff]
        %v391 = vld [vmem:[%s162 + $0x618] sm:$0xff]
        %v392 = vld [vmem:[%s162 + $0x620] sm:$0xff]
        %v393 = vld [vmem:[%s162 + $0x628] sm:$0xff]
        %v394 = vld [vmem:[%s162 + $0x630] sm:$0xff]
        %v395 = vld [vmem:[%s162 + $0x638] sm:$0xff]
        %v396 = vld [vmem:[%s162 + $0x640] sm:$0xff]
        %v397 = vld [vmem:[%s162 + $0x648] sm:$0xff]
        %v398 = vld [vmem:[%s162 + $0x650] sm:$0xff]
        %v399 = vld [vmem:[%s162 + $0x658] sm:$0xff]
        %v400 = vld [vmem:[%s162 + $0x660] sm:$0xff]
        %v401 = vld [vmem:[%s162 + $0x668] sm:$0xff]
        %v402 = vld [vmem:[%s162 + $0x670] sm:$0xff]
        %v403 = vld [vmem:[%s162 + $0x678] sm:$0xff]
        %v404 = vld [vmem:[%s162 + $0x680] sm:$0xff]
        %v405 = vld [vmem:[%s162 + $0x688] sm:$0xff]
        %v406 = vld [vmem:[%s162 + $0x690] sm:$0xff]
        %v407 = vld [vmem:[%s162 + $0x698] sm:$0xff]
        %v408 = vld [vmem:[%s162 + $0x6a0] sm:$0xff]
        %v409 = vld [vmem:[%s162 + $0x6a8] sm:$0xff]
        %v410 = vld [vmem:[%s162 + $0x6b0] sm:$0xff]
        %v411 = vld [vmem:[%s162 + $0x6b8] sm:$0xff]
        %v412 = vld [vmem:[%s162 + $0x6c0] sm:$0xff]
        %v413 = vld [vmem:[%s162 + $0x6c8] sm:$0xff]
        %v414 = vld [vmem:[%s162 + $0x6d0] sm:$0xff]
        %v415 = vld [vmem:[%s162 + $0x6d8] sm:$0xff]
        %v416 = vld [vmem:[%s162 + $0x6e0] sm:$0xff]
        %v417 = vld [vmem:[%s162 + $0x6e8] sm:$0xff]
        %v418 = vld [vmem:[%s162 + $0x6f0] sm:$0xff]
        %v419 = vld [vmem:[%s162 + $0x6f8] sm:$0xff]
        %v420 = vld [vmem:[%s162 + $0x700] sm:$0xff]
        %v421 = vld [vmem:[%s162 + $0x708] sm:$0xff]
        %v422 = vld [vmem:[%s162 + $0x710] sm:$0xff]
        %v423 = vld [vmem:[%s162 + $0x718] sm:$0xff]
        %v424 = vld [vmem:[%s162 + $0x720] sm:$0xff]
        %v425 = vld [vmem:[%s162 + $0x728] sm:$0xff]
        %v426 = vld [vmem:[%s162 + $0x730] sm:$0xff]
        %v427 = vld [vmem:[%s162 + $0x738] sm:$0xff]
        %v428 = vld [vmem:[%s162 + $0x740] sm:$0xff]
        %v429 = vld [vmem:[%s162 + $0x748] sm:$0xff]
        %v430 = vld [vmem:[%s162 + $0x750] sm:$0xff]
        %v431 = vld [vmem:[%s162 + $0x758] sm:$0xff]
        %v432 = vld [vmem:[%s162 + $0x760] sm:$0xff]
        %v433 = vld [vmem:[%s162 + $0x768] sm:$0xff]
        %v434 = vld [vmem:[%s162 + $0x770] sm:$0xff]
        %v435 = vld [vmem:[%s162 + $0x778] sm:$0xff]
        %v436 = vld [vmem:[%s162 + $0x780] sm:$0xff]
        %v437 = vld [vmem:[%s162 + $0x788] sm:$0xff]
        %v438 = vld [vmem:[%s162 + $0x790] sm:$0xff]
        %v439 = vld [vmem:[%s162 + $0x798] sm:$0xff]
        %v440 = vld [vmem:[%s162 + $0x7a0] sm:$0xff]
        %v441 = vld [vmem:[%s162 + $0x7a8] sm:$0xff]
        %v442 = vld [vmem:[%s162 + $0x7b0] sm:$0xff]
        %v443 = vld [vmem:[%s162 + $0x7b8] sm:$0xff]
        %v444 = vld [vmem:[%s162 + $0x7c0] sm:$0xff]
        %v445 = vld [vmem:[%s162 + $0x7c8] sm:$0xff]
        %v446 = vld [vmem:[%s162 + $0x7d0] sm:$0xff]
        %v447 = vld [vmem:[%s162 + $0x7d8] sm:$0xff]
        %v448 = vld [vmem:[%s162 + $0x7e0] sm:$0xff]
        %v449 = vld [vmem:[%s162 + $0x7e8] sm:$0xff]
        %v450 = vld [vmem:[%s162 + $0x7f0] sm:$0xff]
        %v451 = vld [vmem:[%s162 + $0x7f8] sm:$0xff]
        %v452 = vld [vmem:[%s181] sm:$0xff]
        %453 = vmatpush.xpose.msra.mxu0 0.0
        %454 = vmatpush.xpose.msra.mxu0 0.0
        %455 = vmatpush.xpose.msra.mxu0 0.0
        %456 = vmatpush.xpose.msra.mxu0 0.0
        %457 = vmatpush.xpose.msra.mxu0 0.0
        %458 = vmatpush.xpose.msra.mxu0 0.0
        %459 = vmatpush.xpose.msra.mxu0 0.0
        %460 = vmatpush.xpose.msra.mxu0 0.0
        %461 = vmatpush.xpose.msra.mxu0 0.0
        %462 = vmatpush.xpose.msra.mxu0 0.0
        %463 = vmatpush.xpose.msra.mxu0 0.0
        %464 = vmatpush.xpose.msra.mxu0 0.0
        %465 = vmatpush.xpose.msra.mxu0 0.0
        %466 = vmatpush.xpose.msra.mxu0 0.0
        %467 = vmatpush.xpose.msra.mxu0 0.0
        %468 = vmatpush.xpose.msra.mxu0 %v196
        %469 = vmatmul.f32.gmra.mxu0 %v196
        %v470 = vpop.f32.mrf.mxu0
        %v471 = vadd.f32 0.0, %v470
        %472 = vdwg.mxu0
        %473 = vmatpush.xpose.msra.mxu0 0.0
        %474 = vmatpush.xpose.msra.mxu0 0.0
        %475 = vmatpush.xpose.msra.mxu0 0.0
        %476 = vmatpush.xpose.msra.mxu0 0.0
        %477 = vmatpush.xpose.msra.mxu0 0.0
        %478 = vmatpush.xpose.msra.mxu0 0.0
        %479 = vmatpush.xpose.msra.mxu0 0.0
        %480 = vmatpush.xpose.msra.mxu0 0.0
        %481 = vmatpush.xpose.msra.mxu0 0.0
        %482 = vmatpush.xpose.msra.mxu0 0.0
        %483 = vmatpush.xpose.msra.mxu0 0.0
        %484 = vmatpush.xpose.msra.mxu0 0.0
        %485 = vmatpush.xpose.msra.mxu0 0.0
        %486 = vmatpush.xpose.msra.mxu0 0.0
        %487 = vmatpush.xpose.msra.mxu0 0.0
        %488 = vmatpush.xpose.msra.mxu0 %v197
        %489 = vmatmul.f32.gmra.mxu0 %v197
        %v490 = vpop.f32.mrf.mxu0
        %v491 = vadd.f32 %v471, %v490
        %492 = vdwg.mxu0
        %493 = vmatpush.xpose.msra.mxu0 0.0
        %494 = vmatpush.xpose.msra.mxu0 0.0
        %495 = vmatpush.xpose.msra.mxu0 0.0
        %496 = vmatpush.xpose.msra.mxu0 0.0
        %497 = vmatpush.xpose.msra.mxu0 0.0
        %498 = vmatpush.xpose.msra.mxu0 0.0
        %499 = vmatpush.xpose.msra.mxu0 0.0
        %500 = vmatpush.xpose.msra.mxu0 0.0
        %501 = vmatpush.xpose.msra.mxu0 0.0
        %502 = vmatpush.xpose.msra.mxu0 0.0
        %503 = vmatpush.xpose.msra.mxu0 0.0
        %504 = vmatpush.xpose.msra.mxu0 0.0
        %505 = vmatpush.xpose.msra.mxu0 0.0
        %506 = vmatpush.xpose.msra.mxu0 0.0
        %507 = vmatpush.xpose.msra.mxu0 0.0
        %508 = vmatpush.xpose.msra.mxu0 %v198
        %509 = vmatmul.f32.gmra.mxu0 %v198
        %v510 = vpop.f32.mrf.mxu0
        %v511 = vadd.f32 %v491, %v510
        %512 = vdwg.mxu0
        %513 = vmatpush.xpose.msra.mxu0 0.0
        %514 = vmatpush.xpose.msra.mxu0 0.0
        %515 = vmatpush.xpose.msra.mxu0 0.0
        %516 = vmatpush.xpose.msra.mxu0 0.0
        %517 = vmatpush.xpose.msra.mxu0 0.0
        %518 = vmatpush.xpose.msra.mxu0 0.0
        %519 = vmatpush.xpose.msra.mxu0 0.0
        %520 = vmatpush.xpose.msra.mxu0 0.0
        %521 = vmatpush.xpose.msra.mxu0 0.0
        %522 = vmatpush.xpose.msra.mxu0 0.0
        %523 = vmatpush.xpose.msra.mxu0 0.0
        %524 = vmatpush.xpose.msra.mxu0 0.0
        %525 = vmatpush.xpose.msra.mxu0 0.0
        %526 = vmatpush.xpose.msra.mxu0 0.0
        %527 = vmatpush.xpose.msra.mxu0 0.0
        %528 = vmatpush.xpose.msra.mxu0 %v199
        %529 = vmatmul.f32.gmra.mxu0 %v199
        %v530 = vpop.f32.mrf.mxu0
        %v531 = vadd.f32 %v511, %v530
        %532 = vdwg.mxu0
        %533 = vmatpush.xpose.msra.mxu0 0.0
        %534 = vmatpush.xpose.msra.mxu0 0.0
        %535 = vmatpush.xpose.msra.mxu0 0.0
        %536 = vmatpush.xpose.msra.mxu0 0.0
        %537 = vmatpush.xpose.msra.mxu0 0.0
        %538 = vmatpush.xpose.msra.mxu0 0.0
        %539 = vmatpush.xpose.msra.mxu0 0.0
        %540 = vmatpush.xpose.msra.mxu0 0.0
        %541 = vmatpush.xpose.msra.mxu0 0.0
        %542 = vmatpush.xpose.msra.mxu0 0.0
        %543 = vmatpush.xpose.msra.mxu0 0.0
        %544 = vmatpush.xpose.msra.mxu0 0.0
        %545 = vmatpush.xpose.msra.mxu0 0.0
        %546 = vmatpush.xpose.msra.mxu0 0.0
        %547 = vmatpush.xpose.msra.mxu0 0.0
        %548 = vmatpush.xpose.msra.mxu0 %v200
        %549 = vmatmul.f32.gmra.mxu0 %v200
        %v550 = vpop.f32.mrf.mxu0
        %v551 = vadd.f32 %v531, %v550
        %552 = vdwg.mxu0
        %553 = vmatpush.xpose.msra.mxu0 0.0
        %554 = vmatpush.xpose.msra.mxu0 0.0
        %555 = vmatpush.xpose.msra.mxu0 0.0
        %556 = vmatpush.xpose.msra.mxu0 0.0
        %557 = vmatpush.xpose.msra.mxu0 0.0
        %558 = vmatpush.xpose.msra.mxu0 0.0
        %559 = vmatpush.xpose.msra.mxu0 0.0
        %560 = vmatpush.xpose.msra.mxu0 0.0
        %561 = vmatpush.xpose.msra.mxu0 0.0
        %562 = vmatpush.xpose.msra.mxu0 0.0
        %563 = vmatpush.xpose.msra.mxu0 0.0
        %564 = vmatpush.xpose.msra.mxu0 0.0
        %565 = vmatpush.xpose.msra.mxu0 0.0
        %566 = vmatpush.xpose.msra.mxu0 0.0
        %567 = vmatpush.xpose.msra.mxu0 0.0
        %568 = vmatpush.xpose.msra.mxu0 %v201
        %569 = vmatmul.f32.gmra.mxu0 %v201
        %v570 = vpop.f32.mrf.mxu0
        %v571 = vadd.f32 %v551, %v570
        %572 = vdwg.mxu0
        %573 = vmatpush.xpose.msra.mxu0 0.0
        %574 = vmatpush.xpose.msra.mxu0 0.0
        %575 = vmatpush.xpose.msra.mxu0 0.0
        %576 = vmatpush.xpose.msra.mxu0 0.0
        %577 = vmatpush.xpose.msra.mxu0 0.0
        %578 = vmatpush.xpose.msra.mxu0 0.0
        %579 = vmatpush.xpose.msra.mxu0 0.0
        %580 = vmatpush.xpose.msra.mxu0 0.0
        %581 = vmatpush.xpose.msra.mxu0 0.0
        %582 = vmatpush.xpose.msra.mxu0 0.0
        %583 = vmatpush.xpose.msra.mxu0 0.0
        %584 = vmatpush.xpose.msra.mxu0 0.0
        %585 = vmatpush.xpose.msra.mxu0 0.0
        %586 = vmatpush.xpose.msra.mxu0 0.0
        %587 = vmatpush.xpose.msra.mxu0 0.0
        %588 = vmatpush.xpose.msra.mxu0 %v202
        %589 = vmatmul.f32.gmra.mxu0 %v202
        %v590 = vpop.f32.mrf.mxu0
        %v591 = vadd.f32 %v571, %v590
        %592 = vdwg.mxu0
        %593 = vmatpush.xpose.msra.mxu0 0.0
        %594 = vmatpush.xpose.msra.mxu0 0.0
        %595 = vmatpush.xpose.msra.mxu0 0.0
        %596 = vmatpush.xpose.msra.mxu0 0.0
        %597 = vmatpush.xpose.msra.mxu0 0.0
        %598 = vmatpush.xpose.msra.mxu0 0.0
        %599 = vmatpush.xpose.msra.mxu0 0.0
        %600 = vmatpush.xpose.msra.mxu0 0.0
        %601 = vmatpush.xpose.msra.mxu0 0.0
        %602 = vmatpush.xpose.msra.mxu0 0.0
        %603 = vmatpush.xpose.msra.mxu0 0.0
        %604 = vmatpush.xpose.msra.mxu0 0.0
        %605 = vmatpush.xpose.msra.mxu0 0.0
        %606 = vmatpush.xpose.msra.mxu0 0.0
        %607 = vmatpush.xpose.msra.mxu0 0.0
        %608 = vmatpush.xpose.msra.mxu0 %v203
        %609 = vmatmul.f32.gmra.mxu0 %v203
        %v610 = vpop.f32.mrf.mxu0
        %v611 = vadd.f32 %v591, %v610
        %612 = vdwg.mxu0
        %613 = vmatpush.xpose.msra.mxu0 0.0
        %614 = vmatpush.xpose.msra.mxu0 0.0
        %615 = vmatpush.xpose.msra.mxu0 0.0
        %616 = vmatpush.xpose.msra.mxu0 0.0
        %617 = vmatpush.xpose.msra.mxu0 0.0
        %618 = vmatpush.xpose.msra.mxu0 0.0
        %619 = vmatpush.xpose.msra.mxu0 0.0
        %620 = vmatpush.xpose.msra.mxu0 0.0
        %621 = vmatpush.xpose.msra.mxu0 0.0
        %622 = vmatpush.xpose.msra.mxu0 0.0
        %623 = vmatpush.xpose.msra.mxu0 0.0
        %624 = vmatpush.xpose.msra.mxu0 0.0
        %625 = vmatpush.xpose.msra.mxu0 0.0
        %626 = vmatpush.xpose.msra.mxu0 0.0
        %627 = vmatpush.xpose.msra.mxu0 0.0
        %628 = vmatpush.xpose.msra.mxu0 %v204
        %629 = vmatmul.f32.gmra.mxu0 %v204
        %v630 = vpop.f32.mrf.mxu0
        %v631 = vadd.f32 %v611, %v630
        %632 = vdwg.mxu0
        %633 = vmatpush.xpose.msra.mxu0 0.0
        %634 = vmatpush.xpose.msra.mxu0 0.0
        %635 = vmatpush.xpose.msra.mxu0 0.0
        %636 = vmatpush.xpose.msra.mxu0 0.0
        %637 = vmatpush.xpose.msra.mxu0 0.0
        %638 = vmatpush.xpose.msra.mxu0 0.0
        %639 = vmatpush.xpose.msra.mxu0 0.0
        %640 = vmatpush.xpose.msra.mxu0 0.0
        %641 = vmatpush.xpose.msra.mxu0 0.0
        %642 = vmatpush.xpose.msra.mxu0 0.0
        %643 = vmatpush.xpose.msra.mxu0 0.0
        %644 = vmatpush.xpose.msra.mxu0 0.0
        %645 = vmatpush.xpose.msra.mxu0 0.0
        %646 = vmatpush.xpose.msra.mxu0 0.0
        %647 = vmatpush.xpose.msra.mxu0 0.0
        %648 = vmatpush.xpose.msra.mxu0 %v205
        %649 = vmatmul.f32.gmra.mxu0 %v205
        %v650 = vpop.f32.mrf.mxu0
        %v651 = vadd.f32 %v631, %v650
        %652 = vdwg.mxu0
        %653 = vmatpush.xpose.msra.mxu0 0.0
        %654 = vmatpush.xpose.msra.mxu0 0.0
        %655 = vmatpush.xpose.msra.mxu0 0.0
        %656 = vmatpush.xpose.msra.mxu0 0.0
        %657 = vmatpush.xpose.msra.mxu0 0.0
        %658 = vmatpush.xpose.msra.mxu0 0.0
        %659 = vmatpush.xpose.msra.mxu0 0.0
        %660 = vmatpush.xpose.msra.mxu0 0.0
        %661 = vmatpush.xpose.msra.mxu0 0.0
        %662 = vmatpush.xpose.msra.mxu0 0.0
        %663 = vmatpush.xpose.msra.mxu0 0.0
        %664 = vmatpush.xpose.msra.mxu0 0.0
        %665 = vmatpush.xpose.msra.mxu0 0.0
        %666 = vmatpush.xpose.msra.mxu0 0.0
        %667 = vmatpush.xpose.msra.mxu0 0.0
        %668 = vmatpush.xpose.msra.mxu0 %v206
        %669 = vmatmul.f32.gmra.mxu0 %v206
        %v670 = vpop.f32.mrf.mxu0
        %v671 = vadd.f32 %v651, %v670
        %672 = vdwg.mxu0
        %673 = vmatpush.xpose.msra.mxu0 0.0
        %674 = vmatpush.xpose.msra.mxu0 0.0
        %675 = vmatpush.xpose.msra.mxu0 0.0
        %676 = vmatpush.xpose.msra.mxu0 0.0
        %677 = vmatpush.xpose.msra.mxu0 0.0
        %678 = vmatpush.xpose.msra.mxu0 0.0
        %679 = vmatpush.xpose.msra.mxu0 0.0
        %680 = vmatpush.xpose.msra.mxu0 0.0
        %681 = vmatpush.xpose.msra.mxu0 0.0
        %682 = vmatpush.xpose.msra.mxu0 0.0
        %683 = vmatpush.xpose.msra.mxu0 0.0
        %684 = vmatpush.xpose.msra.mxu0 0.0
        %685 = vmatpush.xpose.msra.mxu0 0.0
        %686 = vmatpush.xpose.msra.mxu0 0.0
        %687 = vmatpush.xpose.msra.mxu0 0.0
        %688 = vmatpush.xpose.msra.mxu0 %v207
        %689 = vmatmul.f32.gmra.mxu0 %v207
        %v690 = vpop.f32.mrf.mxu0
        %v691 = vadd.f32 %v671, %v690
        %692 = vdwg.mxu0
        %693 = vmatpush.xpose.msra.mxu0 0.0
        %694 = vmatpush.xpose.msra.mxu0 0.0
        %695 = vmatpush.xpose.msra.mxu0 0.0
        %696 = vmatpush.xpose.msra.mxu0 0.0
        %697 = vmatpush.xpose.msra.mxu0 0.0
        %698 = vmatpush.xpose.msra.mxu0 0.0
        %699 = vmatpush.xpose.msra.mxu0 0.0
        %700 = vmatpush.xpose.msra.mxu0 0.0
        %701 = vmatpush.xpose.msra.mxu0 0.0
        %702 = vmatpush.xpose.msra.mxu0 0.0
        %703 = vmatpush.xpose.msra.mxu0 0.0
        %704 = vmatpush.xpose.msra.mxu0 0.0
        %705 = vmatpush.xpose.msra.mxu0 0.0
        %706 = vmatpush.xpose.msra.mxu0 0.0
        %707 = vmatpush.xpose.msra.mxu0 0.0
        %708 = vmatpush.xpose.msra.mxu0 %v208
        %709 = vmatmul.f32.gmra.mxu0 %v208
        %v710 = vpop.f32.mrf.mxu0
        %v711 = vadd.f32 %v691, %v710
        %712 = vdwg.mxu0
        %713 = vmatpush.xpose.msra.mxu0 0.0
        %714 = vmatpush.xpose.msra.mxu0 0.0
        %715 = vmatpush.xpose.msra.mxu0 0.0
        %716 = vmatpush.xpose.msra.mxu0 0.0
        %717 = vmatpush.xpose.msra.mxu0 0.0
        %718 = vmatpush.xpose.msra.mxu0 0.0
        %719 = vmatpush.xpose.msra.mxu0 0.0
        %720 = vmatpush.xpose.msra.mxu0 0.0
        %721 = vmatpush.xpose.msra.mxu0 0.0
        %722 = vmatpush.xpose.msra.mxu0 0.0
        %723 = vmatpush.xpose.msra.mxu0 0.0
        %724 = vmatpush.xpose.msra.mxu0 0.0
        %725 = vmatpush.xpose.msra.mxu0 0.0
        %726 = vmatpush.xpose.msra.mxu0 0.0
        %727 = vmatpush.xpose.msra.mxu0 0.0
        %728 = vmatpush.xpose.msra.mxu0 %v209
        %729 = vmatmul.f32.gmra.mxu0 %v209
        %v730 = vpop.f32.mrf.mxu0
        %v731 = vadd.f32 %v711, %v730
        %732 = vdwg.mxu0
        %733 = vmatpush.xpose.msra.mxu0 0.0
        %734 = vmatpush.xpose.msra.mxu0 0.0
        %735 = vmatpush.xpose.msra.mxu0 0.0
        %736 = vmatpush.xpose.msra.mxu0 0.0
        %737 = vmatpush.xpose.msra.mxu0 0.0
        %738 = vmatpush.xpose.msra.mxu0 0.0
        %739 = vmatpush.xpose.msra.mxu0 0.0
        %740 = vmatpush.xpose.msra.mxu0 0.0
        %741 = vmatpush.xpose.msra.mxu0 0.0
        %742 = vmatpush.xpose.msra.mxu0 0.0
        %743 = vmatpush.xpose.msra.mxu0 0.0
        %744 = vmatpush.xpose.msra.mxu0 0.0
        %745 = vmatpush.xpose.msra.mxu0 0.0
        %746 = vmatpush.xpose.msra.mxu0 0.0
        %747 = vmatpush.xpose.msra.mxu0 0.0
        %748 = vmatpush.xpose.msra.mxu0 %v210
        %749 = vmatmul.f32.gmra.mxu0 %v210
        %v750 = vpop.f32.mrf.mxu0
        %v751 = vadd.f32 %v731, %v750
        %752 = vdwg.mxu0
        %753 = vmatpush.xpose.msra.mxu0 0.0
        %754 = vmatpush.xpose.msra.mxu0 0.0
        %755 = vmatpush.xpose.msra.mxu0 0.0
        %756 = vmatpush.xpose.msra.mxu0 0.0
        %757 = vmatpush.xpose.msra.mxu0 0.0
        %758 = vmatpush.xpose.msra.mxu0 0.0
        %759 = vmatpush.xpose.msra.mxu0 0.0
        %760 = vmatpush.xpose.msra.mxu0 0.0
        %761 = vmatpush.xpose.msra.mxu0 0.0
        %762 = vmatpush.xpose.msra.mxu0 0.0
        %763 = vmatpush.xpose.msra.mxu0 0.0
        %764 = vmatpush.xpose.msra.mxu0 0.0
        %765 = vmatpush.xpose.msra.mxu0 0.0
        %766 = vmatpush.xpose.msra.mxu0 0.0
        %767 = vmatpush.xpose.msra.mxu0 0.0
        %768 = vmatpush.xpose.msra.mxu0 %v211
        %769 = vmatmul.f32.gmra.mxu0 %v211
        %v770 = vpop.f32.mrf.mxu0
        %v771 = vadd.f32 %v751, %v770
        %772 = vdwg.mxu0
        %773 = vmatpush.xpose.msra.mxu0 0.0
        %774 = vmatpush.xpose.msra.mxu0 0.0
        %775 = vmatpush.xpose.msra.mxu0 0.0
        %776 = vmatpush.xpose.msra.mxu0 0.0
        %777 = vmatpush.xpose.msra.mxu0 0.0
        %778 = vmatpush.xpose.msra.mxu0 0.0
        %779 = vmatpush.xpose.msra.mxu0 0.0
        %780 = vmatpush.xpose.msra.mxu0 0.0
        %781 = vmatpush.xpose.msra.mxu0 0.0
        %782 = vmatpush.xpose.msra.mxu0 0.0
        %783 = vmatpush.xpose.msra.mxu0 0.0
        %784 = vmatpush.xpose.msra.mxu0 0.0
        %785 = vmatpush.xpose.msra.mxu0 0.0
        %786 = vmatpush.xpose.msra.mxu0 0.0
        %787 = vmatpush.xpose.msra.mxu0 0.0
        %788 = vmatpush.xpose.msra.mxu0 %v212
        %789 = vmatmul.f32.gmra.mxu0 %v212
        %v790 = vpop.f32.mrf.mxu0
        %v791 = vadd.f32 %v771, %v790
        %792 = vdwg.mxu0
        %793 = vmatpush.xpose.msra.mxu0 0.0
        %794 = vmatpush.xpose.msra.mxu0 0.0
        %795 = vmatpush.xpose.msra.mxu0 0.0
        %796 = vmatpush.xpose.msra.mxu0 0.0
        %797 = vmatpush.xpose.msra.mxu0 0.0
        %798 = vmatpush.xpose.msra.mxu0 0.0
        %799 = vmatpush.xpose.msra.mxu0 0.0
        %800 = vmatpush.xpose.msra.mxu0 0.0
        %801 = vmatpush.xpose.msra.mxu0 0.0
        %802 = vmatpush.xpose.msra.mxu0 0.0
        %803 = vmatpush.xpose.msra.mxu0 0.0
        %804 = vmatpush.xpose.msra.mxu0 0.0
        %805 = vmatpush.xpose.msra.mxu0 0.0
        %806 = vmatpush.xpose.msra.mxu0 0.0
        %807 = vmatpush.xpose.msra.mxu0 0.0
        %808 = vmatpush.xpose.msra.mxu0 %v213
        %809 = vmatmul.f32.gmra.mxu0 %v213
        %v810 = vpop.f32.mrf.mxu0
        %v811 = vadd.f32 %v791, %v810
        %812 = vdwg.mxu0
        %813 = vmatpush.xpose.msra.mxu0 0.0
        %814 = vmatpush.xpose.msra.mxu0 0.0
        %815 = vmatpush.xpose.msra.mxu0 0.0
        %816 = vmatpush.xpose.msra.mxu0 0.0
        %817 = vmatpush.xpose.msra.mxu0 0.0
        %818 = vmatpush.xpose.msra.mxu0 0.0
        %819 = vmatpush.xpose.msra.mxu0 0.0
        %820 = vmatpush.xpose.msra.mxu0 0.0
        %821 = vmatpush.xpose.msra.mxu0 0.0
        %822 = vmatpush.xpose.msra.mxu0 0.0
        %823 = vmatpush.xpose.msra.mxu0 0.0
        %824 = vmatpush.xpose.msra.mxu0 0.0
        %825 = vmatpush.xpose.msra.mxu0 0.0
        %826 = vmatpush.xpose.msra.mxu0 0.0
        %827 = vmatpush.xpose.msra.mxu0 0.0
        %828 = vmatpush.xpose.msra.mxu0 %v214
        %829 = vmatmul.f32.gmra.mxu0 %v214
        %v830 = vpop.f32.mrf.mxu0
        %v831 = vadd.f32 %v811, %v830
        %832 = vdwg.mxu0
        %833 = vmatpush.xpose.msra.mxu0 0.0
        %834 = vmatpush.xpose.msra.mxu0 0.0
        %835 = vmatpush.xpose.msra.mxu0 0.0
        %836 = vmatpush.xpose.msra.mxu0 0.0
        %837 = vmatpush.xpose.msra.mxu0 0.0
        %838 = vmatpush.xpose.msra.mxu0 0.0
        %839 = vmatpush.xpose.msra.mxu0 0.0
        %840 = vmatpush.xpose.msra.mxu0 0.0
        %841 = vmatpush.xpose.msra.mxu0 0.0
        %842 = vmatpush.xpose.msra.mxu0 0.0
        %843 = vmatpush.xpose.msra.mxu0 0.0
        %844 = vmatpush.xpose.msra.mxu0 0.0
        %845 = vmatpush.xpose.msra.mxu0 0.0
        %846 = vmatpush.xpose.msra.mxu0 0.0
        %847 = vmatpush.xpose.msra.mxu0 0.0
        %848 = vmatpush.xpose.msra.mxu0 %v215
        %849 = vmatmul.f32.gmra.mxu0 %v215
        %v850 = vpop.f32.mrf.mxu0
        %v851 = vadd.f32 %v831, %v850
        %852 = vdwg.mxu0
        %853 = vmatpush.xpose.msra.mxu0 0.0
        %854 = vmatpush.xpose.msra.mxu0 0.0
        %855 = vmatpush.xpose.msra.mxu0 0.0
        %856 = vmatpush.xpose.msra.mxu0 0.0
        %857 = vmatpush.xpose.msra.mxu0 0.0
        %858 = vmatpush.xpose.msra.mxu0 0.0
        %859 = vmatpush.xpose.msra.mxu0 0.0
        %860 = vmatpush.xpose.msra.mxu0 0.0
        %861 = vmatpush.xpose.msra.mxu0 0.0
        %862 = vmatpush.xpose.msra.mxu0 0.0
        %863 = vmatpush.xpose.msra.mxu0 0.0
        %864 = vmatpush.xpose.msra.mxu0 0.0
        %865 = vmatpush.xpose.msra.mxu0 0.0
        %866 = vmatpush.xpose.msra.mxu0 0.0
        %867 = vmatpush.xpose.msra.mxu0 0.0
        %868 = vmatpush.xpose.msra.mxu0 %v216
        %869 = vmatmul.f32.gmra.mxu0 %v216
        %v870 = vpop.f32.mrf.mxu0
        %v871 = vadd.f32 %v851, %v870
        %872 = vdwg.mxu0
        %873 = vmatpush.xpose.msra.mxu0 0.0
        %874 = vmatpush.xpose.msra.mxu0 0.0
        %875 = vmatpush.xpose.msra.mxu0 0.0
        %876 = vmatpush.xpose.msra.mxu0 0.0
        %877 = vmatpush.xpose.msra.mxu0 0.0
        %878 = vmatpush.xpose.msra.mxu0 0.0
        %879 = vmatpush.xpose.msra.mxu0 0.0
        %880 = vmatpush.xpose.msra.mxu0 0.0
        %881 = vmatpush.xpose.msra.mxu0 0.0
        %882 = vmatpush.xpose.msra.mxu0 0.0
        %883 = vmatpush.xpose.msra.mxu0 0.0
        %884 = vmatpush.xpose.msra.mxu0 0.0
        %885 = vmatpush.xpose.msra.mxu0 0.0
        %886 = vmatpush.xpose.msra.mxu0 0.0
        %887 = vmatpush.xpose.msra.mxu0 0.0
        %888 = vmatpush.xpose.msra.mxu0 %v217
        %889 = vmatmul.f32.gmra.mxu0 %v217
        %v890 = vpop.f32.mrf.mxu0
        %v891 = vadd.f32 %v871, %v890
        %892 = vdwg.mxu0
        %893 = vmatpush.xpose.msra.mxu0 0.0
        %894 = vmatpush.xpose.msra.mxu0 0.0
        %895 = vmatpush.xpose.msra.mxu0 0.0
        %896 = vmatpush.xpose.msra.mxu0 0.0
        %897 = vmatpush.xpose.msra.mxu0 0.0
        %898 = vmatpush.xpose.msra.mxu0 0.0
        %899 = vmatpush.xpose.msra.mxu0 0.0
        %900 = vmatpush.xpose.msra.mxu0 0.0
        %901 = vmatpush.xpose.msra.mxu0 0.0
        %902 = vmatpush.xpose.msra.mxu0 0.0
        %903 = vmatpush.xpose.msra.mxu0 0.0
        %904 = vmatpush.xpose.msra.mxu0 0.0
        %905 = vmatpush.xpose.msra.mxu0 0.0
        %906 = vmatpush.xpose.msra.mxu0 0.0
        %907 = vmatpush.xpose.msra.mxu0 0.0
        %908 = vmatpush.xpose.msra.mxu0 %v218
        %909 = vmatmul.f32.gmra.mxu0 %v218
        %v910 = vpop.f32.mrf.mxu0
        %v911 = vadd.f32 %v891, %v910
        %912 = vdwg.mxu0
        %913 = vmatpush.xpose.msra.mxu0 0.0
        %914 = vmatpush.xpose.msra.mxu0 0.0
        %915 = vmatpush.xpose.msra.mxu0 0.0
        %916 = vmatpush.xpose.msra.mxu0 0.0
        %917 = vmatpush.xpose.msra.mxu0 0.0
        %918 = vmatpush.xpose.msra.mxu0 0.0
        %919 = vmatpush.xpose.msra.mxu0 0.0
        %920 = vmatpush.xpose.msra.mxu0 0.0
        %921 = vmatpush.xpose.msra.mxu0 0.0
        %922 = vmatpush.xpose.msra.mxu0 0.0
        %923 = vmatpush.xpose.msra.mxu0 0.0
        %924 = vmatpush.xpose.msra.mxu0 0.0
        %925 = vmatpush.xpose.msra.mxu0 0.0
        %926 = vmatpush.xpose.msra.mxu0 0.0
        %927 = vmatpush.xpose.msra.mxu0 0.0
        %928 = vmatpush.xpose.msra.mxu0 %v219
        %929 = vmatmul.f32.gmra.mxu0 %v219
        %v930 = vpop.f32.mrf.mxu0
        %v931 = vadd.f32 %v911, %v930
        %932 = vdwg.mxu0
        %933 = vmatpush.xpose.msra.mxu0 0.0
        %934 = vmatpush.xpose.msra.mxu0 0.0
        %935 = vmatpush.xpose.msra.mxu0 0.0
        %936 = vmatpush.xpose.msra.mxu0 0.0
        %937 = vmatpush.xpose.msra.mxu0 0.0
        %938 = vmatpush.xpose.msra.mxu0 0.0
        %939 = vmatpush.xpose.msra.mxu0 0.0
        %940 = vmatpush.xpose.msra.mxu0 0.0
        %941 = vmatpush.xpose.msra.mxu0 0.0
        %942 = vmatpush.xpose.msra.mxu0 0.0
        %943 = vmatpush.xpose.msra.mxu0 0.0
        %944 = vmatpush.xpose.msra.mxu0 0.0
        %945 = vmatpush.xpose.msra.mxu0 0.0
        %946 = vmatpush.xpose.msra.mxu0 0.0
        %947 = vmatpush.xpose.msra.mxu0 0.0
        %948 = vmatpush.xpose.msra.mxu0 %v220
        %949 = vmatmul.f32.gmra.mxu0 %v220
        %v950 = vpop.f32.mrf.mxu0
        %v951 = vadd.f32 %v931, %v950
        %952 = vdwg.mxu0
        %953 = vmatpush.xpose.msra.mxu0 0.0
        %954 = vmatpush.xpose.msra.mxu0 0.0
        %955 = vmatpush.xpose.msra.mxu0 0.0
        %956 = vmatpush.xpose.msra.mxu0 0.0
        %957 = vmatpush.xpose.msra.mxu0 0.0
        %958 = vmatpush.xpose.msra.mxu0 0.0
        %959 = vmatpush.xpose.msra.mxu0 0.0
        %960 = vmatpush.xpose.msra.mxu0 0.0
        %961 = vmatpush.xpose.msra.mxu0 0.0
        %962 = vmatpush.xpose.msra.mxu0 0.0
        %963 = vmatpush.xpose.msra.mxu0 0.0
        %964 = vmatpush.xpose.msra.mxu0 0.0
        %965 = vmatpush.xpose.msra.mxu0 0.0
        %966 = vmatpush.xpose.msra.mxu0 0.0
        %967 = vmatpush.xpose.msra.mxu0 0.0
        %968 = vmatpush.xpose.msra.mxu0 %v221
        %969 = vmatmul.f32.gmra.mxu0 %v221
        %v970 = vpop.f32.mrf.mxu0
        %v971 = vadd.f32 %v951, %v970
        %972 = vdwg.mxu0
        %973 = vmatpush.xpose.msra.mxu0 0.0
        %974 = vmatpush.xpose.msra.mxu0 0.0
        %975 = vmatpush.xpose.msra.mxu0 0.0
        %976 = vmatpush.xpose.msra.mxu0 0.0
        %977 = vmatpush.xpose.msra.mxu0 0.0
        %978 = vmatpush.xpose.msra.mxu0 0.0
        %979 = vmatpush.xpose.msra.mxu0 0.0
        %980 = vmatpush.xpose.msra.mxu0 0.0
        %981 = vmatpush.xpose.msra.mxu0 0.0
        %982 = vmatpush.xpose.msra.mxu0 0.0
        %983 = vmatpush.xpose.msra.mxu0 0.0
        %984 = vmatpush.xpose.msra.mxu0 0.0
        %985 = vmatpush.xpose.msra.mxu0 0.0
        %986 = vmatpush.xpose.msra.mxu0 0.0
        %987 = vmatpush.xpose.msra.mxu0 0.0
        %988 = vmatpush.xpose.msra.mxu0 %v222
        %989 = vmatmul.f32.gmra.mxu0 %v222
        %v990 = vpop.f32.mrf.mxu0
        %v991 = vadd.f32 %v971, %v990
        %992 = vdwg.mxu0
        %993 = vmatpush.xpose.msra.mxu0 0.0
        %994 = vmatpush.xpose.msra.mxu0 0.0
        %995 = vmatpush.xpose.msra.mxu0 0.0
        %996 = vmatpush.xpose.msra.mxu0 0.0
        %997 = vmatpush.xpose.msra.mxu0 0.0
        %998 = vmatpush.xpose.msra.mxu0 0.0
        %999 = vmatpush.xpose.msra.mxu0 0.0
        %1000 = vmatpush.xpose.msra.mxu0 0.0
        %1001 = vmatpush.xpose.msra.mxu0 0.0
        %1002 = vmatpush.xpose.msra.mxu0 0.0
        %1003 = vmatpush.xpose.msra.mxu0 0.0
        %1004 = vmatpush.xpose.msra.mxu0 0.0
        %1005 = vmatpush.xpose.msra.mxu0 0.0
        %1006 = vmatpush.xpose.msra.mxu0 0.0
        %1007 = vmatpush.xpose.msra.mxu0 0.0
        %1008 = vmatpush.xpose.msra.mxu0 %v223
        %1009 = vmatmul.f32.gmra.mxu0 %v223
        %v1010 = vpop.f32.mrf.mxu0
        %v1011 = vadd.f32 %v991, %v1010
        %1012 = vdwg.mxu0
        %1013 = vmatpush.xpose.msra.mxu0 0.0
        %1014 = vmatpush.xpose.msra.mxu0 0.0
        %1015 = vmatpush.xpose.msra.mxu0 0.0
        %1016 = vmatpush.xpose.msra.mxu0 0.0
        %1017 = vmatpush.xpose.msra.mxu0 0.0
        %1018 = vmatpush.xpose.msra.mxu0 0.0
        %1019 = vmatpush.xpose.msra.mxu0 0.0
        %1020 = vmatpush.xpose.msra.mxu0 0.0
        %1021 = vmatpush.xpose.msra.mxu0 0.0
        %1022 = vmatpush.xpose.msra.mxu0 0.0
        %1023 = vmatpush.xpose.msra.mxu0 0.0
        %1024 = vmatpush.xpose.msra.mxu0 0.0
        %1025 = vmatpush.xpose.msra.mxu0 0.0
        %1026 = vmatpush.xpose.msra.mxu0 0.0
        %1027 = vmatpush.xpose.msra.mxu0 0.0
        %1028 = vmatpush.xpose.msra.mxu0 %v224
        %1029 = vmatmul.f32.gmra.mxu0 %v224
        %v1030 = vpop.f32.mrf.mxu0
        %v1031 = vadd.f32 %v1011, %v1030
        %1032 = vdwg.mxu0
        %1033 = vmatpush.xpose.msra.mxu0 0.0
        %1034 = vmatpush.xpose.msra.mxu0 0.0
        %1035 = vmatpush.xpose.msra.mxu0 0.0
        %1036 = vmatpush.xpose.msra.mxu0 0.0
        %1037 = vmatpush.xpose.msra.mxu0 0.0
        %1038 = vmatpush.xpose.msra.mxu0 0.0
        %1039 = vmatpush.xpose.msra.mxu0 0.0
        %1040 = vmatpush.xpose.msra.mxu0 0.0
        %1041 = vmatpush.xpose.msra.mxu0 0.0
        %1042 = vmatpush.xpose.msra.mxu0 0.0
        %1043 = vmatpush.xpose.msra.mxu0 0.0
        %1044 = vmatpush.xpose.msra.mxu0 0.0
        %1045 = vmatpush.xpose.msra.mxu0 0.0
        %1046 = vmatpush.xpose.msra.mxu0 0.0
        %1047 = vmatpush.xpose.msra.mxu0 0.0
        %1048 = vmatpush.xpose.msra.mxu0 %v225
        %1049 = vmatmul.f32.gmra.mxu0 %v225
        %v1050 = vpop.f32.mrf.mxu0
        %v1051 = vadd.f32 %v1031, %v1050
        %1052 = vdwg.mxu0
        %1053 = vmatpush.xpose.msra.mxu0 0.0
        %1054 = vmatpush.xpose.msra.mxu0 0.0
        %1055 = vmatpush.xpose.msra.mxu0 0.0
        %1056 = vmatpush.xpose.msra.mxu0 0.0
        %1057 = vmatpush.xpose.msra.mxu0 0.0
        %1058 = vmatpush.xpose.msra.mxu0 0.0
        %1059 = vmatpush.xpose.msra.mxu0 0.0
        %1060 = vmatpush.xpose.msra.mxu0 0.0
        %1061 = vmatpush.xpose.msra.mxu0 0.0
        %1062 = vmatpush.xpose.msra.mxu0 0.0
        %1063 = vmatpush.xpose.msra.mxu0 0.0
        %1064 = vmatpush.xpose.msra.mxu0 0.0
        %1065 = vmatpush.xpose.msra.mxu0 0.0
        %1066 = vmatpush.xpose.msra.mxu0 0.0
        %1067 = vmatpush.xpose.msra.mxu0 0.0
        %1068 = vmatpush.xpose.msra.mxu0 %v226
        %1069 = vmatmul.f32.gmra.mxu0 %v226
        %v1070 = vpop.f32.mrf.mxu0
        %v1071 = vadd.f32 %v1051, %v1070
        %1072 = vdwg.mxu0
        %1073 = vmatpush.xpose.msra.mxu0 0.0
        %1074 = vmatpush.xpose.msra.mxu0 0.0
        %1075 = vmatpush.xpose.msra.mxu0 0.0
        %1076 = vmatpush.xpose.msra.mxu0 0.0
        %1077 = vmatpush.xpose.msra.mxu0 0.0
        %1078 = vmatpush.xpose.msra.mxu0 0.0
        %1079 = vmatpush.xpose.msra.mxu0 0.0
        %1080 = vmatpush.xpose.msra.mxu0 0.0
        %1081 = vmatpush.xpose.msra.mxu0 0.0
        %1082 = vmatpush.xpose.msra.mxu0 0.0
        %1083 = vmatpush.xpose.msra.mxu0 0.0
        %1084 = vmatpush.xpose.msra.mxu0 0.0
        %1085 = vmatpush.xpose.msra.mxu0 0.0
        %1086 = vmatpush.xpose.msra.mxu0 0.0
        %1087 = vmatpush.xpose.msra.mxu0 0.0
        %1088 = vmatpush.xpose.msra.mxu0 %v227
        %1089 = vmatmul.f32.gmra.mxu0 %v227
        %v1090 = vpop.f32.mrf.mxu0
        %v1091 = vadd.f32 %v1071, %v1090
        %1092 = vdwg.mxu0
        %1093 = vmatpush.xpose.msra.mxu0 0.0
        %1094 = vmatpush.xpose.msra.mxu0 0.0
        %1095 = vmatpush.xpose.msra.mxu0 0.0
        %1096 = vmatpush.xpose.msra.mxu0 0.0
        %1097 = vmatpush.xpose.msra.mxu0 0.0
        %1098 = vmatpush.xpose.msra.mxu0 0.0
        %1099 = vmatpush.xpose.msra.mxu0 0.0
        %1100 = vmatpush.xpose.msra.mxu0 0.0
        %1101 = vmatpush.xpose.msra.mxu0 0.0
        %1102 = vmatpush.xpose.msra.mxu0 0.0
        %1103 = vmatpush.xpose.msra.mxu0 0.0
        %1104 = vmatpush.xpose.msra.mxu0 0.0
        %1105 = vmatpush.xpose.msra.mxu0 0.0
        %1106 = vmatpush.xpose.msra.mxu0 0.0
        %1107 = vmatpush.xpose.msra.mxu0 0.0
        %1108 = vmatpush.xpose.msra.mxu0 %v228
        %1109 = vmatmul.f32.gmra.mxu0 %v228
        %v1110 = vpop.f32.mrf.mxu0
        %v1111 = vadd.f32 %v1091, %v1110
        %1112 = vdwg.mxu0
        %1113 = vmatpush.xpose.msra.mxu0 0.0
        %1114 = vmatpush.xpose.msra.mxu0 0.0
        %1115 = vmatpush.xpose.msra.mxu0 0.0
        %1116 = vmatpush.xpose.msra.mxu0 0.0
        %1117 = vmatpush.xpose.msra.mxu0 0.0
        %1118 = vmatpush.xpose.msra.mxu0 0.0
        %1119 = vmatpush.xpose.msra.mxu0 0.0
        %1120 = vmatpush.xpose.msra.mxu0 0.0
        %1121 = vmatpush.xpose.msra.mxu0 0.0
        %1122 = vmatpush.xpose.msra.mxu0 0.0
        %1123 = vmatpush.xpose.msra.mxu0 0.0
        %1124 = vmatpush.xpose.msra.mxu0 0.0
        %1125 = vmatpush.xpose.msra.mxu0 0.0
        %1126 = vmatpush.xpose.msra.mxu0 0.0
        %1127 = vmatpush.xpose.msra.mxu0 0.0
        %1128 = vmatpush.xpose.msra.mxu0 %v229
        %1129 = vmatmul.f32.gmra.mxu0 %v229
        %v1130 = vpop.f32.mrf.mxu0
        %v1131 = vadd.f32 %v1111, %v1130
        %1132 = vdwg.mxu0
        %1133 = vmatpush.xpose.msra.mxu0 0.0
        %1134 = vmatpush.xpose.msra.mxu0 0.0
        %1135 = vmatpush.xpose.msra.mxu0 0.0
        %1136 = vmatpush.xpose.msra.mxu0 0.0
        %1137 = vmatpush.xpose.msra.mxu0 0.0
        %1138 = vmatpush.xpose.msra.mxu0 0.0
        %1139 = vmatpush.xpose.msra.mxu0 0.0
        %1140 = vmatpush.xpose.msra.mxu0 0.0
        %1141 = vmatpush.xpose.msra.mxu0 0.0
        %1142 = vmatpush.xpose.msra.mxu0 0.0
        %1143 = vmatpush.xpose.msra.mxu0 0.0
        %1144 = vmatpush.xpose.msra.mxu0 0.0
        %1145 = vmatpush.xpose.msra.mxu0 0.0
        %1146 = vmatpush.xpose.msra.mxu0 0.0
        %1147 = vmatpush.xpose.msra.mxu0 0.0
        %1148 = vmatpush.xpose.msra.mxu0 %v230
        %1149 = vmatmul.f32.gmra.mxu0 %v230
        %v1150 = vpop.f32.mrf.mxu0
        %v1151 = vadd.f32 %v1131, %v1150
        %1152 = vdwg.mxu0
        %1153 = vmatpush.xpose.msra.mxu0 0.0
        %1154 = vmatpush.xpose.msra.mxu0 0.0
        %1155 = vmatpush.xpose.msra.mxu0 0.0
        %1156 = vmatpush.xpose.msra.mxu0 0.0
        %1157 = vmatpush.xpose.msra.mxu0 0.0
        %1158 = vmatpush.xpose.msra.mxu0 0.0
        %1159 = vmatpush.xpose.msra.mxu0 0.0
        %1160 = vmatpush.xpose.msra.mxu0 0.0
        %1161 = vmatpush.xpose.msra.mxu0 0.0
        %1162 = vmatpush.xpose.msra.mxu0 0.0
        %1163 = vmatpush.xpose.msra.mxu0 0.0
        %1164 = vmatpush.xpose.msra.mxu0 0.0
        %1165 = vmatpush.xpose.msra.mxu0 0.0
        %1166 = vmatpush.xpose.msra.mxu0 0.0
        %1167 = vmatpush.xpose.msra.mxu0 0.0
        %1168 = vmatpush.xpose.msra.mxu0 %v231
        %1169 = vmatmul.f32.gmra.mxu0 %v231
        %v1170 = vpop.f32.mrf.mxu0
        %v1171 = vadd.f32 %v1151, %v1170
        %1172 = vdwg.mxu0
        %1173 = vmatpush.xpose.msra.mxu0 0.0
        %1174 = vmatpush.xpose.msra.mxu0 0.0
        %1175 = vmatpush.xpose.msra.mxu0 0.0
        %1176 = vmatpush.xpose.msra.mxu0 0.0
        %1177 = vmatpush.xpose.msra.mxu0 0.0
        %1178 = vmatpush.xpose.msra.mxu0 0.0
        %1179 = vmatpush.xpose.msra.mxu0 0.0
        %1180 = vmatpush.xpose.msra.mxu0 0.0
        %1181 = vmatpush.xpose.msra.mxu0 0.0
        %1182 = vmatpush.xpose.msra.mxu0 0.0
        %1183 = vmatpush.xpose.msra.mxu0 0.0
        %1184 = vmatpush.xpose.msra.mxu0 0.0
        %1185 = vmatpush.xpose.msra.mxu0 0.0
        %1186 = vmatpush.xpose.msra.mxu0 0.0
        %1187 = vmatpush.xpose.msra.mxu0 0.0
        %1188 = vmatpush.xpose.msra.mxu0 %v232
        %1189 = vmatmul.f32.gmra.mxu0 %v232
        %v1190 = vpop.f32.mrf.mxu0
        %v1191 = vadd.f32 %v1171, %v1190
        %1192 = vdwg.mxu0
        %1193 = vmatpush.xpose.msra.mxu0 0.0
        %1194 = vmatpush.xpose.msra.mxu0 0.0
        %1195 = vmatpush.xpose.msra.mxu0 0.0
        %1196 = vmatpush.xpose.msra.mxu0 0.0
        %1197 = vmatpush.xpose.msra.mxu0 0.0
        %1198 = vmatpush.xpose.msra.mxu0 0.0
        %1199 = vmatpush.xpose.msra.mxu0 0.0
        %1200 = vmatpush.xpose.msra.mxu0 0.0
        %1201 = vmatpush.xpose.msra.mxu0 0.0
        %1202 = vmatpush.xpose.msra.mxu0 0.0
        %1203 = vmatpush.xpose.msra.mxu0 0.0
        %1204 = vmatpush.xpose.msra.mxu0 0.0
        %1205 = vmatpush.xpose.msra.mxu0 0.0
        %1206 = vmatpush.xpose.msra.mxu0 0.0
        %1207 = vmatpush.xpose.msra.mxu0 0.0
        %1208 = vmatpush.xpose.msra.mxu0 %v233
        %1209 = vmatmul.f32.gmra.mxu0 %v233
        %v1210 = vpop.f32.mrf.mxu0
        %v1211 = vadd.f32 %v1191, %v1210
        %1212 = vdwg.mxu0
        %1213 = vmatpush.xpose.msra.mxu0 0.0
        %1214 = vmatpush.xpose.msra.mxu0 0.0
        %1215 = vmatpush.xpose.msra.mxu0 0.0
        %1216 = vmatpush.xpose.msra.mxu0 0.0
        %1217 = vmatpush.xpose.msra.mxu0 0.0
        %1218 = vmatpush.xpose.msra.mxu0 0.0
        %1219 = vmatpush.xpose.msra.mxu0 0.0
        %1220 = vmatpush.xpose.msra.mxu0 0.0
        %1221 = vmatpush.xpose.msra.mxu0 0.0
        %1222 = vmatpush.xpose.msra.mxu0 0.0
        %1223 = vmatpush.xpose.msra.mxu0 0.0
        %1224 = vmatpush.xpose.msra.mxu0 0.0
        %1225 = vmatpush.xpose.msra.mxu0 0.0
        %1226 = vmatpush.xpose.msra.mxu0 0.0
        %1227 = vmatpush.xpose.msra.mxu0 0.0
        %1228 = vmatpush.xpose.msra.mxu0 %v234
        %1229 = vmatmul.f32.gmra.mxu0 %v234
        %v1230 = vpop.f32.mrf.mxu0
        %v1231 = vadd.f32 %v1211, %v1230
        %1232 = vdwg.mxu0
        %1233 = vmatpush.xpose.msra.mxu0 0.0
        %1234 = vmatpush.xpose.msra.mxu0 0.0
        %1235 = vmatpush.xpose.msra.mxu0 0.0
        %1236 = vmatpush.xpose.msra.mxu0 0.0
        %1237 = vmatpush.xpose.msra.mxu0 0.0
        %1238 = vmatpush.xpose.msra.mxu0 0.0
        %1239 = vmatpush.xpose.msra.mxu0 0.0
        %1240 = vmatpush.xpose.msra.mxu0 0.0
        %1241 = vmatpush.xpose.msra.mxu0 0.0
        %1242 = vmatpush.xpose.msra.mxu0 0.0
        %1243 = vmatpush.xpose.msra.mxu0 0.0
        %1244 = vmatpush.xpose.msra.mxu0 0.0
        %1245 = vmatpush.xpose.msra.mxu0 0.0
        %1246 = vmatpush.xpose.msra.mxu0 0.0
        %1247 = vmatpush.xpose.msra.mxu0 0.0
        %1248 = vmatpush.xpose.msra.mxu0 %v235
        %1249 = vmatmul.f32.gmra.mxu0 %v235
        %v1250 = vpop.f32.mrf.mxu0
        %v1251 = vadd.f32 %v1231, %v1250
        %1252 = vdwg.mxu0
        %1253 = vmatpush.xpose.msra.mxu0 0.0
        %1254 = vmatpush.xpose.msra.mxu0 0.0
        %1255 = vmatpush.xpose.msra.mxu0 0.0
        %1256 = vmatpush.xpose.msra.mxu0 0.0
        %1257 = vmatpush.xpose.msra.mxu0 0.0
        %1258 = vmatpush.xpose.msra.mxu0 0.0
        %1259 = vmatpush.xpose.msra.mxu0 0.0
        %1260 = vmatpush.xpose.msra.mxu0 0.0
        %1261 = vmatpush.xpose.msra.mxu0 0.0
        %1262 = vmatpush.xpose.msra.mxu0 0.0
        %1263 = vmatpush.xpose.msra.mxu0 0.0
        %1264 = vmatpush.xpose.msra.mxu0 0.0
        %1265 = vmatpush.xpose.msra.mxu0 0.0
        %1266 = vmatpush.xpose.msra.mxu0 0.0
        %1267 = vmatpush.xpose.msra.mxu0 0.0
        %1268 = vmatpush.xpose.msra.mxu0 %v236
        %1269 = vmatmul.f32.gmra.mxu0 %v236
        %v1270 = vpop.f32.mrf.mxu0
        %v1271 = vadd.f32 %v1251, %v1270
        %1272 = vdwg.mxu0
        %1273 = vmatpush.xpose.msra.mxu0 0.0
        %1274 = vmatpush.xpose.msra.mxu0 0.0
        %1275 = vmatpush.xpose.msra.mxu0 0.0
        %1276 = vmatpush.xpose.msra.mxu0 0.0
        %1277 = vmatpush.xpose.msra.mxu0 0.0
        %1278 = vmatpush.xpose.msra.mxu0 0.0
        %1279 = vmatpush.xpose.msra.mxu0 0.0
        %1280 = vmatpush.xpose.msra.mxu0 0.0
        %1281 = vmatpush.xpose.msra.mxu0 0.0
        %1282 = vmatpush.xpose.msra.mxu0 0.0
        %1283 = vmatpush.xpose.msra.mxu0 0.0
        %1284 = vmatpush.xpose.msra.mxu0 0.0
        %1285 = vmatpush.xpose.msra.mxu0 0.0
        %1286 = vmatpush.xpose.msra.mxu0 0.0
        %1287 = vmatpush.xpose.msra.mxu0 0.0
        %1288 = vmatpush.xpose.msra.mxu0 %v237
        %1289 = vmatmul.f32.gmra.mxu0 %v237
        %v1290 = vpop.f32.mrf.mxu0
        %v1291 = vadd.f32 %v1271, %v1290
        %1292 = vdwg.mxu0
        %1293 = vmatpush.xpose.msra.mxu0 0.0
        %1294 = vmatpush.xpose.msra.mxu0 0.0
        %1295 = vmatpush.xpose.msra.mxu0 0.0
        %1296 = vmatpush.xpose.msra.mxu0 0.0
        %1297 = vmatpush.xpose.msra.mxu0 0.0
        %1298 = vmatpush.xpose.msra.mxu0 0.0
        %1299 = vmatpush.xpose.msra.mxu0 0.0
        %1300 = vmatpush.xpose.msra.mxu0 0.0
        %1301 = vmatpush.xpose.msra.mxu0 0.0
        %1302 = vmatpush.xpose.msra.mxu0 0.0
        %1303 = vmatpush.xpose.msra.mxu0 0.0
        %1304 = vmatpush.xpose.msra.mxu0 0.0
        %1305 = vmatpush.xpose.msra.mxu0 0.0
        %1306 = vmatpush.xpose.msra.mxu0 0.0
        %1307 = vmatpush.xpose.msra.mxu0 0.0
        %1308 = vmatpush.xpose.msra.mxu0 %v238
        %1309 = vmatmul.f32.gmra.mxu0 %v238
        %v1310 = vpop.f32.mrf.mxu0
        %v1311 = vadd.f32 %v1291, %v1310
        %1312 = vdwg.mxu0
        %1313 = vmatpush.xpose.msra.mxu0 0.0
        %1314 = vmatpush.xpose.msra.mxu0 0.0
        %1315 = vmatpush.xpose.msra.mxu0 0.0
        %1316 = vmatpush.xpose.msra.mxu0 0.0
        %1317 = vmatpush.xpose.msra.mxu0 0.0
        %1318 = vmatpush.xpose.msra.mxu0 0.0
        %1319 = vmatpush.xpose.msra.mxu0 0.0
        %1320 = vmatpush.xpose.msra.mxu0 0.0
        %1321 = vmatpush.xpose.msra.mxu0 0.0
        %1322 = vmatpush.xpose.msra.mxu0 0.0
        %1323 = vmatpush.xpose.msra.mxu0 0.0
        %1324 = vmatpush.xpose.msra.mxu0 0.0
        %1325 = vmatpush.xpose.msra.mxu0 0.0
        %1326 = vmatpush.xpose.msra.mxu0 0.0
        %1327 = vmatpush.xpose.msra.mxu0 0.0
        %1328 = vmatpush.xpose.msra.mxu0 %v239
        %1329 = vmatmul.f32.gmra.mxu0 %v239
        %v1330 = vpop.f32.mrf.mxu0
        %v1331 = vadd.f32 %v1311, %v1330
        %1332 = vdwg.mxu0
        %1333 = vmatpush.xpose.msra.mxu0 0.0
        %1334 = vmatpush.xpose.msra.mxu0 0.0
        %1335 = vmatpush.xpose.msra.mxu0 0.0
        %1336 = vmatpush.xpose.msra.mxu0 0.0
        %1337 = vmatpush.xpose.msra.mxu0 0.0
        %1338 = vmatpush.xpose.msra.mxu0 0.0
        %1339 = vmatpush.xpose.msra.mxu0 0.0
        %1340 = vmatpush.xpose.msra.mxu0 0.0
        %1341 = vmatpush.xpose.msra.mxu0 0.0
        %1342 = vmatpush.xpose.msra.mxu0 0.0
        %1343 = vmatpush.xpose.msra.mxu0 0.0
        %1344 = vmatpush.xpose.msra.mxu0 0.0
        %1345 = vmatpush.xpose.msra.mxu0 0.0
        %1346 = vmatpush.xpose.msra.mxu0 0.0
        %1347 = vmatpush.xpose.msra.mxu0 0.0
        %1348 = vmatpush.xpose.msra.mxu0 %v240
        %1349 = vmatmul.f32.gmra.mxu0 %v240
        %v1350 = vpop.f32.mrf.mxu0
        %v1351 = vadd.f32 %v1331, %v1350
        %1352 = vdwg.mxu0
        %1353 = vmatpush.xpose.msra.mxu0 0.0
        %1354 = vmatpush.xpose.msra.mxu0 0.0
        %1355 = vmatpush.xpose.msra.mxu0 0.0
        %1356 = vmatpush.xpose.msra.mxu0 0.0
        %1357 = vmatpush.xpose.msra.mxu0 0.0
        %1358 = vmatpush.xpose.msra.mxu0 0.0
        %1359 = vmatpush.xpose.msra.mxu0 0.0
        %1360 = vmatpush.xpose.msra.mxu0 0.0
        %1361 = vmatpush.xpose.msra.mxu0 0.0
        %1362 = vmatpush.xpose.msra.mxu0 0.0
        %1363 = vmatpush.xpose.msra.mxu0 0.0
        %1364 = vmatpush.xpose.msra.mxu0 0.0
        %1365 = vmatpush.xpose.msra.mxu0 0.0
        %1366 = vmatpush.xpose.msra.mxu0 0.0
        %1367 = vmatpush.xpose.msra.mxu0 0.0
        %1368 = vmatpush.xpose.msra.mxu0 %v241
        %1369 = vmatmul.f32.gmra.mxu0 %v241
        %v1370 = vpop.f32.mrf.mxu0
        %v1371 = vadd.f32 %v1351, %v1370
        %1372 = vdwg.mxu0
        %1373 = vmatpush.xpose.msra.mxu0 0.0
        %1374 = vmatpush.xpose.msra.mxu0 0.0
        %1375 = vmatpush.xpose.msra.mxu0 0.0
        %1376 = vmatpush.xpose.msra.mxu0 0.0
        %1377 = vmatpush.xpose.msra.mxu0 0.0
        %1378 = vmatpush.xpose.msra.mxu0 0.0
        %1379 = vmatpush.xpose.msra.mxu0 0.0
        %1380 = vmatpush.xpose.msra.mxu0 0.0
        %1381 = vmatpush.xpose.msra.mxu0 0.0
        %1382 = vmatpush.xpose.msra.mxu0 0.0
        %1383 = vmatpush.xpose.msra.mxu0 0.0
        %1384 = vmatpush.xpose.msra.mxu0 0.0
        %1385 = vmatpush.xpose.msra.mxu0 0.0
        %1386 = vmatpush.xpose.msra.mxu0 0.0
        %1387 = vmatpush.xpose.msra.mxu0 0.0
        %1388 = vmatpush.xpose.msra.mxu0 %v242
        %1389 = vmatmul.f32.gmra.mxu0 %v242
        %v1390 = vpop.f32.mrf.mxu0
        %v1391 = vadd.f32 %v1371, %v1390
        %1392 = vdwg.mxu0
        %1393 = vmatpush.xpose.msra.mxu0 0.0
        %1394 = vmatpush.xpose.msra.mxu0 0.0
        %1395 = vmatpush.xpose.msra.mxu0 0.0
        %1396 = vmatpush.xpose.msra.mxu0 0.0
        %1397 = vmatpush.xpose.msra.mxu0 0.0
        %1398 = vmatpush.xpose.msra.mxu0 0.0
        %1399 = vmatpush.xpose.msra.mxu0 0.0
        %1400 = vmatpush.xpose.msra.mxu0 0.0
        %1401 = vmatpush.xpose.msra.mxu0 0.0
        %1402 = vmatpush.xpose.msra.mxu0 0.0
        %1403 = vmatpush.xpose.msra.mxu0 0.0
        %1404 = vmatpush.xpose.msra.mxu0 0.0
        %1405 = vmatpush.xpose.msra.mxu0 0.0
        %1406 = vmatpush.xpose.msra.mxu0 0.0
        %1407 = vmatpush.xpose.msra.mxu0 0.0
        %1408 = vmatpush.xpose.msra.mxu0 %v243
        %1409 = vmatmul.f32.gmra.mxu0 %v243
        %v1410 = vpop.f32.mrf.mxu0
        %v1411 = vadd.f32 %v1391, %v1410
        %1412 = vdwg.mxu0
        %1413 = vmatpush.xpose.msra.mxu0 0.0
        %1414 = vmatpush.xpose.msra.mxu0 0.0
        %1415 = vmatpush.xpose.msra.mxu0 0.0
        %1416 = vmatpush.xpose.msra.mxu0 0.0
        %1417 = vmatpush.xpose.msra.mxu0 0.0
        %1418 = vmatpush.xpose.msra.mxu0 0.0
        %1419 = vmatpush.xpose.msra.mxu0 0.0
        %1420 = vmatpush.xpose.msra.mxu0 0.0
        %1421 = vmatpush.xpose.msra.mxu0 0.0
        %1422 = vmatpush.xpose.msra.mxu0 0.0
        %1423 = vmatpush.xpose.msra.mxu0 0.0
        %1424 = vmatpush.xpose.msra.mxu0 0.0
        %1425 = vmatpush.xpose.msra.mxu0 0.0
        %1426 = vmatpush.xpose.msra.mxu0 0.0
        %1427 = vmatpush.xpose.msra.mxu0 0.0
        %1428 = vmatpush.xpose.msra.mxu0 %v244
        %1429 = vmatmul.f32.gmra.mxu0 %v244
        %v1430 = vpop.f32.mrf.mxu0
        %v1431 = vadd.f32 %v1411, %v1430
        %1432 = vdwg.mxu0
        %1433 = vmatpush.xpose.msra.mxu0 0.0
        %1434 = vmatpush.xpose.msra.mxu0 0.0
        %1435 = vmatpush.xpose.msra.mxu0 0.0
        %1436 = vmatpush.xpose.msra.mxu0 0.0
        %1437 = vmatpush.xpose.msra.mxu0 0.0
        %1438 = vmatpush.xpose.msra.mxu0 0.0
        %1439 = vmatpush.xpose.msra.mxu0 0.0
        %1440 = vmatpush.xpose.msra.mxu0 0.0
        %1441 = vmatpush.xpose.msra.mxu0 0.0
        %1442 = vmatpush.xpose.msra.mxu0 0.0
        %1443 = vmatpush.xpose.msra.mxu0 0.0
        %1444 = vmatpush.xpose.msra.mxu0 0.0
        %1445 = vmatpush.xpose.msra.mxu0 0.0
        %1446 = vmatpush.xpose.msra.mxu0 0.0
        %1447 = vmatpush.xpose.msra.mxu0 0.0
        %1448 = vmatpush.xpose.msra.mxu0 %v245
        %1449 = vmatmul.f32.gmra.mxu0 %v245
        %v1450 = vpop.f32.mrf.mxu0
        %v1451 = vadd.f32 %v1431, %v1450
        %1452 = vdwg.mxu0
        %1453 = vmatpush.xpose.msra.mxu0 0.0
        %1454 = vmatpush.xpose.msra.mxu0 0.0
        %1455 = vmatpush.xpose.msra.mxu0 0.0
        %1456 = vmatpush.xpose.msra.mxu0 0.0
        %1457 = vmatpush.xpose.msra.mxu0 0.0
        %1458 = vmatpush.xpose.msra.mxu0 0.0
        %1459 = vmatpush.xpose.msra.mxu0 0.0
        %1460 = vmatpush.xpose.msra.mxu0 0.0
        %1461 = vmatpush.xpose.msra.mxu0 0.0
        %1462 = vmatpush.xpose.msra.mxu0 0.0
        %1463 = vmatpush.xpose.msra.mxu0 0.0
        %1464 = vmatpush.xpose.msra.mxu0 0.0
        %1465 = vmatpush.xpose.msra.mxu0 0.0
        %1466 = vmatpush.xpose.msra.mxu0 0.0
        %1467 = vmatpush.xpose.msra.mxu0 0.0
        %1468 = vmatpush.xpose.msra.mxu0 %v246
        %1469 = vmatmul.f32.gmra.mxu0 %v246
        %v1470 = vpop.f32.mrf.mxu0
        %v1471 = vadd.f32 %v1451, %v1470
        %1472 = vdwg.mxu0
        %1473 = vmatpush.xpose.msra.mxu0 0.0
        %1474 = vmatpush.xpose.msra.mxu0 0.0
        %1475 = vmatpush.xpose.msra.mxu0 0.0
        %1476 = vmatpush.xpose.msra.mxu0 0.0
        %1477 = vmatpush.xpose.msra.mxu0 0.0
        %1478 = vmatpush.xpose.msra.mxu0 0.0
        %1479 = vmatpush.xpose.msra.mxu0 0.0
        %1480 = vmatpush.xpose.msra.mxu0 0.0
        %1481 = vmatpush.xpose.msra.mxu0 0.0
        %1482 = vmatpush.xpose.msra.mxu0 0.0
        %1483 = vmatpush.xpose.msra.mxu0 0.0
        %1484 = vmatpush.xpose.msra.mxu0 0.0
        %1485 = vmatpush.xpose.msra.mxu0 0.0
        %1486 = vmatpush.xpose.msra.mxu0 0.0
        %1487 = vmatpush.xpose.msra.mxu0 0.0
        %1488 = vmatpush.xpose.msra.mxu0 %v247
        %1489 = vmatmul.f32.gmra.mxu0 %v247
        %v1490 = vpop.f32.mrf.mxu0
        %v1491 = vadd.f32 %v1471, %v1490
        %1492 = vdwg.mxu0
        %1493 = vmatpush.xpose.msra.mxu0 0.0
        %1494 = vmatpush.xpose.msra.mxu0 0.0
        %1495 = vmatpush.xpose.msra.mxu0 0.0
        %1496 = vmatpush.xpose.msra.mxu0 0.0
        %1497 = vmatpush.xpose.msra.mxu0 0.0
        %1498 = vmatpush.xpose.msra.mxu0 0.0
        %1499 = vmatpush.xpose.msra.mxu0 0.0
        %1500 = vmatpush.xpose.msra.mxu0 0.0
        %1501 = vmatpush.xpose.msra.mxu0 0.0
        %1502 = vmatpush.xpose.msra.mxu0 0.0
        %1503 = vmatpush.xpose.msra.mxu0 0.0
        %1504 = vmatpush.xpose.msra.mxu0 0.0
        %1505 = vmatpush.xpose.msra.mxu0 0.0
        %1506 = vmatpush.xpose.msra.mxu0 0.0
        %1507 = vmatpush.xpose.msra.mxu0 0.0
        %1508 = vmatpush.xpose.msra.mxu0 %v248
        %1509 = vmatmul.f32.gmra.mxu0 %v248
        %v1510 = vpop.f32.mrf.mxu0
        %v1511 = vadd.f32 %v1491, %v1510
        %1512 = vdwg.mxu0
        %1513 = vmatpush.xpose.msra.mxu0 0.0
        %1514 = vmatpush.xpose.msra.mxu0 0.0
        %1515 = vmatpush.xpose.msra.mxu0 0.0
        %1516 = vmatpush.xpose.msra.mxu0 0.0
        %1517 = vmatpush.xpose.msra.mxu0 0.0
        %1518 = vmatpush.xpose.msra.mxu0 0.0
        %1519 = vmatpush.xpose.msra.mxu0 0.0
        %1520 = vmatpush.xpose.msra.mxu0 0.0
        %1521 = vmatpush.xpose.msra.mxu0 0.0
        %1522 = vmatpush.xpose.msra.mxu0 0.0
        %1523 = vmatpush.xpose.msra.mxu0 0.0
        %1524 = vmatpush.xpose.msra.mxu0 0.0
        %1525 = vmatpush.xpose.msra.mxu0 0.0
        %1526 = vmatpush.xpose.msra.mxu0 0.0
        %1527 = vmatpush.xpose.msra.mxu0 0.0
        %1528 = vmatpush.xpose.msra.mxu0 %v249
        %1529 = vmatmul.f32.gmra.mxu0 %v249
        %v1530 = vpop.f32.mrf.mxu0
        %v1531 = vadd.f32 %v1511, %v1530
        %1532 = vdwg.mxu0
        %1533 = vmatpush.xpose.msra.mxu0 0.0
        %1534 = vmatpush.xpose.msra.mxu0 0.0
        %1535 = vmatpush.xpose.msra.mxu0 0.0
        %1536 = vmatpush.xpose.msra.mxu0 0.0
        %1537 = vmatpush.xpose.msra.mxu0 0.0
        %1538 = vmatpush.xpose.msra.mxu0 0.0
        %1539 = vmatpush.xpose.msra.mxu0 0.0
        %1540 = vmatpush.xpose.msra.mxu0 0.0
        %1541 = vmatpush.xpose.msra.mxu0 0.0
        %1542 = vmatpush.xpose.msra.mxu0 0.0
        %1543 = vmatpush.xpose.msra.mxu0 0.0
        %1544 = vmatpush.xpose.msra.mxu0 0.0
        %1545 = vmatpush.xpose.msra.mxu0 0.0
        %1546 = vmatpush.xpose.msra.mxu0 0.0
        %1547 = vmatpush.xpose.msra.mxu0 0.0
        %1548 = vmatpush.xpose.msra.mxu0 %v250
        %1549 = vmatmul.f32.gmra.mxu0 %v250
        %v1550 = vpop.f32.mrf.mxu0
        %v1551 = vadd.f32 %v1531, %v1550
        %1552 = vdwg.mxu0
        %1553 = vmatpush.xpose.msra.mxu0 0.0
        %1554 = vmatpush.xpose.msra.mxu0 0.0
        %1555 = vmatpush.xpose.msra.mxu0 0.0
        %1556 = vmatpush.xpose.msra.mxu0 0.0
        %1557 = vmatpush.xpose.msra.mxu0 0.0
        %1558 = vmatpush.xpose.msra.mxu0 0.0
        %1559 = vmatpush.xpose.msra.mxu0 0.0
        %1560 = vmatpush.xpose.msra.mxu0 0.0
        %1561 = vmatpush.xpose.msra.mxu0 0.0
        %1562 = vmatpush.xpose.msra.mxu0 0.0
        %1563 = vmatpush.xpose.msra.mxu0 0.0
        %1564 = vmatpush.xpose.msra.mxu0 0.0
        %1565 = vmatpush.xpose.msra.mxu0 0.0
        %1566 = vmatpush.xpose.msra.mxu0 0.0
        %1567 = vmatpush.xpose.msra.mxu0 0.0
        %1568 = vmatpush.xpose.msra.mxu0 %v251
        %1569 = vmatmul.f32.gmra.mxu0 %v251
        %v1570 = vpop.f32.mrf.mxu0
        %v1571 = vadd.f32 %v1551, %v1570
        %1572 = vdwg.mxu0
        %1573 = vmatpush.xpose.msra.mxu0 0.0
        %1574 = vmatpush.xpose.msra.mxu0 0.0
        %1575 = vmatpush.xpose.msra.mxu0 0.0
        %1576 = vmatpush.xpose.msra.mxu0 0.0
        %1577 = vmatpush.xpose.msra.mxu0 0.0
        %1578 = vmatpush.xpose.msra.mxu0 0.0
        %1579 = vmatpush.xpose.msra.mxu0 0.0
        %1580 = vmatpush.xpose.msra.mxu0 0.0
        %1581 = vmatpush.xpose.msra.mxu0 0.0
        %1582 = vmatpush.xpose.msra.mxu0 0.0
        %1583 = vmatpush.xpose.msra.mxu0 0.0
        %1584 = vmatpush.xpose.msra.mxu0 0.0
        %1585 = vmatpush.xpose.msra.mxu0 0.0
        %1586 = vmatpush.xpose.msra.mxu0 0.0
        %1587 = vmatpush.xpose.msra.mxu0 0.0
        %1588 = vmatpush.xpose.msra.mxu0 %v252
        %1589 = vmatmul.f32.gmra.mxu0 %v252
        %v1590 = vpop.f32.mrf.mxu0
        %v1591 = vadd.f32 %v1571, %v1590
        %1592 = vdwg.mxu0
        %1593 = vmatpush.xpose.msra.mxu0 0.0
        %1594 = vmatpush.xpose.msra.mxu0 0.0
        %1595 = vmatpush.xpose.msra.mxu0 0.0
        %1596 = vmatpush.xpose.msra.mxu0 0.0
        %1597 = vmatpush.xpose.msra.mxu0 0.0
        %1598 = vmatpush.xpose.msra.mxu0 0.0
        %1599 = vmatpush.xpose.msra.mxu0 0.0
        %1600 = vmatpush.xpose.msra.mxu0 0.0
        %1601 = vmatpush.xpose.msra.mxu0 0.0
        %1602 = vmatpush.xpose.msra.mxu0 0.0
        %1603 = vmatpush.xpose.msra.mxu0 0.0
        %1604 = vmatpush.xpose.msra.mxu0 0.0
        %1605 = vmatpush.xpose.msra.mxu0 0.0
        %1606 = vmatpush.xpose.msra.mxu0 0.0
        %1607 = vmatpush.xpose.msra.mxu0 0.0
        %1608 = vmatpush.xpose.msra.mxu0 %v253
        %1609 = vmatmul.f32.gmra.mxu0 %v253
        %v1610 = vpop.f32.mrf.mxu0
        %v1611 = vadd.f32 %v1591, %v1610
        %1612 = vdwg.mxu0
        %1613 = vmatpush.xpose.msra.mxu0 0.0
        %1614 = vmatpush.xpose.msra.mxu0 0.0
        %1615 = vmatpush.xpose.msra.mxu0 0.0
        %1616 = vmatpush.xpose.msra.mxu0 0.0
        %1617 = vmatpush.xpose.msra.mxu0 0.0
        %1618 = vmatpush.xpose.msra.mxu0 0.0
        %1619 = vmatpush.xpose.msra.mxu0 0.0
        %1620 = vmatpush.xpose.msra.mxu0 0.0
        %1621 = vmatpush.xpose.msra.mxu0 0.0
        %1622 = vmatpush.xpose.msra.mxu0 0.0
        %1623 = vmatpush.xpose.msra.mxu0 0.0
        %1624 = vmatpush.xpose.msra.mxu0 0.0
        %1625 = vmatpush.xpose.msra.mxu0 0.0
        %1626 = vmatpush.xpose.msra.mxu0 0.0
        %1627 = vmatpush.xpose.msra.mxu0 0.0
        %1628 = vmatpush.xpose.msra.mxu0 %v254
        %1629 = vmatmul.f32.gmra.mxu0 %v254
        %v1630 = vpop.f32.mrf.mxu0
        %v1631 = vadd.f32 %v1611, %v1630
        %1632 = vdwg.mxu0
        %1633 = vmatpush.xpose.msra.mxu0 0.0
        %1634 = vmatpush.xpose.msra.mxu0 0.0
        %1635 = vmatpush.xpose.msra.mxu0 0.0
        %1636 = vmatpush.xpose.msra.mxu0 0.0
        %1637 = vmatpush.xpose.msra.mxu0 0.0
        %1638 = vmatpush.xpose.msra.mxu0 0.0
        %1639 = vmatpush.xpose.msra.mxu0 0.0
        %1640 = vmatpush.xpose.msra.mxu0 0.0
        %1641 = vmatpush.xpose.msra.mxu0 0.0
        %1642 = vmatpush.xpose.msra.mxu0 0.0
        %1643 = vmatpush.xpose.msra.mxu0 0.0
        %1644 = vmatpush.xpose.msra.mxu0 0.0
        %1645 = vmatpush.xpose.msra.mxu0 0.0
        %1646 = vmatpush.xpose.msra.mxu0 0.0
        %1647 = vmatpush.xpose.msra.mxu0 0.0
        %1648 = vmatpush.xpose.msra.mxu0 %v255
        %1649 = vmatmul.f32.gmra.mxu0 %v255
        %v1650 = vpop.f32.mrf.mxu0
        %v1651 = vadd.f32 %v1631, %v1650
        %1652 = vdwg.mxu0
        %1653 = vmatpush.xpose.msra.mxu0 0.0
        %1654 = vmatpush.xpose.msra.mxu0 0.0
        %1655 = vmatpush.xpose.msra.mxu0 0.0
        %1656 = vmatpush.xpose.msra.mxu0 0.0
        %1657 = vmatpush.xpose.msra.mxu0 0.0
        %1658 = vmatpush.xpose.msra.mxu0 0.0
        %1659 = vmatpush.xpose.msra.mxu0 0.0
        %1660 = vmatpush.xpose.msra.mxu0 0.0
        %1661 = vmatpush.xpose.msra.mxu0 0.0
        %1662 = vmatpush.xpose.msra.mxu0 0.0
        %1663 = vmatpush.xpose.msra.mxu0 0.0
        %1664 = vmatpush.xpose.msra.mxu0 0.0
        %1665 = vmatpush.xpose.msra.mxu0 0.0
        %1666 = vmatpush.xpose.msra.mxu0 0.0
        %1667 = vmatpush.xpose.msra.mxu0 0.0
        %1668 = vmatpush.xpose.msra.mxu0 %v256
        %1669 = vmatmul.f32.gmra.mxu0 %v256
        %v1670 = vpop.f32.mrf.mxu0
        %v1671 = vadd.f32 %v1651, %v1670
        %1672 = vdwg.mxu0
        %1673 = vmatpush.xpose.msra.mxu0 0.0
        %1674 = vmatpush.xpose.msra.mxu0 0.0
        %1675 = vmatpush.xpose.msra.mxu0 0.0
        %1676 = vmatpush.xpose.msra.mxu0 0.0
        %1677 = vmatpush.xpose.msra.mxu0 0.0
        %1678 = vmatpush.xpose.msra.mxu0 0.0
        %1679 = vmatpush.xpose.msra.mxu0 0.0
        %1680 = vmatpush.xpose.msra.mxu0 0.0
        %1681 = vmatpush.xpose.msra.mxu0 0.0
        %1682 = vmatpush.xpose.msra.mxu0 0.0
        %1683 = vmatpush.xpose.msra.mxu0 0.0
        %1684 = vmatpush.xpose.msra.mxu0 0.0
        %1685 = vmatpush.xpose.msra.mxu0 0.0
        %1686 = vmatpush.xpose.msra.mxu0 0.0
        %1687 = vmatpush.xpose.msra.mxu0 0.0
        %1688 = vmatpush.xpose.msra.mxu0 %v257
        %1689 = vmatmul.f32.gmra.mxu0 %v257
        %v1690 = vpop.f32.mrf.mxu0
        %v1691 = vadd.f32 %v1671, %v1690
        %1692 = vdwg.mxu0
        %1693 = vmatpush.xpose.msra.mxu0 0.0
        %1694 = vmatpush.xpose.msra.mxu0 0.0
        %1695 = vmatpush.xpose.msra.mxu0 0.0
        %1696 = vmatpush.xpose.msra.mxu0 0.0
        %1697 = vmatpush.xpose.msra.mxu0 0.0
        %1698 = vmatpush.xpose.msra.mxu0 0.0
        %1699 = vmatpush.xpose.msra.mxu0 0.0
        %1700 = vmatpush.xpose.msra.mxu0 0.0
        %1701 = vmatpush.xpose.msra.mxu0 0.0
        %1702 = vmatpush.xpose.msra.mxu0 0.0
        %1703 = vmatpush.xpose.msra.mxu0 0.0
        %1704 = vmatpush.xpose.msra.mxu0 0.0
        %1705 = vmatpush.xpose.msra.mxu0 0.0
        %1706 = vmatpush.xpose.msra.mxu0 0.0
        %1707 = vmatpush.xpose.msra.mxu0 0.0
        %1708 = vmatpush.xpose.msra.mxu0 %v258
        %1709 = vmatmul.f32.gmra.mxu0 %v258
        %v1710 = vpop.f32.mrf.mxu0
        %v1711 = vadd.f32 %v1691, %v1710
        %1712 = vdwg.mxu0
        %1713 = vmatpush.xpose.msra.mxu0 0.0
        %1714 = vmatpush.xpose.msra.mxu0 0.0
        %1715 = vmatpush.xpose.msra.mxu0 0.0
        %1716 = vmatpush.xpose.msra.mxu0 0.0
        %1717 = vmatpush.xpose.msra.mxu0 0.0
        %1718 = vmatpush.xpose.msra.mxu0 0.0
        %1719 = vmatpush.xpose.msra.mxu0 0.0
        %1720 = vmatpush.xpose.msra.mxu0 0.0
        %1721 = vmatpush.xpose.msra.mxu0 0.0
        %1722 = vmatpush.xpose.msra.mxu0 0.0
        %1723 = vmatpush.xpose.msra.mxu0 0.0
        %1724 = vmatpush.xpose.msra.mxu0 0.0
        %1725 = vmatpush.xpose.msra.mxu0 0.0
        %1726 = vmatpush.xpose.msra.mxu0 0.0
        %1727 = vmatpush.xpose.msra.mxu0 0.0
        %1728 = vmatpush.xpose.msra.mxu0 %v259
        %1729 = vmatmul.f32.gmra.mxu0 %v259
        %v1730 = vpop.f32.mrf.mxu0
        %v1731 = vadd.f32 %v1711, %v1730
        %1732 = vdwg.mxu0
        %1733 = vmatpush.xpose.msra.mxu0 0.0
        %1734 = vmatpush.xpose.msra.mxu0 0.0
        %1735 = vmatpush.xpose.msra.mxu0 0.0
        %1736 = vmatpush.xpose.msra.mxu0 0.0
        %1737 = vmatpush.xpose.msra.mxu0 0.0
        %1738 = vmatpush.xpose.msra.mxu0 0.0
        %1739 = vmatpush.xpose.msra.mxu0 0.0
        %1740 = vmatpush.xpose.msra.mxu0 0.0
        %1741 = vmatpush.xpose.msra.mxu0 0.0
        %1742 = vmatpush.xpose.msra.mxu0 0.0
        %1743 = vmatpush.xpose.msra.mxu0 0.0
        %1744 = vmatpush.xpose.msra.mxu0 0.0
        %1745 = vmatpush.xpose.msra.mxu0 0.0
        %1746 = vmatpush.xpose.msra.mxu0 0.0
        %1747 = vmatpush.xpose.msra.mxu0 0.0
        %1748 = vmatpush.xpose.msra.mxu0 %v260
        %1749 = vmatmul.f32.gmra.mxu0 %v260
        %v1750 = vpop.f32.mrf.mxu0
        %v1751 = vadd.f32 %v1731, %v1750
        %1752 = vdwg.mxu0
        %1753 = vmatpush.xpose.msra.mxu0 0.0
        %1754 = vmatpush.xpose.msra.mxu0 0.0
        %1755 = vmatpush.xpose.msra.mxu0 0.0
        %1756 = vmatpush.xpose.msra.mxu0 0.0
        %1757 = vmatpush.xpose.msra.mxu0 0.0
        %1758 = vmatpush.xpose.msra.mxu0 0.0
        %1759 = vmatpush.xpose.msra.mxu0 0.0
        %1760 = vmatpush.xpose.msra.mxu0 0.0
        %1761 = vmatpush.xpose.msra.mxu0 0.0
        %1762 = vmatpush.xpose.msra.mxu0 0.0
        %1763 = vmatpush.xpose.msra.mxu0 0.0
        %1764 = vmatpush.xpose.msra.mxu0 0.0
        %1765 = vmatpush.xpose.msra.mxu0 0.0
        %1766 = vmatpush.xpose.msra.mxu0 0.0
        %1767 = vmatpush.xpose.msra.mxu0 0.0
        %1768 = vmatpush.xpose.msra.mxu0 %v261
        %1769 = vmatmul.f32.gmra.mxu0 %v261
        %v1770 = vpop.f32.mrf.mxu0
        %v1771 = vadd.f32 %v1751, %v1770
        %1772 = vdwg.mxu0
        %1773 = vmatpush.xpose.msra.mxu0 0.0
        %1774 = vmatpush.xpose.msra.mxu0 0.0
        %1775 = vmatpush.xpose.msra.mxu0 0.0
        %1776 = vmatpush.xpose.msra.mxu0 0.0
        %1777 = vmatpush.xpose.msra.mxu0 0.0
        %1778 = vmatpush.xpose.msra.mxu0 0.0
        %1779 = vmatpush.xpose.msra.mxu0 0.0
        %1780 = vmatpush.xpose.msra.mxu0 0.0
        %1781 = vmatpush.xpose.msra.mxu0 0.0
        %1782 = vmatpush.xpose.msra.mxu0 0.0
        %1783 = vmatpush.xpose.msra.mxu0 0.0
        %1784 = vmatpush.xpose.msra.mxu0 0.0
        %1785 = vmatpush.xpose.msra.mxu0 0.0
        %1786 = vmatpush.xpose.msra.mxu0 0.0
        %1787 = vmatpush.xpose.msra.mxu0 0.0
        %1788 = vmatpush.xpose.msra.mxu0 %v262
        %1789 = vmatmul.f32.gmra.mxu0 %v262
        %v1790 = vpop.f32.mrf.mxu0
        %v1791 = vadd.f32 %v1771, %v1790
        %1792 = vdwg.mxu0
        %1793 = vmatpush.xpose.msra.mxu0 0.0
        %1794 = vmatpush.xpose.msra.mxu0 0.0
        %1795 = vmatpush.xpose.msra.mxu0 0.0
        %1796 = vmatpush.xpose.msra.mxu0 0.0
        %1797 = vmatpush.xpose.msra.mxu0 0.0
        %1798 = vmatpush.xpose.msra.mxu0 0.0
        %1799 = vmatpush.xpose.msra.mxu0 0.0
        %1800 = vmatpush.xpose.msra.mxu0 0.0
        %1801 = vmatpush.xpose.msra.mxu0 0.0
        %1802 = vmatpush.xpose.msra.mxu0 0.0
        %1803 = vmatpush.xpose.msra.mxu0 0.0
        %1804 = vmatpush.xpose.msra.mxu0 0.0
        %1805 = vmatpush.xpose.msra.mxu0 0.0
        %1806 = vmatpush.xpose.msra.mxu0 0.0
        %1807 = vmatpush.xpose.msra.mxu0 0.0
        %1808 = vmatpush.xpose.msra.mxu0 %v263
        %1809 = vmatmul.f32.gmra.mxu0 %v263
        %v1810 = vpop.f32.mrf.mxu0
        %v1811 = vadd.f32 %v1791, %v1810
        %1812 = vdwg.mxu0
        %1813 = vmatpush.xpose.msra.mxu0 0.0
        %1814 = vmatpush.xpose.msra.mxu0 0.0
        %1815 = vmatpush.xpose.msra.mxu0 0.0
        %1816 = vmatpush.xpose.msra.mxu0 0.0
        %1817 = vmatpush.xpose.msra.mxu0 0.0
        %1818 = vmatpush.xpose.msra.mxu0 0.0
        %1819 = vmatpush.xpose.msra.mxu0 0.0
        %1820 = vmatpush.xpose.msra.mxu0 0.0
        %1821 = vmatpush.xpose.msra.mxu0 0.0
        %1822 = vmatpush.xpose.msra.mxu0 0.0
        %1823 = vmatpush.xpose.msra.mxu0 0.0
        %1824 = vmatpush.xpose.msra.mxu0 0.0
        %1825 = vmatpush.xpose.msra.mxu0 0.0
        %1826 = vmatpush.xpose.msra.mxu0 0.0
        %1827 = vmatpush.xpose.msra.mxu0 0.0
        %1828 = vmatpush.xpose.msra.mxu0 %v264
        %1829 = vmatmul.f32.gmra.mxu0 %v264
        %v1830 = vpop.f32.mrf.mxu0
        %v1831 = vadd.f32 %v1811, %v1830
        %1832 = vdwg.mxu0
        %1833 = vmatpush.xpose.msra.mxu0 0.0
        %1834 = vmatpush.xpose.msra.mxu0 0.0
        %1835 = vmatpush.xpose.msra.mxu0 0.0
        %1836 = vmatpush.xpose.msra.mxu0 0.0
        %1837 = vmatpush.xpose.msra.mxu0 0.0
        %1838 = vmatpush.xpose.msra.mxu0 0.0
        %1839 = vmatpush.xpose.msra.mxu0 0.0
        %1840 = vmatpush.xpose.msra.mxu0 0.0
        %1841 = vmatpush.xpose.msra.mxu0 0.0
        %1842 = vmatpush.xpose.msra.mxu0 0.0
        %1843 = vmatpush.xpose.msra.mxu0 0.0
        %1844 = vmatpush.xpose.msra.mxu0 0.0
        %1845 = vmatpush.xpose.msra.mxu0 0.0
        %1846 = vmatpush.xpose.msra.mxu0 0.0
        %1847 = vmatpush.xpose.msra.mxu0 0.0
        %1848 = vmatpush.xpose.msra.mxu0 %v265
        %1849 = vmatmul.f32.gmra.mxu0 %v265
        %v1850 = vpop.f32.mrf.mxu0
        %v1851 = vadd.f32 %v1831, %v1850
        %1852 = vdwg.mxu0
        %1853 = vmatpush.xpose.msra.mxu0 0.0
        %1854 = vmatpush.xpose.msra.mxu0 0.0
        %1855 = vmatpush.xpose.msra.mxu0 0.0
        %1856 = vmatpush.xpose.msra.mxu0 0.0
        %1857 = vmatpush.xpose.msra.mxu0 0.0
        %1858 = vmatpush.xpose.msra.mxu0 0.0
        %1859 = vmatpush.xpose.msra.mxu0 0.0
        %1860 = vmatpush.xpose.msra.mxu0 0.0
        %1861 = vmatpush.xpose.msra.mxu0 0.0
        %1862 = vmatpush.xpose.msra.mxu0 0.0
        %1863 = vmatpush.xpose.msra.mxu0 0.0
        %1864 = vmatpush.xpose.msra.mxu0 0.0
        %1865 = vmatpush.xpose.msra.mxu0 0.0
        %1866 = vmatpush.xpose.msra.mxu0 0.0
        %1867 = vmatpush.xpose.msra.mxu0 0.0
        %1868 = vmatpush.xpose.msra.mxu0 %v266
        %1869 = vmatmul.f32.gmra.mxu0 %v266
        %v1870 = vpop.f32.mrf.mxu0
        %v1871 = vadd.f32 %v1851, %v1870
        %1872 = vdwg.mxu0
        %1873 = vmatpush.xpose.msra.mxu0 0.0
        %1874 = vmatpush.xpose.msra.mxu0 0.0
        %1875 = vmatpush.xpose.msra.mxu0 0.0
        %1876 = vmatpush.xpose.msra.mxu0 0.0
        %1877 = vmatpush.xpose.msra.mxu0 0.0
        %1878 = vmatpush.xpose.msra.mxu0 0.0
        %1879 = vmatpush.xpose.msra.mxu0 0.0
        %1880 = vmatpush.xpose.msra.mxu0 0.0
        %1881 = vmatpush.xpose.msra.mxu0 0.0
        %1882 = vmatpush.xpose.msra.mxu0 0.0
        %1883 = vmatpush.xpose.msra.mxu0 0.0
        %1884 = vmatpush.xpose.msra.mxu0 0.0
        %1885 = vmatpush.xpose.msra.mxu0 0.0
        %1886 = vmatpush.xpose.msra.mxu0 0.0
        %1887 = vmatpush.xpose.msra.mxu0 0.0
        %1888 = vmatpush.xpose.msra.mxu0 %v267
        %1889 = vmatmul.f32.gmra.mxu0 %v267
        %v1890 = vpop.f32.mrf.mxu0
        %v1891 = vadd.f32 %v1871, %v1890
        %1892 = vdwg.mxu0
        %1893 = vmatpush.xpose.msra.mxu0 0.0
        %1894 = vmatpush.xpose.msra.mxu0 0.0
        %1895 = vmatpush.xpose.msra.mxu0 0.0
        %1896 = vmatpush.xpose.msra.mxu0 0.0
        %1897 = vmatpush.xpose.msra.mxu0 0.0
        %1898 = vmatpush.xpose.msra.mxu0 0.0
        %1899 = vmatpush.xpose.msra.mxu0 0.0
        %1900 = vmatpush.xpose.msra.mxu0 0.0
        %1901 = vmatpush.xpose.msra.mxu0 0.0
        %1902 = vmatpush.xpose.msra.mxu0 0.0
        %1903 = vmatpush.xpose.msra.mxu0 0.0
        %1904 = vmatpush.xpose.msra.mxu0 0.0
        %1905 = vmatpush.xpose.msra.mxu0 0.0
        %1906 = vmatpush.xpose.msra.mxu0 0.0
        %1907 = vmatpush.xpose.msra.mxu0 0.0
        %1908 = vmatpush.xpose.msra.mxu0 %v268
        %1909 = vmatmul.f32.gmra.mxu0 %v268
        %v1910 = vpop.f32.mrf.mxu0
        %v1911 = vadd.f32 %v1891, %v1910
        %1912 = vdwg.mxu0
        %1913 = vmatpush.xpose.msra.mxu0 0.0
        %1914 = vmatpush.xpose.msra.mxu0 0.0
        %1915 = vmatpush.xpose.msra.mxu0 0.0
        %1916 = vmatpush.xpose.msra.mxu0 0.0
        %1917 = vmatpush.xpose.msra.mxu0 0.0
        %1918 = vmatpush.xpose.msra.mxu0 0.0
        %1919 = vmatpush.xpose.msra.mxu0 0.0
        %1920 = vmatpush.xpose.msra.mxu0 0.0
        %1921 = vmatpush.xpose.msra.mxu0 0.0
        %1922 = vmatpush.xpose.msra.mxu0 0.0
        %1923 = vmatpush.xpose.msra.mxu0 0.0
        %1924 = vmatpush.xpose.msra.mxu0 0.0
        %1925 = vmatpush.xpose.msra.mxu0 0.0
        %1926 = vmatpush.xpose.msra.mxu0 0.0
        %1927 = vmatpush.xpose.msra.mxu0 0.0
        %1928 = vmatpush.xpose.msra.mxu0 %v269
        %1929 = vmatmul.f32.gmra.mxu0 %v269
        %v1930 = vpop.f32.mrf.mxu0
        %v1931 = vadd.f32 %v1911, %v1930
        %1932 = vdwg.mxu0
        %1933 = vmatpush.xpose.msra.mxu0 0.0
        %1934 = vmatpush.xpose.msra.mxu0 0.0
        %1935 = vmatpush.xpose.msra.mxu0 0.0
        %1936 = vmatpush.xpose.msra.mxu0 0.0
        %1937 = vmatpush.xpose.msra.mxu0 0.0
        %1938 = vmatpush.xpose.msra.mxu0 0.0
        %1939 = vmatpush.xpose.msra.mxu0 0.0
        %1940 = vmatpush.xpose.msra.mxu0 0.0
        %1941 = vmatpush.xpose.msra.mxu0 0.0
        %1942 = vmatpush.xpose.msra.mxu0 0.0
        %1943 = vmatpush.xpose.msra.mxu0 0.0
        %1944 = vmatpush.xpose.msra.mxu0 0.0
        %1945 = vmatpush.xpose.msra.mxu0 0.0
        %1946 = vmatpush.xpose.msra.mxu0 0.0
        %1947 = vmatpush.xpose.msra.mxu0 0.0
        %1948 = vmatpush.xpose.msra.mxu0 %v270
        %1949 = vmatmul.f32.gmra.mxu0 %v270
        %v1950 = vpop.f32.mrf.mxu0
        %v1951 = vadd.f32 %v1931, %v1950
        %1952 = vdwg.mxu0
        %1953 = vmatpush.xpose.msra.mxu0 0.0
        %1954 = vmatpush.xpose.msra.mxu0 0.0
        %1955 = vmatpush.xpose.msra.mxu0 0.0
        %1956 = vmatpush.xpose.msra.mxu0 0.0
        %1957 = vmatpush.xpose.msra.mxu0 0.0
        %1958 = vmatpush.xpose.msra.mxu0 0.0
        %1959 = vmatpush.xpose.msra.mxu0 0.0
        %1960 = vmatpush.xpose.msra.mxu0 0.0
        %1961 = vmatpush.xpose.msra.mxu0 0.0
        %1962 = vmatpush.xpose.msra.mxu0 0.0
        %1963 = vmatpush.xpose.msra.mxu0 0.0
        %1964 = vmatpush.xpose.msra.mxu0 0.0
        %1965 = vmatpush.xpose.msra.mxu0 0.0
        %1966 = vmatpush.xpose.msra.mxu0 0.0
        %1967 = vmatpush.xpose.msra.mxu0 0.0
        %1968 = vmatpush.xpose.msra.mxu0 %v271
        %1969 = vmatmul.f32.gmra.mxu0 %v271
        %v1970 = vpop.f32.mrf.mxu0
        %v1971 = vadd.f32 %v1951, %v1970
        %1972 = vdwg.mxu0
        %1973 = vmatpush.xpose.msra.mxu0 0.0
        %1974 = vmatpush.xpose.msra.mxu0 0.0
        %1975 = vmatpush.xpose.msra.mxu0 0.0
        %1976 = vmatpush.xpose.msra.mxu0 0.0
        %1977 = vmatpush.xpose.msra.mxu0 0.0
        %1978 = vmatpush.xpose.msra.mxu0 0.0
        %1979 = vmatpush.xpose.msra.mxu0 0.0
        %1980 = vmatpush.xpose.msra.mxu0 0.0
        %1981 = vmatpush.xpose.msra.mxu0 0.0
        %1982 = vmatpush.xpose.msra.mxu0 0.0
        %1983 = vmatpush.xpose.msra.mxu0 0.0
        %1984 = vmatpush.xpose.msra.mxu0 0.0
        %1985 = vmatpush.xpose.msra.mxu0 0.0
        %1986 = vmatpush.xpose.msra.mxu0 0.0
        %1987 = vmatpush.xpose.msra.mxu0 0.0
        %1988 = vmatpush.xpose.msra.mxu0 %v272
        %1989 = vmatmul.f32.gmra.mxu0 %v272
        %v1990 = vpop.f32.mrf.mxu0
        %v1991 = vadd.f32 %v1971, %v1990
        %1992 = vdwg.mxu0
        %1993 = vmatpush.xpose.msra.mxu0 0.0
        %1994 = vmatpush.xpose.msra.mxu0 0.0
        %1995 = vmatpush.xpose.msra.mxu0 0.0
        %1996 = vmatpush.xpose.msra.mxu0 0.0
        %1997 = vmatpush.xpose.msra.mxu0 0.0
        %1998 = vmatpush.xpose.msra.mxu0 0.0
        %1999 = vmatpush.xpose.msra.mxu0 0.0
        %2000 = vmatpush.xpose.msra.mxu0 0.0
        %2001 = vmatpush.xpose.msra.mxu0 0.0
        %2002 = vmatpush.xpose.msra.mxu0 0.0
        %2003 = vmatpush.xpose.msra.mxu0 0.0
        %2004 = vmatpush.xpose.msra.mxu0 0.0
        %2005 = vmatpush.xpose.msra.mxu0 0.0
        %2006 = vmatpush.xpose.msra.mxu0 0.0
        %2007 = vmatpush.xpose.msra.mxu0 0.0
        %2008 = vmatpush.xpose.msra.mxu0 %v273
        %2009 = vmatmul.f32.gmra.mxu0 %v273
        %v2010 = vpop.f32.mrf.mxu0
        %v2011 = vadd.f32 %v1991, %v2010
        %2012 = vdwg.mxu0
        %2013 = vmatpush.xpose.msra.mxu0 0.0
        %2014 = vmatpush.xpose.msra.mxu0 0.0
        %2015 = vmatpush.xpose.msra.mxu0 0.0
        %2016 = vmatpush.xpose.msra.mxu0 0.0
        %2017 = vmatpush.xpose.msra.mxu0 0.0
        %2018 = vmatpush.xpose.msra.mxu0 0.0
        %2019 = vmatpush.xpose.msra.mxu0 0.0
        %2020 = vmatpush.xpose.msra.mxu0 0.0
        %2021 = vmatpush.xpose.msra.mxu0 0.0
        %2022 = vmatpush.xpose.msra.mxu0 0.0
        %2023 = vmatpush.xpose.msra.mxu0 0.0
        %2024 = vmatpush.xpose.msra.mxu0 0.0
        %2025 = vmatpush.xpose.msra.mxu0 0.0
        %2026 = vmatpush.xpose.msra.mxu0 0.0
        %2027 = vmatpush.xpose.msra.mxu0 0.0
        %2028 = vmatpush.xpose.msra.mxu0 %v274
        %2029 = vmatmul.f32.gmra.mxu0 %v274
        %v2030 = vpop.f32.mrf.mxu0
        %v2031 = vadd.f32 %v2011, %v2030
        %2032 = vdwg.mxu0
        %2033 = vmatpush.xpose.msra.mxu0 0.0
        %2034 = vmatpush.xpose.msra.mxu0 0.0
        %2035 = vmatpush.xpose.msra.mxu0 0.0
        %2036 = vmatpush.xpose.msra.mxu0 0.0
        %2037 = vmatpush.xpose.msra.mxu0 0.0
        %2038 = vmatpush.xpose.msra.mxu0 0.0
        %2039 = vmatpush.xpose.msra.mxu0 0.0
        %2040 = vmatpush.xpose.msra.mxu0 0.0
        %2041 = vmatpush.xpose.msra.mxu0 0.0
        %2042 = vmatpush.xpose.msra.mxu0 0.0
        %2043 = vmatpush.xpose.msra.mxu0 0.0
        %2044 = vmatpush.xpose.msra.mxu0 0.0
        %2045 = vmatpush.xpose.msra.mxu0 0.0
        %2046 = vmatpush.xpose.msra.mxu0 0.0
        %2047 = vmatpush.xpose.msra.mxu0 0.0
        %2048 = vmatpush.xpose.msra.mxu0 %v275
        %2049 = vmatmul.f32.gmra.mxu0 %v275
        %v2050 = vpop.f32.mrf.mxu0
        %v2051 = vadd.f32 %v2031, %v2050
        %2052 = vdwg.mxu0
        %2053 = vmatpush.xpose.msra.mxu0 0.0
        %2054 = vmatpush.xpose.msra.mxu0 0.0
        %2055 = vmatpush.xpose.msra.mxu0 0.0
        %2056 = vmatpush.xpose.msra.mxu0 0.0
        %2057 = vmatpush.xpose.msra.mxu0 0.0
        %2058 = vmatpush.xpose.msra.mxu0 0.0
        %2059 = vmatpush.xpose.msra.mxu0 0.0
        %2060 = vmatpush.xpose.msra.mxu0 0.0
        %2061 = vmatpush.xpose.msra.mxu0 0.0
        %2062 = vmatpush.xpose.msra.mxu0 0.0
        %2063 = vmatpush.xpose.msra.mxu0 0.0
        %2064 = vmatpush.xpose.msra.mxu0 0.0
        %2065 = vmatpush.xpose.msra.mxu0 0.0
        %2066 = vmatpush.xpose.msra.mxu0 0.0
        %2067 = vmatpush.xpose.msra.mxu0 0.0
        %2068 = vmatpush.xpose.msra.mxu0 %v276
        %2069 = vmatmul.f32.gmra.mxu0 %v276
        %v2070 = vpop.f32.mrf.mxu0
        %v2071 = vadd.f32 %v2051, %v2070
        %2072 = vdwg.mxu0
        %2073 = vmatpush.xpose.msra.mxu0 0.0
        %2074 = vmatpush.xpose.msra.mxu0 0.0
        %2075 = vmatpush.xpose.msra.mxu0 0.0
        %2076 = vmatpush.xpose.msra.mxu0 0.0
        %2077 = vmatpush.xpose.msra.mxu0 0.0
        %2078 = vmatpush.xpose.msra.mxu0 0.0
        %2079 = vmatpush.xpose.msra.mxu0 0.0
        %2080 = vmatpush.xpose.msra.mxu0 0.0
        %2081 = vmatpush.xpose.msra.mxu0 0.0
        %2082 = vmatpush.xpose.msra.mxu0 0.0
        %2083 = vmatpush.xpose.msra.mxu0 0.0
        %2084 = vmatpush.xpose.msra.mxu0 0.0
        %2085 = vmatpush.xpose.msra.mxu0 0.0
        %2086 = vmatpush.xpose.msra.mxu0 0.0
        %2087 = vmatpush.xpose.msra.mxu0 0.0
        %2088 = vmatpush.xpose.msra.mxu0 %v277
        %2089 = vmatmul.f32.gmra.mxu0 %v277
        %v2090 = vpop.f32.mrf.mxu0
        %v2091 = vadd.f32 %v2071, %v2090
        %2092 = vdwg.mxu0
        %2093 = vmatpush.xpose.msra.mxu0 0.0
        %2094 = vmatpush.xpose.msra.mxu0 0.0
        %2095 = vmatpush.xpose.msra.mxu0 0.0
        %2096 = vmatpush.xpose.msra.mxu0 0.0
        %2097 = vmatpush.xpose.msra.mxu0 0.0
        %2098 = vmatpush.xpose.msra.mxu0 0.0
        %2099 = vmatpush.xpose.msra.mxu0 0.0
        %2100 = vmatpush.xpose.msra.mxu0 0.0
        %2101 = vmatpush.xpose.msra.mxu0 0.0
        %2102 = vmatpush.xpose.msra.mxu0 0.0
        %2103 = vmatpush.xpose.msra.mxu0 0.0
        %2104 = vmatpush.xpose.msra.mxu0 0.0
        %2105 = vmatpush.xpose.msra.mxu0 0.0
        %2106 = vmatpush.xpose.msra.mxu0 0.0
        %2107 = vmatpush.xpose.msra.mxu0 0.0
        %2108 = vmatpush.xpose.msra.mxu0 %v278
        %2109 = vmatmul.f32.gmra.mxu0 %v278
        %v2110 = vpop.f32.mrf.mxu0
        %v2111 = vadd.f32 %v2091, %v2110
        %2112 = vdwg.mxu0
        %2113 = vmatpush.xpose.msra.mxu0 0.0
        %2114 = vmatpush.xpose.msra.mxu0 0.0
        %2115 = vmatpush.xpose.msra.mxu0 0.0
        %2116 = vmatpush.xpose.msra.mxu0 0.0
        %2117 = vmatpush.xpose.msra.mxu0 0.0
        %2118 = vmatpush.xpose.msra.mxu0 0.0
        %2119 = vmatpush.xpose.msra.mxu0 0.0
        %2120 = vmatpush.xpose.msra.mxu0 0.0
        %2121 = vmatpush.xpose.msra.mxu0 0.0
        %2122 = vmatpush.xpose.msra.mxu0 0.0
        %2123 = vmatpush.xpose.msra.mxu0 0.0
        %2124 = vmatpush.xpose.msra.mxu0 0.0
        %2125 = vmatpush.xpose.msra.mxu0 0.0
        %2126 = vmatpush.xpose.msra.mxu0 0.0
        %2127 = vmatpush.xpose.msra.mxu0 0.0
        %2128 = vmatpush.xpose.msra.mxu0 %v279
        %2129 = vmatmul.f32.gmra.mxu0 %v279
        %v2130 = vpop.f32.mrf.mxu0
        %v2131 = vadd.f32 %v2111, %v2130
        %2132 = vdwg.mxu0
        %2133 = vmatpush.xpose.msra.mxu0 0.0
        %2134 = vmatpush.xpose.msra.mxu0 0.0
        %2135 = vmatpush.xpose.msra.mxu0 0.0
        %2136 = vmatpush.xpose.msra.mxu0 0.0
        %2137 = vmatpush.xpose.msra.mxu0 0.0
        %2138 = vmatpush.xpose.msra.mxu0 0.0
        %2139 = vmatpush.xpose.msra.mxu0 0.0
        %2140 = vmatpush.xpose.msra.mxu0 0.0
        %2141 = vmatpush.xpose.msra.mxu0 0.0
        %2142 = vmatpush.xpose.msra.mxu0 0.0
        %2143 = vmatpush.xpose.msra.mxu0 0.0
        %2144 = vmatpush.xpose.msra.mxu0 0.0
        %2145 = vmatpush.xpose.msra.mxu0 0.0
        %2146 = vmatpush.xpose.msra.mxu0 0.0
        %2147 = vmatpush.xpose.msra.mxu0 0.0
        %2148 = vmatpush.xpose.msra.mxu0 %v280
        %2149 = vmatmul.f32.gmra.mxu0 %v280
        %v2150 = vpop.f32.mrf.mxu0
        %v2151 = vadd.f32 %v2131, %v2150
        %2152 = vdwg.mxu0
        %2153 = vmatpush.xpose.msra.mxu0 0.0
        %2154 = vmatpush.xpose.msra.mxu0 0.0
        %2155 = vmatpush.xpose.msra.mxu0 0.0
        %2156 = vmatpush.xpose.msra.mxu0 0.0
        %2157 = vmatpush.xpose.msra.mxu0 0.0
        %2158 = vmatpush.xpose.msra.mxu0 0.0
        %2159 = vmatpush.xpose.msra.mxu0 0.0
        %2160 = vmatpush.xpose.msra.mxu0 0.0
        %2161 = vmatpush.xpose.msra.mxu0 0.0
        %2162 = vmatpush.xpose.msra.mxu0 0.0
        %2163 = vmatpush.xpose.msra.mxu0 0.0
        %2164 = vmatpush.xpose.msra.mxu0 0.0
        %2165 = vmatpush.xpose.msra.mxu0 0.0
        %2166 = vmatpush.xpose.msra.mxu0 0.0
        %2167 = vmatpush.xpose.msra.mxu0 0.0
        %2168 = vmatpush.xpose.msra.mxu0 %v281
        %2169 = vmatmul.f32.gmra.mxu0 %v281
        %v2170 = vpop.f32.mrf.mxu0
        %v2171 = vadd.f32 %v2151, %v2170
        %2172 = vdwg.mxu0
        %2173 = vmatpush.xpose.msra.mxu0 0.0
        %2174 = vmatpush.xpose.msra.mxu0 0.0
        %2175 = vmatpush.xpose.msra.mxu0 0.0
        %2176 = vmatpush.xpose.msra.mxu0 0.0
        %2177 = vmatpush.xpose.msra.mxu0 0.0
        %2178 = vmatpush.xpose.msra.mxu0 0.0
        %2179 = vmatpush.xpose.msra.mxu0 0.0
        %2180 = vmatpush.xpose.msra.mxu0 0.0
        %2181 = vmatpush.xpose.msra.mxu0 0.0
        %2182 = vmatpush.xpose.msra.mxu0 0.0
        %2183 = vmatpush.xpose.msra.mxu0 0.0
        %2184 = vmatpush.xpose.msra.mxu0 0.0
        %2185 = vmatpush.xpose.msra.mxu0 0.0
        %2186 = vmatpush.xpose.msra.mxu0 0.0
        %2187 = vmatpush.xpose.msra.mxu0 0.0
        %2188 = vmatpush.xpose.msra.mxu0 %v282
        %2189 = vmatmul.f32.gmra.mxu0 %v282
        %v2190 = vpop.f32.mrf.mxu0
        %v2191 = vadd.f32 %v2171, %v2190
        %2192 = vdwg.mxu0
        %2193 = vmatpush.xpose.msra.mxu0 0.0
        %2194 = vmatpush.xpose.msra.mxu0 0.0
        %2195 = vmatpush.xpose.msra.mxu0 0.0
        %2196 = vmatpush.xpose.msra.mxu0 0.0
        %2197 = vmatpush.xpose.msra.mxu0 0.0
        %2198 = vmatpush.xpose.msra.mxu0 0.0
        %2199 = vmatpush.xpose.msra.mxu0 0.0
        %2200 = vmatpush.xpose.msra.mxu0 0.0
        %2201 = vmatpush.xpose.msra.mxu0 0.0
        %2202 = vmatpush.xpose.msra.mxu0 0.0
        %2203 = vmatpush.xpose.msra.mxu0 0.0
        %2204 = vmatpush.xpose.msra.mxu0 0.0
        %2205 = vmatpush.xpose.msra.mxu0 0.0
        %2206 = vmatpush.xpose.msra.mxu0 0.0
        %2207 = vmatpush.xpose.msra.mxu0 0.0
        %2208 = vmatpush.xpose.msra.mxu0 %v283
        %2209 = vmatmul.f32.gmra.mxu0 %v283
        %v2210 = vpop.f32.mrf.mxu0
        %v2211 = vadd.f32 %v2191, %v2210
        %2212 = vdwg.mxu0
        %2213 = vmatpush.xpose.msra.mxu0 0.0
        %2214 = vmatpush.xpose.msra.mxu0 0.0
        %2215 = vmatpush.xpose.msra.mxu0 0.0
        %2216 = vmatpush.xpose.msra.mxu0 0.0
        %2217 = vmatpush.xpose.msra.mxu0 0.0
        %2218 = vmatpush.xpose.msra.mxu0 0.0
        %2219 = vmatpush.xpose.msra.mxu0 0.0
        %2220 = vmatpush.xpose.msra.mxu0 0.0
        %2221 = vmatpush.xpose.msra.mxu0 0.0
        %2222 = vmatpush.xpose.msra.mxu0 0.0
        %2223 = vmatpush.xpose.msra.mxu0 0.0
        %2224 = vmatpush.xpose.msra.mxu0 0.0
        %2225 = vmatpush.xpose.msra.mxu0 0.0
        %2226 = vmatpush.xpose.msra.mxu0 0.0
        %2227 = vmatpush.xpose.msra.mxu0 0.0
        %2228 = vmatpush.xpose.msra.mxu0 %v284
        %2229 = vmatmul.f32.gmra.mxu0 %v284
        %v2230 = vpop.f32.mrf.mxu0
        %v2231 = vadd.f32 %v2211, %v2230
        %2232 = vdwg.mxu0
        %2233 = vmatpush.xpose.msra.mxu0 0.0
        %2234 = vmatpush.xpose.msra.mxu0 0.0
        %2235 = vmatpush.xpose.msra.mxu0 0.0
        %2236 = vmatpush.xpose.msra.mxu0 0.0
        %2237 = vmatpush.xpose.msra.mxu0 0.0
        %2238 = vmatpush.xpose.msra.mxu0 0.0
        %2239 = vmatpush.xpose.msra.mxu0 0.0
        %2240 = vmatpush.xpose.msra.mxu0 0.0
        %2241 = vmatpush.xpose.msra.mxu0 0.0
        %2242 = vmatpush.xpose.msra.mxu0 0.0
        %2243 = vmatpush.xpose.msra.mxu0 0.0
        %2244 = vmatpush.xpose.msra.mxu0 0.0
        %2245 = vmatpush.xpose.msra.mxu0 0.0
        %2246 = vmatpush.xpose.msra.mxu0 0.0
        %2247 = vmatpush.xpose.msra.mxu0 0.0
        %2248 = vmatpush.xpose.msra.mxu0 %v285
        %2249 = vmatmul.f32.gmra.mxu0 %v285
        %v2250 = vpop.f32.mrf.mxu0
        %v2251 = vadd.f32 %v2231, %v2250
        %2252 = vdwg.mxu0
        %2253 = vmatpush.xpose.msra.mxu0 0.0
        %2254 = vmatpush.xpose.msra.mxu0 0.0
        %2255 = vmatpush.xpose.msra.mxu0 0.0
        %2256 = vmatpush.xpose.msra.mxu0 0.0
        %2257 = vmatpush.xpose.msra.mxu0 0.0
        %2258 = vmatpush.xpose.msra.mxu0 0.0
        %2259 = vmatpush.xpose.msra.mxu0 0.0
        %2260 = vmatpush.xpose.msra.mxu0 0.0
        %2261 = vmatpush.xpose.msra.mxu0 0.0
        %2262 = vmatpush.xpose.msra.mxu0 0.0
        %2263 = vmatpush.xpose.msra.mxu0 0.0
        %2264 = vmatpush.xpose.msra.mxu0 0.0
        %2265 = vmatpush.xpose.msra.mxu0 0.0
        %2266 = vmatpush.xpose.msra.mxu0 0.0
        %2267 = vmatpush.xpose.msra.mxu0 0.0
        %2268 = vmatpush.xpose.msra.mxu0 %v286
        %2269 = vmatmul.f32.gmra.mxu0 %v286
        %v2270 = vpop.f32.mrf.mxu0
        %v2271 = vadd.f32 %v2251, %v2270
        %2272 = vdwg.mxu0
        %2273 = vmatpush.xpose.msra.mxu0 0.0
        %2274 = vmatpush.xpose.msra.mxu0 0.0
        %2275 = vmatpush.xpose.msra.mxu0 0.0
        %2276 = vmatpush.xpose.msra.mxu0 0.0
        %2277 = vmatpush.xpose.msra.mxu0 0.0
        %2278 = vmatpush.xpose.msra.mxu0 0.0
        %2279 = vmatpush.xpose.msra.mxu0 0.0
        %2280 = vmatpush.xpose.msra.mxu0 0.0
        %2281 = vmatpush.xpose.msra.mxu0 0.0
        %2282 = vmatpush.xpose.msra.mxu0 0.0
        %2283 = vmatpush.xpose.msra.mxu0 0.0
        %2284 = vmatpush.xpose.msra.mxu0 0.0
        %2285 = vmatpush.xpose.msra.mxu0 0.0
        %2286 = vmatpush.xpose.msra.mxu0 0.0
        %2287 = vmatpush.xpose.msra.mxu0 0.0
        %2288 = vmatpush.xpose.msra.mxu0 %v287
        %2289 = vmatmul.f32.gmra.mxu0 %v287
        %v2290 = vpop.f32.mrf.mxu0
        %v2291 = vadd.f32 %v2271, %v2290
        %2292 = vdwg.mxu0
        %2293 = vmatpush.xpose.msra.mxu0 0.0
        %2294 = vmatpush.xpose.msra.mxu0 0.0
        %2295 = vmatpush.xpose.msra.mxu0 0.0
        %2296 = vmatpush.xpose.msra.mxu0 0.0
        %2297 = vmatpush.xpose.msra.mxu0 0.0
        %2298 = vmatpush.xpose.msra.mxu0 0.0
        %2299 = vmatpush.xpose.msra.mxu0 0.0
        %2300 = vmatpush.xpose.msra.mxu0 0.0
        %2301 = vmatpush.xpose.msra.mxu0 0.0
        %2302 = vmatpush.xpose.msra.mxu0 0.0
        %2303 = vmatpush.xpose.msra.mxu0 0.0
        %2304 = vmatpush.xpose.msra.mxu0 0.0
        %2305 = vmatpush.xpose.msra.mxu0 0.0
        %2306 = vmatpush.xpose.msra.mxu0 0.0
        %2307 = vmatpush.xpose.msra.mxu0 0.0
        %2308 = vmatpush.xpose.msra.mxu0 %v288
        %2309 = vmatmul.f32.gmra.mxu0 %v288
        %v2310 = vpop.f32.mrf.mxu0
        %v2311 = vadd.f32 %v2291, %v2310
        %2312 = vdwg.mxu0
        %2313 = vmatpush.xpose.msra.mxu0 0.0
        %2314 = vmatpush.xpose.msra.mxu0 0.0
        %2315 = vmatpush.xpose.msra.mxu0 0.0
        %2316 = vmatpush.xpose.msra.mxu0 0.0
        %2317 = vmatpush.xpose.msra.mxu0 0.0
        %2318 = vmatpush.xpose.msra.mxu0 0.0
        %2319 = vmatpush.xpose.msra.mxu0 0.0
        %2320 = vmatpush.xpose.msra.mxu0 0.0
        %2321 = vmatpush.xpose.msra.mxu0 0.0
        %2322 = vmatpush.xpose.msra.mxu0 0.0
        %2323 = vmatpush.xpose.msra.mxu0 0.0
        %2324 = vmatpush.xpose.msra.mxu0 0.0
        %2325 = vmatpush.xpose.msra.mxu0 0.0
        %2326 = vmatpush.xpose.msra.mxu0 0.0
        %2327 = vmatpush.xpose.msra.mxu0 0.0
        %2328 = vmatpush.xpose.msra.mxu0 %v289
        %2329 = vmatmul.f32.gmra.mxu0 %v289
        %v2330 = vpop.f32.mrf.mxu0
        %v2331 = vadd.f32 %v2311, %v2330
        %2332 = vdwg.mxu0
        %2333 = vmatpush.xpose.msra.mxu0 0.0
        %2334 = vmatpush.xpose.msra.mxu0 0.0
        %2335 = vmatpush.xpose.msra.mxu0 0.0
        %2336 = vmatpush.xpose.msra.mxu0 0.0
        %2337 = vmatpush.xpose.msra.mxu0 0.0
        %2338 = vmatpush.xpose.msra.mxu0 0.0
        %2339 = vmatpush.xpose.msra.mxu0 0.0
        %2340 = vmatpush.xpose.msra.mxu0 0.0
        %2341 = vmatpush.xpose.msra.mxu0 0.0
        %2342 = vmatpush.xpose.msra.mxu0 0.0
        %2343 = vmatpush.xpose.msra.mxu0 0.0
        %2344 = vmatpush.xpose.msra.mxu0 0.0
        %2345 = vmatpush.xpose.msra.mxu0 0.0
        %2346 = vmatpush.xpose.msra.mxu0 0.0
        %2347 = vmatpush.xpose.msra.mxu0 0.0
        %2348 = vmatpush.xpose.msra.mxu0 %v290
        %2349 = vmatmul.f32.gmra.mxu0 %v290
        %v2350 = vpop.f32.mrf.mxu0
        %v2351 = vadd.f32 %v2331, %v2350
        %2352 = vdwg.mxu0
        %2353 = vmatpush.xpose.msra.mxu0 0.0
        %2354 = vmatpush.xpose.msra.mxu0 0.0
        %2355 = vmatpush.xpose.msra.mxu0 0.0
        %2356 = vmatpush.xpose.msra.mxu0 0.0
        %2357 = vmatpush.xpose.msra.mxu0 0.0
        %2358 = vmatpush.xpose.msra.mxu0 0.0
        %2359 = vmatpush.xpose.msra.mxu0 0.0
        %2360 = vmatpush.xpose.msra.mxu0 0.0
        %2361 = vmatpush.xpose.msra.mxu0 0.0
        %2362 = vmatpush.xpose.msra.mxu0 0.0
        %2363 = vmatpush.xpose.msra.mxu0 0.0
        %2364 = vmatpush.xpose.msra.mxu0 0.0
        %2365 = vmatpush.xpose.msra.mxu0 0.0
        %2366 = vmatpush.xpose.msra.mxu0 0.0
        %2367 = vmatpush.xpose.msra.mxu0 0.0
        %2368 = vmatpush.xpose.msra.mxu0 %v291
        %2369 = vmatmul.f32.gmra.mxu0 %v291
        %v2370 = vpop.f32.mrf.mxu0
        %v2371 = vadd.f32 %v2351, %v2370
        %2372 = vdwg.mxu0
        %2373 = vmatpush.xpose.msra.mxu0 0.0
        %2374 = vmatpush.xpose.msra.mxu0 0.0
        %2375 = vmatpush.xpose.msra.mxu0 0.0
        %2376 = vmatpush.xpose.msra.mxu0 0.0
        %2377 = vmatpush.xpose.msra.mxu0 0.0
        %2378 = vmatpush.xpose.msra.mxu0 0.0
        %2379 = vmatpush.xpose.msra.mxu0 0.0
        %2380 = vmatpush.xpose.msra.mxu0 0.0
        %2381 = vmatpush.xpose.msra.mxu0 0.0
        %2382 = vmatpush.xpose.msra.mxu0 0.0
        %2383 = vmatpush.xpose.msra.mxu0 0.0
        %2384 = vmatpush.xpose.msra.mxu0 0.0
        %2385 = vmatpush.xpose.msra.mxu0 0.0
        %2386 = vmatpush.xpose.msra.mxu0 0.0
        %2387 = vmatpush.xpose.msra.mxu0 0.0
        %2388 = vmatpush.xpose.msra.mxu0 %v292
        %2389 = vmatmul.f32.gmra.mxu0 %v292
        %v2390 = vpop.f32.mrf.mxu0
        %v2391 = vadd.f32 %v2371, %v2390
        %2392 = vdwg.mxu0
        %2393 = vmatpush.xpose.msra.mxu0 0.0
        %2394 = vmatpush.xpose.msra.mxu0 0.0
        %2395 = vmatpush.xpose.msra.mxu0 0.0
        %2396 = vmatpush.xpose.msra.mxu0 0.0
        %2397 = vmatpush.xpose.msra.mxu0 0.0
        %2398 = vmatpush.xpose.msra.mxu0 0.0
        %2399 = vmatpush.xpose.msra.mxu0 0.0
        %2400 = vmatpush.xpose.msra.mxu0 0.0
        %2401 = vmatpush.xpose.msra.mxu0 0.0
        %2402 = vmatpush.xpose.msra.mxu0 0.0
        %2403 = vmatpush.xpose.msra.mxu0 0.0
        %2404 = vmatpush.xpose.msra.mxu0 0.0
        %2405 = vmatpush.xpose.msra.mxu0 0.0
        %2406 = vmatpush.xpose.msra.mxu0 0.0
        %2407 = vmatpush.xpose.msra.mxu0 0.0
        %2408 = vmatpush.xpose.msra.mxu0 %v293
        %2409 = vmatmul.f32.gmra.mxu0 %v293
        %v2410 = vpop.f32.mrf.mxu0
        %v2411 = vadd.f32 %v2391, %v2410
        %2412 = vdwg.mxu0
        %2413 = vmatpush.xpose.msra.mxu0 0.0
        %2414 = vmatpush.xpose.msra.mxu0 0.0
        %2415 = vmatpush.xpose.msra.mxu0 0.0
        %2416 = vmatpush.xpose.msra.mxu0 0.0
        %2417 = vmatpush.xpose.msra.mxu0 0.0
        %2418 = vmatpush.xpose.msra.mxu0 0.0
        %2419 = vmatpush.xpose.msra.mxu0 0.0
        %2420 = vmatpush.xpose.msra.mxu0 0.0
        %2421 = vmatpush.xpose.msra.mxu0 0.0
        %2422 = vmatpush.xpose.msra.mxu0 0.0
        %2423 = vmatpush.xpose.msra.mxu0 0.0
        %2424 = vmatpush.xpose.msra.mxu0 0.0
        %2425 = vmatpush.xpose.msra.mxu0 0.0
        %2426 = vmatpush.xpose.msra.mxu0 0.0
        %2427 = vmatpush.xpose.msra.mxu0 0.0
        %2428 = vmatpush.xpose.msra.mxu0 %v294
        %2429 = vmatmul.f32.gmra.mxu0 %v294
        %v2430 = vpop.f32.mrf.mxu0
        %v2431 = vadd.f32 %v2411, %v2430
        %2432 = vdwg.mxu0
        %2433 = vmatpush.xpose.msra.mxu0 0.0
        %2434 = vmatpush.xpose.msra.mxu0 0.0
        %2435 = vmatpush.xpose.msra.mxu0 0.0
        %2436 = vmatpush.xpose.msra.mxu0 0.0
        %2437 = vmatpush.xpose.msra.mxu0 0.0
        %2438 = vmatpush.xpose.msra.mxu0 0.0
        %2439 = vmatpush.xpose.msra.mxu0 0.0
        %2440 = vmatpush.xpose.msra.mxu0 0.0
        %2441 = vmatpush.xpose.msra.mxu0 0.0
        %2442 = vmatpush.xpose.msra.mxu0 0.0
        %2443 = vmatpush.xpose.msra.mxu0 0.0
        %2444 = vmatpush.xpose.msra.mxu0 0.0
        %2445 = vmatpush.xpose.msra.mxu0 0.0
        %2446 = vmatpush.xpose.msra.mxu0 0.0
        %2447 = vmatpush.xpose.msra.mxu0 0.0
        %2448 = vmatpush.xpose.msra.mxu0 %v295
        %2449 = vmatmul.f32.gmra.mxu0 %v295
        %v2450 = vpop.f32.mrf.mxu0
        %v2451 = vadd.f32 %v2431, %v2450
        %2452 = vdwg.mxu0
        %2453 = vmatpush.xpose.msra.mxu0 0.0
        %2454 = vmatpush.xpose.msra.mxu0 0.0
        %2455 = vmatpush.xpose.msra.mxu0 0.0
        %2456 = vmatpush.xpose.msra.mxu0 0.0
        %2457 = vmatpush.xpose.msra.mxu0 0.0
        %2458 = vmatpush.xpose.msra.mxu0 0.0
        %2459 = vmatpush.xpose.msra.mxu0 0.0
        %2460 = vmatpush.xpose.msra.mxu0 0.0
        %2461 = vmatpush.xpose.msra.mxu0 0.0
        %2462 = vmatpush.xpose.msra.mxu0 0.0
        %2463 = vmatpush.xpose.msra.mxu0 0.0
        %2464 = vmatpush.xpose.msra.mxu0 0.0
        %2465 = vmatpush.xpose.msra.mxu0 0.0
        %2466 = vmatpush.xpose.msra.mxu0 0.0
        %2467 = vmatpush.xpose.msra.mxu0 0.0
        %2468 = vmatpush.xpose.msra.mxu0 %v296
        %2469 = vmatmul.f32.gmra.mxu0 %v296
        %v2470 = vpop.f32.mrf.mxu0
        %v2471 = vadd.f32 %v2451, %v2470
        %2472 = vdwg.mxu0
        %2473 = vmatpush.xpose.msra.mxu0 0.0
        %2474 = vmatpush.xpose.msra.mxu0 0.0
        %2475 = vmatpush.xpose.msra.mxu0 0.0
        %2476 = vmatpush.xpose.msra.mxu0 0.0
        %2477 = vmatpush.xpose.msra.mxu0 0.0
        %2478 = vmatpush.xpose.msra.mxu0 0.0
        %2479 = vmatpush.xpose.msra.mxu0 0.0
        %2480 = vmatpush.xpose.msra.mxu0 0.0
        %2481 = vmatpush.xpose.msra.mxu0 0.0
        %2482 = vmatpush.xpose.msra.mxu0 0.0
        %2483 = vmatpush.xpose.msra.mxu0 0.0
        %2484 = vmatpush.xpose.msra.mxu0 0.0
        %2485 = vmatpush.xpose.msra.mxu0 0.0
        %2486 = vmatpush.xpose.msra.mxu0 0.0
        %2487 = vmatpush.xpose.msra.mxu0 0.0
        %2488 = vmatpush.xpose.msra.mxu0 %v297
        %2489 = vmatmul.f32.gmra.mxu0 %v297
        %v2490 = vpop.f32.mrf.mxu0
        %v2491 = vadd.f32 %v2471, %v2490
        %2492 = vdwg.mxu0
        %2493 = vmatpush.xpose.msra.mxu0 0.0
        %2494 = vmatpush.xpose.msra.mxu0 0.0
        %2495 = vmatpush.xpose.msra.mxu0 0.0
        %2496 = vmatpush.xpose.msra.mxu0 0.0
        %2497 = vmatpush.xpose.msra.mxu0 0.0
        %2498 = vmatpush.xpose.msra.mxu0 0.0
        %2499 = vmatpush.xpose.msra.mxu0 0.0
        %2500 = vmatpush.xpose.msra.mxu0 0.0
        %2501 = vmatpush.xpose.msra.mxu0 0.0
        %2502 = vmatpush.xpose.msra.mxu0 0.0
        %2503 = vmatpush.xpose.msra.mxu0 0.0
        %2504 = vmatpush.xpose.msra.mxu0 0.0
        %2505 = vmatpush.xpose.msra.mxu0 0.0
        %2506 = vmatpush.xpose.msra.mxu0 0.0
        %2507 = vmatpush.xpose.msra.mxu0 0.0
        %2508 = vmatpush.xpose.msra.mxu0 %v298
        %2509 = vmatmul.f32.gmra.mxu0 %v298
        %v2510 = vpop.f32.mrf.mxu0
        %v2511 = vadd.f32 %v2491, %v2510
        %2512 = vdwg.mxu0
        %2513 = vmatpush.xpose.msra.mxu0 0.0
        %2514 = vmatpush.xpose.msra.mxu0 0.0
        %2515 = vmatpush.xpose.msra.mxu0 0.0
        %2516 = vmatpush.xpose.msra.mxu0 0.0
        %2517 = vmatpush.xpose.msra.mxu0 0.0
        %2518 = vmatpush.xpose.msra.mxu0 0.0
        %2519 = vmatpush.xpose.msra.mxu0 0.0
        %2520 = vmatpush.xpose.msra.mxu0 0.0
        %2521 = vmatpush.xpose.msra.mxu0 0.0
        %2522 = vmatpush.xpose.msra.mxu0 0.0
        %2523 = vmatpush.xpose.msra.mxu0 0.0
        %2524 = vmatpush.xpose.msra.mxu0 0.0
        %2525 = vmatpush.xpose.msra.mxu0 0.0
        %2526 = vmatpush.xpose.msra.mxu0 0.0
        %2527 = vmatpush.xpose.msra.mxu0 0.0
        %2528 = vmatpush.xpose.msra.mxu0 %v299
        %2529 = vmatmul.f32.gmra.mxu0 %v299
        %v2530 = vpop.f32.mrf.mxu0
        %v2531 = vadd.f32 %v2511, %v2530
        %2532 = vdwg.mxu0
        %2533 = vmatpush.xpose.msra.mxu0 0.0
        %2534 = vmatpush.xpose.msra.mxu0 0.0
        %2535 = vmatpush.xpose.msra.mxu0 0.0
        %2536 = vmatpush.xpose.msra.mxu0 0.0
        %2537 = vmatpush.xpose.msra.mxu0 0.0
        %2538 = vmatpush.xpose.msra.mxu0 0.0
        %2539 = vmatpush.xpose.msra.mxu0 0.0
        %2540 = vmatpush.xpose.msra.mxu0 0.0
        %2541 = vmatpush.xpose.msra.mxu0 0.0
        %2542 = vmatpush.xpose.msra.mxu0 0.0
        %2543 = vmatpush.xpose.msra.mxu0 0.0
        %2544 = vmatpush.xpose.msra.mxu0 0.0
        %2545 = vmatpush.xpose.msra.mxu0 0.0
        %2546 = vmatpush.xpose.msra.mxu0 0.0
        %2547 = vmatpush.xpose.msra.mxu0 0.0
        %2548 = vmatpush.xpose.msra.mxu0 %v300
        %2549 = vmatmul.f32.gmra.mxu0 %v300
        %v2550 = vpop.f32.mrf.mxu0
        %v2551 = vadd.f32 %v2531, %v2550
        %2552 = vdwg.mxu0
        %2553 = vmatpush.xpose.msra.mxu0 0.0
        %2554 = vmatpush.xpose.msra.mxu0 0.0
        %2555 = vmatpush.xpose.msra.mxu0 0.0
        %2556 = vmatpush.xpose.msra.mxu0 0.0
        %2557 = vmatpush.xpose.msra.mxu0 0.0
        %2558 = vmatpush.xpose.msra.mxu0 0.0
        %2559 = vmatpush.xpose.msra.mxu0 0.0
        %2560 = vmatpush.xpose.msra.mxu0 0.0
        %2561 = vmatpush.xpose.msra.mxu0 0.0
        %2562 = vmatpush.xpose.msra.mxu0 0.0
        %2563 = vmatpush.xpose.msra.mxu0 0.0
        %2564 = vmatpush.xpose.msra.mxu0 0.0
        %2565 = vmatpush.xpose.msra.mxu0 0.0
        %2566 = vmatpush.xpose.msra.mxu0 0.0
        %2567 = vmatpush.xpose.msra.mxu0 0.0
        %2568 = vmatpush.xpose.msra.mxu0 %v301
        %2569 = vmatmul.f32.gmra.mxu0 %v301
        %v2570 = vpop.f32.mrf.mxu0
        %v2571 = vadd.f32 %v2551, %v2570
        %2572 = vdwg.mxu0
        %2573 = vmatpush.xpose.msra.mxu0 0.0
        %2574 = vmatpush.xpose.msra.mxu0 0.0
        %2575 = vmatpush.xpose.msra.mxu0 0.0
        %2576 = vmatpush.xpose.msra.mxu0 0.0
        %2577 = vmatpush.xpose.msra.mxu0 0.0
        %2578 = vmatpush.xpose.msra.mxu0 0.0
        %2579 = vmatpush.xpose.msra.mxu0 0.0
        %2580 = vmatpush.xpose.msra.mxu0 0.0
        %2581 = vmatpush.xpose.msra.mxu0 0.0
        %2582 = vmatpush.xpose.msra.mxu0 0.0
        %2583 = vmatpush.xpose.msra.mxu0 0.0
        %2584 = vmatpush.xpose.msra.mxu0 0.0
        %2585 = vmatpush.xpose.msra.mxu0 0.0
        %2586 = vmatpush.xpose.msra.mxu0 0.0
        %2587 = vmatpush.xpose.msra.mxu0 0.0
        %2588 = vmatpush.xpose.msra.mxu0 %v302
        %2589 = vmatmul.f32.gmra.mxu0 %v302
        %v2590 = vpop.f32.mrf.mxu0
        %v2591 = vadd.f32 %v2571, %v2590
        %2592 = vdwg.mxu0
        %2593 = vmatpush.xpose.msra.mxu0 0.0
        %2594 = vmatpush.xpose.msra.mxu0 0.0
        %2595 = vmatpush.xpose.msra.mxu0 0.0
        %2596 = vmatpush.xpose.msra.mxu0 0.0
        %2597 = vmatpush.xpose.msra.mxu0 0.0
        %2598 = vmatpush.xpose.msra.mxu0 0.0
        %2599 = vmatpush.xpose.msra.mxu0 0.0
        %2600 = vmatpush.xpose.msra.mxu0 0.0
        %2601 = vmatpush.xpose.msra.mxu0 0.0
        %2602 = vmatpush.xpose.msra.mxu0 0.0
        %2603 = vmatpush.xpose.msra.mxu0 0.0
        %2604 = vmatpush.xpose.msra.mxu0 0.0
        %2605 = vmatpush.xpose.msra.mxu0 0.0
        %2606 = vmatpush.xpose.msra.mxu0 0.0
        %2607 = vmatpush.xpose.msra.mxu0 0.0
        %2608 = vmatpush.xpose.msra.mxu0 %v303
        %2609 = vmatmul.f32.gmra.mxu0 %v303
        %v2610 = vpop.f32.mrf.mxu0
        %v2611 = vadd.f32 %v2591, %v2610
        %2612 = vdwg.mxu0
        %2613 = vmatpush.xpose.msra.mxu0 0.0
        %2614 = vmatpush.xpose.msra.mxu0 0.0
        %2615 = vmatpush.xpose.msra.mxu0 0.0
        %2616 = vmatpush.xpose.msra.mxu0 0.0
        %2617 = vmatpush.xpose.msra.mxu0 0.0
        %2618 = vmatpush.xpose.msra.mxu0 0.0
        %2619 = vmatpush.xpose.msra.mxu0 0.0
        %2620 = vmatpush.xpose.msra.mxu0 0.0
        %2621 = vmatpush.xpose.msra.mxu0 0.0
        %2622 = vmatpush.xpose.msra.mxu0 0.0
        %2623 = vmatpush.xpose.msra.mxu0 0.0
        %2624 = vmatpush.xpose.msra.mxu0 0.0
        %2625 = vmatpush.xpose.msra.mxu0 0.0
        %2626 = vmatpush.xpose.msra.mxu0 0.0
        %2627 = vmatpush.xpose.msra.mxu0 0.0
        %2628 = vmatpush.xpose.msra.mxu0 %v304
        %2629 = vmatmul.f32.gmra.mxu0 %v304
        %v2630 = vpop.f32.mrf.mxu0
        %v2631 = vadd.f32 %v2611, %v2630
        %2632 = vdwg.mxu0
        %2633 = vmatpush.xpose.msra.mxu0 0.0
        %2634 = vmatpush.xpose.msra.mxu0 0.0
        %2635 = vmatpush.xpose.msra.mxu0 0.0
        %2636 = vmatpush.xpose.msra.mxu0 0.0
        %2637 = vmatpush.xpose.msra.mxu0 0.0
        %2638 = vmatpush.xpose.msra.mxu0 0.0
        %2639 = vmatpush.xpose.msra.mxu0 0.0
        %2640 = vmatpush.xpose.msra.mxu0 0.0
        %2641 = vmatpush.xpose.msra.mxu0 0.0
        %2642 = vmatpush.xpose.msra.mxu0 0.0
        %2643 = vmatpush.xpose.msra.mxu0 0.0
        %2644 = vmatpush.xpose.msra.mxu0 0.0
        %2645 = vmatpush.xpose.msra.mxu0 0.0
        %2646 = vmatpush.xpose.msra.mxu0 0.0
        %2647 = vmatpush.xpose.msra.mxu0 0.0
        %2648 = vmatpush.xpose.msra.mxu0 %v305
        %2649 = vmatmul.f32.gmra.mxu0 %v305
        %v2650 = vpop.f32.mrf.mxu0
        %v2651 = vadd.f32 %v2631, %v2650
        %2652 = vdwg.mxu0
        %2653 = vmatpush.xpose.msra.mxu0 0.0
        %2654 = vmatpush.xpose.msra.mxu0 0.0
        %2655 = vmatpush.xpose.msra.mxu0 0.0
        %2656 = vmatpush.xpose.msra.mxu0 0.0
        %2657 = vmatpush.xpose.msra.mxu0 0.0
        %2658 = vmatpush.xpose.msra.mxu0 0.0
        %2659 = vmatpush.xpose.msra.mxu0 0.0
        %2660 = vmatpush.xpose.msra.mxu0 0.0
        %2661 = vmatpush.xpose.msra.mxu0 0.0
        %2662 = vmatpush.xpose.msra.mxu0 0.0
        %2663 = vmatpush.xpose.msra.mxu0 0.0
        %2664 = vmatpush.xpose.msra.mxu0 0.0
        %2665 = vmatpush.xpose.msra.mxu0 0.0
        %2666 = vmatpush.xpose.msra.mxu0 0.0
        %2667 = vmatpush.xpose.msra.mxu0 0.0
        %2668 = vmatpush.xpose.msra.mxu0 %v306
        %2669 = vmatmul.f32.gmra.mxu0 %v306
        %v2670 = vpop.f32.mrf.mxu0
        %v2671 = vadd.f32 %v2651, %v2670
        %2672 = vdwg.mxu0
        %2673 = vmatpush.xpose.msra.mxu0 0.0
        %2674 = vmatpush.xpose.msra.mxu0 0.0
        %2675 = vmatpush.xpose.msra.mxu0 0.0
        %2676 = vmatpush.xpose.msra.mxu0 0.0
        %2677 = vmatpush.xpose.msra.mxu0 0.0
        %2678 = vmatpush.xpose.msra.mxu0 0.0
        %2679 = vmatpush.xpose.msra.mxu0 0.0
        %2680 = vmatpush.xpose.msra.mxu0 0.0
        %2681 = vmatpush.xpose.msra.mxu0 0.0
        %2682 = vmatpush.xpose.msra.mxu0 0.0
        %2683 = vmatpush.xpose.msra.mxu0 0.0
        %2684 = vmatpush.xpose.msra.mxu0 0.0
        %2685 = vmatpush.xpose.msra.mxu0 0.0
        %2686 = vmatpush.xpose.msra.mxu0 0.0
        %2687 = vmatpush.xpose.msra.mxu0 0.0
        %2688 = vmatpush.xpose.msra.mxu0 %v307
        %2689 = vmatmul.f32.gmra.mxu0 %v307
        %v2690 = vpop.f32.mrf.mxu0
        %v2691 = vadd.f32 %v2671, %v2690
        %2692 = vdwg.mxu0
        %2693 = vmatpush.xpose.msra.mxu0 0.0
        %2694 = vmatpush.xpose.msra.mxu0 0.0
        %2695 = vmatpush.xpose.msra.mxu0 0.0
        %2696 = vmatpush.xpose.msra.mxu0 0.0
        %2697 = vmatpush.xpose.msra.mxu0 0.0
        %2698 = vmatpush.xpose.msra.mxu0 0.0
        %2699 = vmatpush.xpose.msra.mxu0 0.0
        %2700 = vmatpush.xpose.msra.mxu0 0.0
        %2701 = vmatpush.xpose.msra.mxu0 0.0
        %2702 = vmatpush.xpose.msra.mxu0 0.0
        %2703 = vmatpush.xpose.msra.mxu0 0.0
        %2704 = vmatpush.xpose.msra.mxu0 0.0
        %2705 = vmatpush.xpose.msra.mxu0 0.0
        %2706 = vmatpush.xpose.msra.mxu0 0.0
        %2707 = vmatpush.xpose.msra.mxu0 0.0
        %2708 = vmatpush.xpose.msra.mxu0 %v308
        %2709 = vmatmul.f32.gmra.mxu0 %v308
        %v2710 = vpop.f32.mrf.mxu0
        %v2711 = vadd.f32 %v2691, %v2710
        %2712 = vdwg.mxu0
        %2713 = vmatpush.xpose.msra.mxu0 0.0
        %2714 = vmatpush.xpose.msra.mxu0 0.0
        %2715 = vmatpush.xpose.msra.mxu0 0.0
        %2716 = vmatpush.xpose.msra.mxu0 0.0
        %2717 = vmatpush.xpose.msra.mxu0 0.0
        %2718 = vmatpush.xpose.msra.mxu0 0.0
        %2719 = vmatpush.xpose.msra.mxu0 0.0
        %2720 = vmatpush.xpose.msra.mxu0 0.0
        %2721 = vmatpush.xpose.msra.mxu0 0.0
        %2722 = vmatpush.xpose.msra.mxu0 0.0
        %2723 = vmatpush.xpose.msra.mxu0 0.0
        %2724 = vmatpush.xpose.msra.mxu0 0.0
        %2725 = vmatpush.xpose.msra.mxu0 0.0
        %2726 = vmatpush.xpose.msra.mxu0 0.0
        %2727 = vmatpush.xpose.msra.mxu0 0.0
        %2728 = vmatpush.xpose.msra.mxu0 %v309
        %2729 = vmatmul.f32.gmra.mxu0 %v309
        %v2730 = vpop.f32.mrf.mxu0
        %v2731 = vadd.f32 %v2711, %v2730
        %2732 = vdwg.mxu0
        %2733 = vmatpush.xpose.msra.mxu0 0.0
        %2734 = vmatpush.xpose.msra.mxu0 0.0
        %2735 = vmatpush.xpose.msra.mxu0 0.0
        %2736 = vmatpush.xpose.msra.mxu0 0.0
        %2737 = vmatpush.xpose.msra.mxu0 0.0
        %2738 = vmatpush.xpose.msra.mxu0 0.0
        %2739 = vmatpush.xpose.msra.mxu0 0.0
        %2740 = vmatpush.xpose.msra.mxu0 0.0
        %2741 = vmatpush.xpose.msra.mxu0 0.0
        %2742 = vmatpush.xpose.msra.mxu0 0.0
        %2743 = vmatpush.xpose.msra.mxu0 0.0
        %2744 = vmatpush.xpose.msra.mxu0 0.0
        %2745 = vmatpush.xpose.msra.mxu0 0.0
        %2746 = vmatpush.xpose.msra.mxu0 0.0
        %2747 = vmatpush.xpose.msra.mxu0 0.0
        %2748 = vmatpush.xpose.msra.mxu0 %v310
        %2749 = vmatmul.f32.gmra.mxu0 %v310
        %v2750 = vpop.f32.mrf.mxu0
        %v2751 = vadd.f32 %v2731, %v2750
        %2752 = vdwg.mxu0
        %2753 = vmatpush.xpose.msra.mxu0 0.0
        %2754 = vmatpush.xpose.msra.mxu0 0.0
        %2755 = vmatpush.xpose.msra.mxu0 0.0
        %2756 = vmatpush.xpose.msra.mxu0 0.0
        %2757 = vmatpush.xpose.msra.mxu0 0.0
        %2758 = vmatpush.xpose.msra.mxu0 0.0
        %2759 = vmatpush.xpose.msra.mxu0 0.0
        %2760 = vmatpush.xpose.msra.mxu0 0.0
        %2761 = vmatpush.xpose.msra.mxu0 0.0
        %2762 = vmatpush.xpose.msra.mxu0 0.0
        %2763 = vmatpush.xpose.msra.mxu0 0.0
        %2764 = vmatpush.xpose.msra.mxu0 0.0
        %2765 = vmatpush.xpose.msra.mxu0 0.0
        %2766 = vmatpush.xpose.msra.mxu0 0.0
        %2767 = vmatpush.xpose.msra.mxu0 0.0
        %2768 = vmatpush.xpose.msra.mxu0 %v311
        %2769 = vmatmul.f32.gmra.mxu0 %v311
        %v2770 = vpop.f32.mrf.mxu0
        %v2771 = vadd.f32 %v2751, %v2770
        %2772 = vdwg.mxu0
        %2773 = vmatpush.xpose.msra.mxu0 0.0
        %2774 = vmatpush.xpose.msra.mxu0 0.0
        %2775 = vmatpush.xpose.msra.mxu0 0.0
        %2776 = vmatpush.xpose.msra.mxu0 0.0
        %2777 = vmatpush.xpose.msra.mxu0 0.0
        %2778 = vmatpush.xpose.msra.mxu0 0.0
        %2779 = vmatpush.xpose.msra.mxu0 0.0
        %2780 = vmatpush.xpose.msra.mxu0 0.0
        %2781 = vmatpush.xpose.msra.mxu0 0.0
        %2782 = vmatpush.xpose.msra.mxu0 0.0
        %2783 = vmatpush.xpose.msra.mxu0 0.0
        %2784 = vmatpush.xpose.msra.mxu0 0.0
        %2785 = vmatpush.xpose.msra.mxu0 0.0
        %2786 = vmatpush.xpose.msra.mxu0 0.0
        %2787 = vmatpush.xpose.msra.mxu0 0.0
        %2788 = vmatpush.xpose.msra.mxu0 %v312
        %2789 = vmatmul.f32.gmra.mxu0 %v312
        %v2790 = vpop.f32.mrf.mxu0
        %v2791 = vadd.f32 %v2771, %v2790
        %2792 = vdwg.mxu0
        %2793 = vmatpush.xpose.msra.mxu0 0.0
        %2794 = vmatpush.xpose.msra.mxu0 0.0
        %2795 = vmatpush.xpose.msra.mxu0 0.0
        %2796 = vmatpush.xpose.msra.mxu0 0.0
        %2797 = vmatpush.xpose.msra.mxu0 0.0
        %2798 = vmatpush.xpose.msra.mxu0 0.0
        %2799 = vmatpush.xpose.msra.mxu0 0.0
        %2800 = vmatpush.xpose.msra.mxu0 0.0
        %2801 = vmatpush.xpose.msra.mxu0 0.0
        %2802 = vmatpush.xpose.msra.mxu0 0.0
        %2803 = vmatpush.xpose.msra.mxu0 0.0
        %2804 = vmatpush.xpose.msra.mxu0 0.0
        %2805 = vmatpush.xpose.msra.mxu0 0.0
        %2806 = vmatpush.xpose.msra.mxu0 0.0
        %2807 = vmatpush.xpose.msra.mxu0 0.0
        %2808 = vmatpush.xpose.msra.mxu0 %v313
        %2809 = vmatmul.f32.gmra.mxu0 %v313
        %v2810 = vpop.f32.mrf.mxu0
        %v2811 = vadd.f32 %v2791, %v2810
        %2812 = vdwg.mxu0
        %2813 = vmatpush.xpose.msra.mxu0 0.0
        %2814 = vmatpush.xpose.msra.mxu0 0.0
        %2815 = vmatpush.xpose.msra.mxu0 0.0
        %2816 = vmatpush.xpose.msra.mxu0 0.0
        %2817 = vmatpush.xpose.msra.mxu0 0.0
        %2818 = vmatpush.xpose.msra.mxu0 0.0
        %2819 = vmatpush.xpose.msra.mxu0 0.0
        %2820 = vmatpush.xpose.msra.mxu0 0.0
        %2821 = vmatpush.xpose.msra.mxu0 0.0
        %2822 = vmatpush.xpose.msra.mxu0 0.0
        %2823 = vmatpush.xpose.msra.mxu0 0.0
        %2824 = vmatpush.xpose.msra.mxu0 0.0
        %2825 = vmatpush.xpose.msra.mxu0 0.0
        %2826 = vmatpush.xpose.msra.mxu0 0.0
        %2827 = vmatpush.xpose.msra.mxu0 0.0
        %2828 = vmatpush.xpose.msra.mxu0 %v314
        %2829 = vmatmul.f32.gmra.mxu0 %v314
        %v2830 = vpop.f32.mrf.mxu0
        %v2831 = vadd.f32 %v2811, %v2830
        %2832 = vdwg.mxu0
        %2833 = vmatpush.xpose.msra.mxu0 0.0
        %2834 = vmatpush.xpose.msra.mxu0 0.0
        %2835 = vmatpush.xpose.msra.mxu0 0.0
        %2836 = vmatpush.xpose.msra.mxu0 0.0
        %2837 = vmatpush.xpose.msra.mxu0 0.0
        %2838 = vmatpush.xpose.msra.mxu0 0.0
        %2839 = vmatpush.xpose.msra.mxu0 0.0
        %2840 = vmatpush.xpose.msra.mxu0 0.0
        %2841 = vmatpush.xpose.msra.mxu0 0.0
        %2842 = vmatpush.xpose.msra.mxu0 0.0
        %2843 = vmatpush.xpose.msra.mxu0 0.0
        %2844 = vmatpush.xpose.msra.mxu0 0.0
        %2845 = vmatpush.xpose.msra.mxu0 0.0
        %2846 = vmatpush.xpose.msra.mxu0 0.0
        %2847 = vmatpush.xpose.msra.mxu0 0.0
        %2848 = vmatpush.xpose.msra.mxu0 %v315
        %2849 = vmatmul.f32.gmra.mxu0 %v315
        %v2850 = vpop.f32.mrf.mxu0
        %v2851 = vadd.f32 %v2831, %v2850
        %2852 = vdwg.mxu0
        %2853 = vmatpush.xpose.msra.mxu0 0.0
        %2854 = vmatpush.xpose.msra.mxu0 0.0
        %2855 = vmatpush.xpose.msra.mxu0 0.0
        %2856 = vmatpush.xpose.msra.mxu0 0.0
        %2857 = vmatpush.xpose.msra.mxu0 0.0
        %2858 = vmatpush.xpose.msra.mxu0 0.0
        %2859 = vmatpush.xpose.msra.mxu0 0.0
        %2860 = vmatpush.xpose.msra.mxu0 0.0
        %2861 = vmatpush.xpose.msra.mxu0 0.0
        %2862 = vmatpush.xpose.msra.mxu0 0.0
        %2863 = vmatpush.xpose.msra.mxu0 0.0
        %2864 = vmatpush.xpose.msra.mxu0 0.0
        %2865 = vmatpush.xpose.msra.mxu0 0.0
        %2866 = vmatpush.xpose.msra.mxu0 0.0
        %2867 = vmatpush.xpose.msra.mxu0 0.0
        %2868 = vmatpush.xpose.msra.mxu0 %v316
        %2869 = vmatmul.f32.gmra.mxu0 %v316
        %v2870 = vpop.f32.mrf.mxu0
        %v2871 = vadd.f32 %v2851, %v2870
        %2872 = vdwg.mxu0
        %2873 = vmatpush.xpose.msra.mxu0 0.0
        %2874 = vmatpush.xpose.msra.mxu0 0.0
        %2875 = vmatpush.xpose.msra.mxu0 0.0
        %2876 = vmatpush.xpose.msra.mxu0 0.0
        %2877 = vmatpush.xpose.msra.mxu0 0.0
        %2878 = vmatpush.xpose.msra.mxu0 0.0
        %2879 = vmatpush.xpose.msra.mxu0 0.0
        %2880 = vmatpush.xpose.msra.mxu0 0.0
        %2881 = vmatpush.xpose.msra.mxu0 0.0
        %2882 = vmatpush.xpose.msra.mxu0 0.0
        %2883 = vmatpush.xpose.msra.mxu0 0.0
        %2884 = vmatpush.xpose.msra.mxu0 0.0
        %2885 = vmatpush.xpose.msra.mxu0 0.0
        %2886 = vmatpush.xpose.msra.mxu0 0.0
        %2887 = vmatpush.xpose.msra.mxu0 0.0
        %2888 = vmatpush.xpose.msra.mxu0 %v317
        %2889 = vmatmul.f32.gmra.mxu0 %v317
        %v2890 = vpop.f32.mrf.mxu0
        %v2891 = vadd.f32 %v2871, %v2890
        %2892 = vdwg.mxu0
        %2893 = vmatpush.xpose.msra.mxu0 0.0
        %2894 = vmatpush.xpose.msra.mxu0 0.0
        %2895 = vmatpush.xpose.msra.mxu0 0.0
        %2896 = vmatpush.xpose.msra.mxu0 0.0
        %2897 = vmatpush.xpose.msra.mxu0 0.0
        %2898 = vmatpush.xpose.msra.mxu0 0.0
        %2899 = vmatpush.xpose.msra.mxu0 0.0
        %2900 = vmatpush.xpose.msra.mxu0 0.0
        %2901 = vmatpush.xpose.msra.mxu0 0.0
        %2902 = vmatpush.xpose.msra.mxu0 0.0
        %2903 = vmatpush.xpose.msra.mxu0 0.0
        %2904 = vmatpush.xpose.msra.mxu0 0.0
        %2905 = vmatpush.xpose.msra.mxu0 0.0
        %2906 = vmatpush.xpose.msra.mxu0 0.0
        %2907 = vmatpush.xpose.msra.mxu0 0.0
        %2908 = vmatpush.xpose.msra.mxu0 %v318
        %2909 = vmatmul.f32.gmra.mxu0 %v318
        %v2910 = vpop.f32.mrf.mxu0
        %v2911 = vadd.f32 %v2891, %v2910
        %2912 = vdwg.mxu0
        %2913 = vmatpush.xpose.msra.mxu0 0.0
        %2914 = vmatpush.xpose.msra.mxu0 0.0
        %2915 = vmatpush.xpose.msra.mxu0 0.0
        %2916 = vmatpush.xpose.msra.mxu0 0.0
        %2917 = vmatpush.xpose.msra.mxu0 0.0
        %2918 = vmatpush.xpose.msra.mxu0 0.0
        %2919 = vmatpush.xpose.msra.mxu0 0.0
        %2920 = vmatpush.xpose.msra.mxu0 0.0
        %2921 = vmatpush.xpose.msra.mxu0 0.0
        %2922 = vmatpush.xpose.msra.mxu0 0.0
        %2923 = vmatpush.xpose.msra.mxu0 0.0
        %2924 = vmatpush.xpose.msra.mxu0 0.0
        %2925 = vmatpush.xpose.msra.mxu0 0.0
        %2926 = vmatpush.xpose.msra.mxu0 0.0
        %2927 = vmatpush.xpose.msra.mxu0 0.0
        %2928 = vmatpush.xpose.msra.mxu0 %v319
        %2929 = vmatmul.f32.gmra.mxu0 %v319
        %v2930 = vpop.f32.mrf.mxu0
        %v2931 = vadd.f32 %v2911, %v2930
        %2932 = vdwg.mxu0
        %2933 = vmatpush.xpose.msra.mxu0 0.0
        %2934 = vmatpush.xpose.msra.mxu0 0.0
        %2935 = vmatpush.xpose.msra.mxu0 0.0
        %2936 = vmatpush.xpose.msra.mxu0 0.0
        %2937 = vmatpush.xpose.msra.mxu0 0.0
        %2938 = vmatpush.xpose.msra.mxu0 0.0
        %2939 = vmatpush.xpose.msra.mxu0 0.0
        %2940 = vmatpush.xpose.msra.mxu0 0.0
        %2941 = vmatpush.xpose.msra.mxu0 0.0
        %2942 = vmatpush.xpose.msra.mxu0 0.0
        %2943 = vmatpush.xpose.msra.mxu0 0.0
        %2944 = vmatpush.xpose.msra.mxu0 0.0
        %2945 = vmatpush.xpose.msra.mxu0 0.0
        %2946 = vmatpush.xpose.msra.mxu0 0.0
        %2947 = vmatpush.xpose.msra.mxu0 0.0
        %2948 = vmatpush.xpose.msra.mxu0 %v320
        %2949 = vmatmul.f32.gmra.mxu0 %v320
        %v2950 = vpop.f32.mrf.mxu0
        %v2951 = vadd.f32 %v2931, %v2950
        %2952 = vdwg.mxu0
        %2953 = vmatpush.xpose.msra.mxu0 0.0
        %2954 = vmatpush.xpose.msra.mxu0 0.0
        %2955 = vmatpush.xpose.msra.mxu0 0.0
        %2956 = vmatpush.xpose.msra.mxu0 0.0
        %2957 = vmatpush.xpose.msra.mxu0 0.0
        %2958 = vmatpush.xpose.msra.mxu0 0.0
        %2959 = vmatpush.xpose.msra.mxu0 0.0
        %2960 = vmatpush.xpose.msra.mxu0 0.0
        %2961 = vmatpush.xpose.msra.mxu0 0.0
        %2962 = vmatpush.xpose.msra.mxu0 0.0
        %2963 = vmatpush.xpose.msra.mxu0 0.0
        %2964 = vmatpush.xpose.msra.mxu0 0.0
        %2965 = vmatpush.xpose.msra.mxu0 0.0
        %2966 = vmatpush.xpose.msra.mxu0 0.0
        %2967 = vmatpush.xpose.msra.mxu0 0.0
        %2968 = vmatpush.xpose.msra.mxu0 %v321
        %2969 = vmatmul.f32.gmra.mxu0 %v321
        %v2970 = vpop.f32.mrf.mxu0
        %v2971 = vadd.f32 %v2951, %v2970
        %2972 = vdwg.mxu0
        %2973 = vmatpush.xpose.msra.mxu0 0.0
        %2974 = vmatpush.xpose.msra.mxu0 0.0
        %2975 = vmatpush.xpose.msra.mxu0 0.0
        %2976 = vmatpush.xpose.msra.mxu0 0.0
        %2977 = vmatpush.xpose.msra.mxu0 0.0
        %2978 = vmatpush.xpose.msra.mxu0 0.0
        %2979 = vmatpush.xpose.msra.mxu0 0.0
        %2980 = vmatpush.xpose.msra.mxu0 0.0
        %2981 = vmatpush.xpose.msra.mxu0 0.0
        %2982 = vmatpush.xpose.msra.mxu0 0.0
        %2983 = vmatpush.xpose.msra.mxu0 0.0
        %2984 = vmatpush.xpose.msra.mxu0 0.0
        %2985 = vmatpush.xpose.msra.mxu0 0.0
        %2986 = vmatpush.xpose.msra.mxu0 0.0
        %2987 = vmatpush.xpose.msra.mxu0 0.0
        %2988 = vmatpush.xpose.msra.mxu0 %v322
        %2989 = vmatmul.f32.gmra.mxu0 %v322
        %v2990 = vpop.f32.mrf.mxu0
        %v2991 = vadd.f32 %v2971, %v2990
        %2992 = vdwg.mxu0
        %2993 = vmatpush.xpose.msra.mxu0 0.0
        %2994 = vmatpush.xpose.msra.mxu0 0.0
        %2995 = vmatpush.xpose.msra.mxu0 0.0
        %2996 = vmatpush.xpose.msra.mxu0 0.0
        %2997 = vmatpush.xpose.msra.mxu0 0.0
        %2998 = vmatpush.xpose.msra.mxu0 0.0
        %2999 = vmatpush.xpose.msra.mxu0 0.0
        %3000 = vmatpush.xpose.msra.mxu0 0.0
        %3001 = vmatpush.xpose.msra.mxu0 0.0
        %3002 = vmatpush.xpose.msra.mxu0 0.0
        %3003 = vmatpush.xpose.msra.mxu0 0.0
        %3004 = vmatpush.xpose.msra.mxu0 0.0
        %3005 = vmatpush.xpose.msra.mxu0 0.0
        %3006 = vmatpush.xpose.msra.mxu0 0.0
        %3007 = vmatpush.xpose.msra.mxu0 0.0
        %3008 = vmatpush.xpose.msra.mxu0 %v323
        %3009 = vmatmul.f32.gmra.mxu0 %v323
        %v3010 = vpop.f32.mrf.mxu0
        %v3011 = vadd.f32 %v2991, %v3010
        %3012 = vdwg.mxu0
        %3013 = vmatpush.xpose.msra.mxu0 0.0
        %3014 = vmatpush.xpose.msra.mxu0 0.0
        %3015 = vmatpush.xpose.msra.mxu0 0.0
        %3016 = vmatpush.xpose.msra.mxu0 0.0
        %3017 = vmatpush.xpose.msra.mxu0 0.0
        %3018 = vmatpush.xpose.msra.mxu0 0.0
        %3019 = vmatpush.xpose.msra.mxu0 0.0
        %3020 = vmatpush.xpose.msra.mxu0 0.0
        %3021 = vmatpush.xpose.msra.mxu0 0.0
        %3022 = vmatpush.xpose.msra.mxu0 0.0
        %3023 = vmatpush.xpose.msra.mxu0 0.0
        %3024 = vmatpush.xpose.msra.mxu0 0.0
        %3025 = vmatpush.xpose.msra.mxu0 0.0
        %3026 = vmatpush.xpose.msra.mxu0 0.0
        %3027 = vmatpush.xpose.msra.mxu0 0.0
        %3028 = vmatpush.xpose.msra.mxu0 %v324
        %3029 = vmatmul.f32.gmra.mxu0 %v324
        %v3030 = vpop.f32.mrf.mxu0
        %v3031 = vadd.f32 %v3011, %v3030
        %3032 = vdwg.mxu0
        %3033 = vmatpush.xpose.msra.mxu0 0.0
        %3034 = vmatpush.xpose.msra.mxu0 0.0
        %3035 = vmatpush.xpose.msra.mxu0 0.0
        %3036 = vmatpush.xpose.msra.mxu0 0.0
        %3037 = vmatpush.xpose.msra.mxu0 0.0
        %3038 = vmatpush.xpose.msra.mxu0 0.0
        %3039 = vmatpush.xpose.msra.mxu0 0.0
        %3040 = vmatpush.xpose.msra.mxu0 0.0
        %3041 = vmatpush.xpose.msra.mxu0 0.0
        %3042 = vmatpush.xpose.msra.mxu0 0.0
        %3043 = vmatpush.xpose.msra.mxu0 0.0
        %3044 = vmatpush.xpose.msra.mxu0 0.0
        %3045 = vmatpush.xpose.msra.mxu0 0.0
        %3046 = vmatpush.xpose.msra.mxu0 0.0
        %3047 = vmatpush.xpose.msra.mxu0 0.0
        %3048 = vmatpush.xpose.msra.mxu0 %v325
        %3049 = vmatmul.f32.gmra.mxu0 %v325
        %v3050 = vpop.f32.mrf.mxu0
        %v3051 = vadd.f32 %v3031, %v3050
        %3052 = vdwg.mxu0
        %3053 = vmatpush.xpose.msra.mxu0 0.0
        %3054 = vmatpush.xpose.msra.mxu0 0.0
        %3055 = vmatpush.xpose.msra.mxu0 0.0
        %3056 = vmatpush.xpose.msra.mxu0 0.0
        %3057 = vmatpush.xpose.msra.mxu0 0.0
        %3058 = vmatpush.xpose.msra.mxu0 0.0
        %3059 = vmatpush.xpose.msra.mxu0 0.0
        %3060 = vmatpush.xpose.msra.mxu0 0.0
        %3061 = vmatpush.xpose.msra.mxu0 0.0
        %3062 = vmatpush.xpose.msra.mxu0 0.0
        %3063 = vmatpush.xpose.msra.mxu0 0.0
        %3064 = vmatpush.xpose.msra.mxu0 0.0
        %3065 = vmatpush.xpose.msra.mxu0 0.0
        %3066 = vmatpush.xpose.msra.mxu0 0.0
        %3067 = vmatpush.xpose.msra.mxu0 0.0
        %3068 = vmatpush.xpose.msra.mxu0 %v326
        %3069 = vmatmul.f32.gmra.mxu0 %v326
        %v3070 = vpop.f32.mrf.mxu0
        %v3071 = vadd.f32 %v3051, %v3070
        %3072 = vdwg.mxu0
        %3073 = vmatpush.xpose.msra.mxu0 0.0
        %3074 = vmatpush.xpose.msra.mxu0 0.0
        %3075 = vmatpush.xpose.msra.mxu0 0.0
        %3076 = vmatpush.xpose.msra.mxu0 0.0
        %3077 = vmatpush.xpose.msra.mxu0 0.0
        %3078 = vmatpush.xpose.msra.mxu0 0.0
        %3079 = vmatpush.xpose.msra.mxu0 0.0
        %3080 = vmatpush.xpose.msra.mxu0 0.0
        %3081 = vmatpush.xpose.msra.mxu0 0.0
        %3082 = vmatpush.xpose.msra.mxu0 0.0
        %3083 = vmatpush.xpose.msra.mxu0 0.0
        %3084 = vmatpush.xpose.msra.mxu0 0.0
        %3085 = vmatpush.xpose.msra.mxu0 0.0
        %3086 = vmatpush.xpose.msra.mxu0 0.0
        %3087 = vmatpush.xpose.msra.mxu0 0.0
        %3088 = vmatpush.xpose.msra.mxu0 %v327
        %3089 = vmatmul.f32.gmra.mxu0 %v327
        %v3090 = vpop.f32.mrf.mxu0
        %v3091 = vadd.f32 %v3071, %v3090
        %3092 = vdwg.mxu0
        %3093 = vmatpush.xpose.msra.mxu0 0.0
        %3094 = vmatpush.xpose.msra.mxu0 0.0
        %3095 = vmatpush.xpose.msra.mxu0 0.0
        %3096 = vmatpush.xpose.msra.mxu0 0.0
        %3097 = vmatpush.xpose.msra.mxu0 0.0
        %3098 = vmatpush.xpose.msra.mxu0 0.0
        %3099 = vmatpush.xpose.msra.mxu0 0.0
        %3100 = vmatpush.xpose.msra.mxu0 0.0
        %3101 = vmatpush.xpose.msra.mxu0 0.0
        %3102 = vmatpush.xpose.msra.mxu0 0.0
        %3103 = vmatpush.xpose.msra.mxu0 0.0
        %3104 = vmatpush.xpose.msra.mxu0 0.0
        %3105 = vmatpush.xpose.msra.mxu0 0.0
        %3106 = vmatpush.xpose.msra.mxu0 0.0
        %3107 = vmatpush.xpose.msra.mxu0 0.0
        %3108 = vmatpush.xpose.msra.mxu0 %v328
        %3109 = vmatmul.f32.gmra.mxu0 %v328
        %v3110 = vpop.f32.mrf.mxu0
        %v3111 = vadd.f32 %v3091, %v3110
        %3112 = vdwg.mxu0
        %3113 = vmatpush.xpose.msra.mxu0 0.0
        %3114 = vmatpush.xpose.msra.mxu0 0.0
        %3115 = vmatpush.xpose.msra.mxu0 0.0
        %3116 = vmatpush.xpose.msra.mxu0 0.0
        %3117 = vmatpush.xpose.msra.mxu0 0.0
        %3118 = vmatpush.xpose.msra.mxu0 0.0
        %3119 = vmatpush.xpose.msra.mxu0 0.0
        %3120 = vmatpush.xpose.msra.mxu0 0.0
        %3121 = vmatpush.xpose.msra.mxu0 0.0
        %3122 = vmatpush.xpose.msra.mxu0 0.0
        %3123 = vmatpush.xpose.msra.mxu0 0.0
        %3124 = vmatpush.xpose.msra.mxu0 0.0
        %3125 = vmatpush.xpose.msra.mxu0 0.0
        %3126 = vmatpush.xpose.msra.mxu0 0.0
        %3127 = vmatpush.xpose.msra.mxu0 0.0
        %3128 = vmatpush.xpose.msra.mxu0 %v329
        %3129 = vmatmul.f32.gmra.mxu0 %v329
        %v3130 = vpop.f32.mrf.mxu0
        %v3131 = vadd.f32 %v3111, %v3130
        %3132 = vdwg.mxu0
        %3133 = vmatpush.xpose.msra.mxu0 0.0
        %3134 = vmatpush.xpose.msra.mxu0 0.0
        %3135 = vmatpush.xpose.msra.mxu0 0.0
        %3136 = vmatpush.xpose.msra.mxu0 0.0
        %3137 = vmatpush.xpose.msra.mxu0 0.0
        %3138 = vmatpush.xpose.msra.mxu0 0.0
        %3139 = vmatpush.xpose.msra.mxu0 0.0
        %3140 = vmatpush.xpose.msra.mxu0 0.0
        %3141 = vmatpush.xpose.msra.mxu0 0.0
        %3142 = vmatpush.xpose.msra.mxu0 0.0
        %3143 = vmatpush.xpose.msra.mxu0 0.0
        %3144 = vmatpush.xpose.msra.mxu0 0.0
        %3145 = vmatpush.xpose.msra.mxu0 0.0
        %3146 = vmatpush.xpose.msra.mxu0 0.0
        %3147 = vmatpush.xpose.msra.mxu0 0.0
        %3148 = vmatpush.xpose.msra.mxu0 %v330
        %3149 = vmatmul.f32.gmra.mxu0 %v330
        %v3150 = vpop.f32.mrf.mxu0
        %v3151 = vadd.f32 %v3131, %v3150
        %3152 = vdwg.mxu0
        %3153 = vmatpush.xpose.msra.mxu0 0.0
        %3154 = vmatpush.xpose.msra.mxu0 0.0
        %3155 = vmatpush.xpose.msra.mxu0 0.0
        %3156 = vmatpush.xpose.msra.mxu0 0.0
        %3157 = vmatpush.xpose.msra.mxu0 0.0
        %3158 = vmatpush.xpose.msra.mxu0 0.0
        %3159 = vmatpush.xpose.msra.mxu0 0.0
        %3160 = vmatpush.xpose.msra.mxu0 0.0
        %3161 = vmatpush.xpose.msra.mxu0 0.0
        %3162 = vmatpush.xpose.msra.mxu0 0.0
        %3163 = vmatpush.xpose.msra.mxu0 0.0
        %3164 = vmatpush.xpose.msra.mxu0 0.0
        %3165 = vmatpush.xpose.msra.mxu0 0.0
        %3166 = vmatpush.xpose.msra.mxu0 0.0
        %3167 = vmatpush.xpose.msra.mxu0 0.0
        %3168 = vmatpush.xpose.msra.mxu0 %v331
        %3169 = vmatmul.f32.gmra.mxu0 %v331
        %v3170 = vpop.f32.mrf.mxu0
        %v3171 = vadd.f32 %v3151, %v3170
        %3172 = vdwg.mxu0
        %3173 = vmatpush.xpose.msra.mxu0 0.0
        %3174 = vmatpush.xpose.msra.mxu0 0.0
        %3175 = vmatpush.xpose.msra.mxu0 0.0
        %3176 = vmatpush.xpose.msra.mxu0 0.0
        %3177 = vmatpush.xpose.msra.mxu0 0.0
        %3178 = vmatpush.xpose.msra.mxu0 0.0
        %3179 = vmatpush.xpose.msra.mxu0 0.0
        %3180 = vmatpush.xpose.msra.mxu0 0.0
        %3181 = vmatpush.xpose.msra.mxu0 0.0
        %3182 = vmatpush.xpose.msra.mxu0 0.0
        %3183 = vmatpush.xpose.msra.mxu0 0.0
        %3184 = vmatpush.xpose.msra.mxu0 0.0
        %3185 = vmatpush.xpose.msra.mxu0 0.0
        %3186 = vmatpush.xpose.msra.mxu0 0.0
        %3187 = vmatpush.xpose.msra.mxu0 0.0
        %3188 = vmatpush.xpose.msra.mxu0 %v332
        %3189 = vmatmul.f32.gmra.mxu0 %v332
        %v3190 = vpop.f32.mrf.mxu0
        %v3191 = vadd.f32 %v3171, %v3190
        %3192 = vdwg.mxu0
        %3193 = vmatpush.xpose.msra.mxu0 0.0
        %3194 = vmatpush.xpose.msra.mxu0 0.0
        %3195 = vmatpush.xpose.msra.mxu0 0.0
        %3196 = vmatpush.xpose.msra.mxu0 0.0
        %3197 = vmatpush.xpose.msra.mxu0 0.0
        %3198 = vmatpush.xpose.msra.mxu0 0.0
        %3199 = vmatpush.xpose.msra.mxu0 0.0
        %3200 = vmatpush.xpose.msra.mxu0 0.0
        %3201 = vmatpush.xpose.msra.mxu0 0.0
        %3202 = vmatpush.xpose.msra.mxu0 0.0
        %3203 = vmatpush.xpose.msra.mxu0 0.0
        %3204 = vmatpush.xpose.msra.mxu0 0.0
        %3205 = vmatpush.xpose.msra.mxu0 0.0
        %3206 = vmatpush.xpose.msra.mxu0 0.0
        %3207 = vmatpush.xpose.msra.mxu0 0.0
        %3208 = vmatpush.xpose.msra.mxu0 %v333
        %3209 = vmatmul.f32.gmra.mxu0 %v333
        %v3210 = vpop.f32.mrf.mxu0
        %v3211 = vadd.f32 %v3191, %v3210
        %3212 = vdwg.mxu0
        %3213 = vmatpush.xpose.msra.mxu0 0.0
        %3214 = vmatpush.xpose.msra.mxu0 0.0
        %3215 = vmatpush.xpose.msra.mxu0 0.0
        %3216 = vmatpush.xpose.msra.mxu0 0.0
        %3217 = vmatpush.xpose.msra.mxu0 0.0
        %3218 = vmatpush.xpose.msra.mxu0 0.0
        %3219 = vmatpush.xpose.msra.mxu0 0.0
        %3220 = vmatpush.xpose.msra.mxu0 0.0
        %3221 = vmatpush.xpose.msra.mxu0 0.0
        %3222 = vmatpush.xpose.msra.mxu0 0.0
        %3223 = vmatpush.xpose.msra.mxu0 0.0
        %3224 = vmatpush.xpose.msra.mxu0 0.0
        %3225 = vmatpush.xpose.msra.mxu0 0.0
        %3226 = vmatpush.xpose.msra.mxu0 0.0
        %3227 = vmatpush.xpose.msra.mxu0 0.0
        %3228 = vmatpush.xpose.msra.mxu0 %v334
        %3229 = vmatmul.f32.gmra.mxu0 %v334
        %v3230 = vpop.f32.mrf.mxu0
        %v3231 = vadd.f32 %v3211, %v3230
        %3232 = vdwg.mxu0
        %3233 = vmatpush.xpose.msra.mxu0 0.0
        %3234 = vmatpush.xpose.msra.mxu0 0.0
        %3235 = vmatpush.xpose.msra.mxu0 0.0
        %3236 = vmatpush.xpose.msra.mxu0 0.0
        %3237 = vmatpush.xpose.msra.mxu0 0.0
        %3238 = vmatpush.xpose.msra.mxu0 0.0
        %3239 = vmatpush.xpose.msra.mxu0 0.0
        %3240 = vmatpush.xpose.msra.mxu0 0.0
        %3241 = vmatpush.xpose.msra.mxu0 0.0
        %3242 = vmatpush.xpose.msra.mxu0 0.0
        %3243 = vmatpush.xpose.msra.mxu0 0.0
        %3244 = vmatpush.xpose.msra.mxu0 0.0
        %3245 = vmatpush.xpose.msra.mxu0 0.0
        %3246 = vmatpush.xpose.msra.mxu0 0.0
        %3247 = vmatpush.xpose.msra.mxu0 0.0
        %3248 = vmatpush.xpose.msra.mxu0 %v335
        %3249 = vmatmul.f32.gmra.mxu0 %v335
        %v3250 = vpop.f32.mrf.mxu0
        %v3251 = vadd.f32 %v3231, %v3250
        %3252 = vdwg.mxu0
        %3253 = vmatpush.xpose.msra.mxu0 0.0
        %3254 = vmatpush.xpose.msra.mxu0 0.0
        %3255 = vmatpush.xpose.msra.mxu0 0.0
        %3256 = vmatpush.xpose.msra.mxu0 0.0
        %3257 = vmatpush.xpose.msra.mxu0 0.0
        %3258 = vmatpush.xpose.msra.mxu0 0.0
        %3259 = vmatpush.xpose.msra.mxu0 0.0
        %3260 = vmatpush.xpose.msra.mxu0 0.0
        %3261 = vmatpush.xpose.msra.mxu0 0.0
        %3262 = vmatpush.xpose.msra.mxu0 0.0
        %3263 = vmatpush.xpose.msra.mxu0 0.0
        %3264 = vmatpush.xpose.msra.mxu0 0.0
        %3265 = vmatpush.xpose.msra.mxu0 0.0
        %3266 = vmatpush.xpose.msra.mxu0 0.0
        %3267 = vmatpush.xpose.msra.mxu0 0.0
        %3268 = vmatpush.xpose.msra.mxu0 %v336
        %3269 = vmatmul.f32.gmra.mxu0 %v336
        %v3270 = vpop.f32.mrf.mxu0
        %v3271 = vadd.f32 %v3251, %v3270
        %3272 = vdwg.mxu0
        %3273 = vmatpush.xpose.msra.mxu0 0.0
        %3274 = vmatpush.xpose.msra.mxu0 0.0
        %3275 = vmatpush.xpose.msra.mxu0 0.0
        %3276 = vmatpush.xpose.msra.mxu0 0.0
        %3277 = vmatpush.xpose.msra.mxu0 0.0
        %3278 = vmatpush.xpose.msra.mxu0 0.0
        %3279 = vmatpush.xpose.msra.mxu0 0.0
        %3280 = vmatpush.xpose.msra.mxu0 0.0
        %3281 = vmatpush.xpose.msra.mxu0 0.0
        %3282 = vmatpush.xpose.msra.mxu0 0.0
        %3283 = vmatpush.xpose.msra.mxu0 0.0
        %3284 = vmatpush.xpose.msra.mxu0 0.0
        %3285 = vmatpush.xpose.msra.mxu0 0.0
        %3286 = vmatpush.xpose.msra.mxu0 0.0
        %3287 = vmatpush.xpose.msra.mxu0 0.0
        %3288 = vmatpush.xpose.msra.mxu0 %v337
        %3289 = vmatmul.f32.gmra.mxu0 %v337
        %v3290 = vpop.f32.mrf.mxu0
        %v3291 = vadd.f32 %v3271, %v3290
        %3292 = vdwg.mxu0
        %3293 = vmatpush.xpose.msra.mxu0 0.0
        %3294 = vmatpush.xpose.msra.mxu0 0.0
        %3295 = vmatpush.xpose.msra.mxu0 0.0
        %3296 = vmatpush.xpose.msra.mxu0 0.0
        %3297 = vmatpush.xpose.msra.mxu0 0.0
        %3298 = vmatpush.xpose.msra.mxu0 0.0
        %3299 = vmatpush.xpose.msra.mxu0 0.0
        %3300 = vmatpush.xpose.msra.mxu0 0.0
        %3301 = vmatpush.xpose.msra.mxu0 0.0
        %3302 = vmatpush.xpose.msra.mxu0 0.0
        %3303 = vmatpush.xpose.msra.mxu0 0.0
        %3304 = vmatpush.xpose.msra.mxu0 0.0
        %3305 = vmatpush.xpose.msra.mxu0 0.0
        %3306 = vmatpush.xpose.msra.mxu0 0.0
        %3307 = vmatpush.xpose.msra.mxu0 0.0
        %3308 = vmatpush.xpose.msra.mxu0 %v338
        %3309 = vmatmul.f32.gmra.mxu0 %v338
        %v3310 = vpop.f32.mrf.mxu0
        %v3311 = vadd.f32 %v3291, %v3310
        %3312 = vdwg.mxu0
        %3313 = vmatpush.xpose.msra.mxu0 0.0
        %3314 = vmatpush.xpose.msra.mxu0 0.0
        %3315 = vmatpush.xpose.msra.mxu0 0.0
        %3316 = vmatpush.xpose.msra.mxu0 0.0
        %3317 = vmatpush.xpose.msra.mxu0 0.0
        %3318 = vmatpush.xpose.msra.mxu0 0.0
        %3319 = vmatpush.xpose.msra.mxu0 0.0
        %3320 = vmatpush.xpose.msra.mxu0 0.0
        %3321 = vmatpush.xpose.msra.mxu0 0.0
        %3322 = vmatpush.xpose.msra.mxu0 0.0
        %3323 = vmatpush.xpose.msra.mxu0 0.0
        %3324 = vmatpush.xpose.msra.mxu0 0.0
        %3325 = vmatpush.xpose.msra.mxu0 0.0
        %3326 = vmatpush.xpose.msra.mxu0 0.0
        %3327 = vmatpush.xpose.msra.mxu0 0.0
        %3328 = vmatpush.xpose.msra.mxu0 %v339
        %3329 = vmatmul.f32.gmra.mxu0 %v339
        %v3330 = vpop.f32.mrf.mxu0
        %v3331 = vadd.f32 %v3311, %v3330
        %3332 = vdwg.mxu0
        %3333 = vmatpush.xpose.msra.mxu0 0.0
        %3334 = vmatpush.xpose.msra.mxu0 0.0
        %3335 = vmatpush.xpose.msra.mxu0 0.0
        %3336 = vmatpush.xpose.msra.mxu0 0.0
        %3337 = vmatpush.xpose.msra.mxu0 0.0
        %3338 = vmatpush.xpose.msra.mxu0 0.0
        %3339 = vmatpush.xpose.msra.mxu0 0.0
        %3340 = vmatpush.xpose.msra.mxu0 0.0
        %3341 = vmatpush.xpose.msra.mxu0 0.0
        %3342 = vmatpush.xpose.msra.mxu0 0.0
        %3343 = vmatpush.xpose.msra.mxu0 0.0
        %3344 = vmatpush.xpose.msra.mxu0 0.0
        %3345 = vmatpush.xpose.msra.mxu0 0.0
        %3346 = vmatpush.xpose.msra.mxu0 0.0
        %3347 = vmatpush.xpose.msra.mxu0 0.0
        %3348 = vmatpush.xpose.msra.mxu0 %v340
        %3349 = vmatmul.f32.gmra.mxu0 %v340
        %v3350 = vpop.f32.mrf.mxu0
        %v3351 = vadd.f32 %v3331, %v3350
        %3352 = vdwg.mxu0
        %3353 = vmatpush.xpose.msra.mxu0 0.0
        %3354 = vmatpush.xpose.msra.mxu0 0.0
        %3355 = vmatpush.xpose.msra.mxu0 0.0
        %3356 = vmatpush.xpose.msra.mxu0 0.0
        %3357 = vmatpush.xpose.msra.mxu0 0.0
        %3358 = vmatpush.xpose.msra.mxu0 0.0
        %3359 = vmatpush.xpose.msra.mxu0 0.0
        %3360 = vmatpush.xpose.msra.mxu0 0.0
        %3361 = vmatpush.xpose.msra.mxu0 0.0
        %3362 = vmatpush.xpose.msra.mxu0 0.0
        %3363 = vmatpush.xpose.msra.mxu0 0.0
        %3364 = vmatpush.xpose.msra.mxu0 0.0
        %3365 = vmatpush.xpose.msra.mxu0 0.0
        %3366 = vmatpush.xpose.msra.mxu0 0.0
        %3367 = vmatpush.xpose.msra.mxu0 0.0
        %3368 = vmatpush.xpose.msra.mxu0 %v341
        %3369 = vmatmul.f32.gmra.mxu0 %v341
        %v3370 = vpop.f32.mrf.mxu0
        %v3371 = vadd.f32 %v3351, %v3370
        %3372 = vdwg.mxu0
        %3373 = vmatpush.xpose.msra.mxu0 0.0
        %3374 = vmatpush.xpose.msra.mxu0 0.0
        %3375 = vmatpush.xpose.msra.mxu0 0.0
        %3376 = vmatpush.xpose.msra.mxu0 0.0
        %3377 = vmatpush.xpose.msra.mxu0 0.0
        %3378 = vmatpush.xpose.msra.mxu0 0.0
        %3379 = vmatpush.xpose.msra.mxu0 0.0
        %3380 = vmatpush.xpose.msra.mxu0 0.0
        %3381 = vmatpush.xpose.msra.mxu0 0.0
        %3382 = vmatpush.xpose.msra.mxu0 0.0
        %3383 = vmatpush.xpose.msra.mxu0 0.0
        %3384 = vmatpush.xpose.msra.mxu0 0.0
        %3385 = vmatpush.xpose.msra.mxu0 0.0
        %3386 = vmatpush.xpose.msra.mxu0 0.0
        %3387 = vmatpush.xpose.msra.mxu0 0.0
        %3388 = vmatpush.xpose.msra.mxu0 %v342
        %3389 = vmatmul.f32.gmra.mxu0 %v342
        %v3390 = vpop.f32.mrf.mxu0
        %v3391 = vadd.f32 %v3371, %v3390
        %3392 = vdwg.mxu0
        %3393 = vmatpush.xpose.msra.mxu0 0.0
        %3394 = vmatpush.xpose.msra.mxu0 0.0
        %3395 = vmatpush.xpose.msra.mxu0 0.0
        %3396 = vmatpush.xpose.msra.mxu0 0.0
        %3397 = vmatpush.xpose.msra.mxu0 0.0
        %3398 = vmatpush.xpose.msra.mxu0 0.0
        %3399 = vmatpush.xpose.msra.mxu0 0.0
        %3400 = vmatpush.xpose.msra.mxu0 0.0
        %3401 = vmatpush.xpose.msra.mxu0 0.0
        %3402 = vmatpush.xpose.msra.mxu0 0.0
        %3403 = vmatpush.xpose.msra.mxu0 0.0
        %3404 = vmatpush.xpose.msra.mxu0 0.0
        %3405 = vmatpush.xpose.msra.mxu0 0.0
        %3406 = vmatpush.xpose.msra.mxu0 0.0
        %3407 = vmatpush.xpose.msra.mxu0 0.0
        %3408 = vmatpush.xpose.msra.mxu0 %v343
        %3409 = vmatmul.f32.gmra.mxu0 %v343
        %v3410 = vpop.f32.mrf.mxu0
        %v3411 = vadd.f32 %v3391, %v3410
        %3412 = vdwg.mxu0
        %3413 = vmatpush.xpose.msra.mxu0 0.0
        %3414 = vmatpush.xpose.msra.mxu0 0.0
        %3415 = vmatpush.xpose.msra.mxu0 0.0
        %3416 = vmatpush.xpose.msra.mxu0 0.0
        %3417 = vmatpush.xpose.msra.mxu0 0.0
        %3418 = vmatpush.xpose.msra.mxu0 0.0
        %3419 = vmatpush.xpose.msra.mxu0 0.0
        %3420 = vmatpush.xpose.msra.mxu0 0.0
        %3421 = vmatpush.xpose.msra.mxu0 0.0
        %3422 = vmatpush.xpose.msra.mxu0 0.0
        %3423 = vmatpush.xpose.msra.mxu0 0.0
        %3424 = vmatpush.xpose.msra.mxu0 0.0
        %3425 = vmatpush.xpose.msra.mxu0 0.0
        %3426 = vmatpush.xpose.msra.mxu0 0.0
        %3427 = vmatpush.xpose.msra.mxu0 0.0
        %3428 = vmatpush.xpose.msra.mxu0 %v344
        %3429 = vmatmul.f32.gmra.mxu0 %v344
        %v3430 = vpop.f32.mrf.mxu0
        %v3431 = vadd.f32 %v3411, %v3430
        %3432 = vdwg.mxu0
        %3433 = vmatpush.xpose.msra.mxu0 0.0
        %3434 = vmatpush.xpose.msra.mxu0 0.0
        %3435 = vmatpush.xpose.msra.mxu0 0.0
        %3436 = vmatpush.xpose.msra.mxu0 0.0
        %3437 = vmatpush.xpose.msra.mxu0 0.0
        %3438 = vmatpush.xpose.msra.mxu0 0.0
        %3439 = vmatpush.xpose.msra.mxu0 0.0
        %3440 = vmatpush.xpose.msra.mxu0 0.0
        %3441 = vmatpush.xpose.msra.mxu0 0.0
        %3442 = vmatpush.xpose.msra.mxu0 0.0
        %3443 = vmatpush.xpose.msra.mxu0 0.0
        %3444 = vmatpush.xpose.msra.mxu0 0.0
        %3445 = vmatpush.xpose.msra.mxu0 0.0
        %3446 = vmatpush.xpose.msra.mxu0 0.0
        %3447 = vmatpush.xpose.msra.mxu0 0.0
        %3448 = vmatpush.xpose.msra.mxu0 %v345
        %3449 = vmatmul.f32.gmra.mxu0 %v345
        %v3450 = vpop.f32.mrf.mxu0
        %v3451 = vadd.f32 %v3431, %v3450
        %3452 = vdwg.mxu0
        %3453 = vmatpush.xpose.msra.mxu0 0.0
        %3454 = vmatpush.xpose.msra.mxu0 0.0
        %3455 = vmatpush.xpose.msra.mxu0 0.0
        %3456 = vmatpush.xpose.msra.mxu0 0.0
        %3457 = vmatpush.xpose.msra.mxu0 0.0
        %3458 = vmatpush.xpose.msra.mxu0 0.0
        %3459 = vmatpush.xpose.msra.mxu0 0.0
        %3460 = vmatpush.xpose.msra.mxu0 0.0
        %3461 = vmatpush.xpose.msra.mxu0 0.0
        %3462 = vmatpush.xpose.msra.mxu0 0.0
        %3463 = vmatpush.xpose.msra.mxu0 0.0
        %3464 = vmatpush.xpose.msra.mxu0 0.0
        %3465 = vmatpush.xpose.msra.mxu0 0.0
        %3466 = vmatpush.xpose.msra.mxu0 0.0
        %3467 = vmatpush.xpose.msra.mxu0 0.0
        %3468 = vmatpush.xpose.msra.mxu0 %v346
        %3469 = vmatmul.f32.gmra.mxu0 %v346
        %v3470 = vpop.f32.mrf.mxu0
        %v3471 = vadd.f32 %v3451, %v3470
        %3472 = vdwg.mxu0
        %3473 = vmatpush.xpose.msra.mxu0 0.0
        %3474 = vmatpush.xpose.msra.mxu0 0.0
        %3475 = vmatpush.xpose.msra.mxu0 0.0
        %3476 = vmatpush.xpose.msra.mxu0 0.0
        %3477 = vmatpush.xpose.msra.mxu0 0.0
        %3478 = vmatpush.xpose.msra.mxu0 0.0
        %3479 = vmatpush.xpose.msra.mxu0 0.0
        %3480 = vmatpush.xpose.msra.mxu0 0.0
        %3481 = vmatpush.xpose.msra.mxu0 0.0
        %3482 = vmatpush.xpose.msra.mxu0 0.0
        %3483 = vmatpush.xpose.msra.mxu0 0.0
        %3484 = vmatpush.xpose.msra.mxu0 0.0
        %3485 = vmatpush.xpose.msra.mxu0 0.0
        %3486 = vmatpush.xpose.msra.mxu0 0.0
        %3487 = vmatpush.xpose.msra.mxu0 0.0
        %3488 = vmatpush.xpose.msra.mxu0 %v347
        %3489 = vmatmul.f32.gmra.mxu0 %v347
        %v3490 = vpop.f32.mrf.mxu0
        %v3491 = vadd.f32 %v3471, %v3490
        %3492 = vdwg.mxu0
        %3493 = vmatpush.xpose.msra.mxu0 0.0
        %3494 = vmatpush.xpose.msra.mxu0 0.0
        %3495 = vmatpush.xpose.msra.mxu0 0.0
        %3496 = vmatpush.xpose.msra.mxu0 0.0
        %3497 = vmatpush.xpose.msra.mxu0 0.0
        %3498 = vmatpush.xpose.msra.mxu0 0.0
        %3499 = vmatpush.xpose.msra.mxu0 0.0
        %3500 = vmatpush.xpose.msra.mxu0 0.0
        %3501 = vmatpush.xpose.msra.mxu0 0.0
        %3502 = vmatpush.xpose.msra.mxu0 0.0
        %3503 = vmatpush.xpose.msra.mxu0 0.0
        %3504 = vmatpush.xpose.msra.mxu0 0.0
        %3505 = vmatpush.xpose.msra.mxu0 0.0
        %3506 = vmatpush.xpose.msra.mxu0 0.0
        %3507 = vmatpush.xpose.msra.mxu0 0.0
        %3508 = vmatpush.xpose.msra.mxu0 %v348
        %3509 = vmatmul.f32.gmra.mxu0 %v348
        %v3510 = vpop.f32.mrf.mxu0
        %v3511 = vadd.f32 %v3491, %v3510
        %3512 = vdwg.mxu0
        %3513 = vmatpush.xpose.msra.mxu0 0.0
        %3514 = vmatpush.xpose.msra.mxu0 0.0
        %3515 = vmatpush.xpose.msra.mxu0 0.0
        %3516 = vmatpush.xpose.msra.mxu0 0.0
        %3517 = vmatpush.xpose.msra.mxu0 0.0
        %3518 = vmatpush.xpose.msra.mxu0 0.0
        %3519 = vmatpush.xpose.msra.mxu0 0.0
        %3520 = vmatpush.xpose.msra.mxu0 0.0
        %3521 = vmatpush.xpose.msra.mxu0 0.0
        %3522 = vmatpush.xpose.msra.mxu0 0.0
        %3523 = vmatpush.xpose.msra.mxu0 0.0
        %3524 = vmatpush.xpose.msra.mxu0 0.0
        %3525 = vmatpush.xpose.msra.mxu0 0.0
        %3526 = vmatpush.xpose.msra.mxu0 0.0
        %3527 = vmatpush.xpose.msra.mxu0 0.0
        %3528 = vmatpush.xpose.msra.mxu0 %v349
        %3529 = vmatmul.f32.gmra.mxu0 %v349
        %v3530 = vpop.f32.mrf.mxu0
        %v3531 = vadd.f32 %v3511, %v3530
        %3532 = vdwg.mxu0
        %3533 = vmatpush.xpose.msra.mxu0 0.0
        %3534 = vmatpush.xpose.msra.mxu0 0.0
        %3535 = vmatpush.xpose.msra.mxu0 0.0
        %3536 = vmatpush.xpose.msra.mxu0 0.0
        %3537 = vmatpush.xpose.msra.mxu0 0.0
        %3538 = vmatpush.xpose.msra.mxu0 0.0
        %3539 = vmatpush.xpose.msra.mxu0 0.0
        %3540 = vmatpush.xpose.msra.mxu0 0.0
        %3541 = vmatpush.xpose.msra.mxu0 0.0
        %3542 = vmatpush.xpose.msra.mxu0 0.0
        %3543 = vmatpush.xpose.msra.mxu0 0.0
        %3544 = vmatpush.xpose.msra.mxu0 0.0
        %3545 = vmatpush.xpose.msra.mxu0 0.0
        %3546 = vmatpush.xpose.msra.mxu0 0.0
        %3547 = vmatpush.xpose.msra.mxu0 0.0
        %3548 = vmatpush.xpose.msra.mxu0 %v350
        %3549 = vmatmul.f32.gmra.mxu0 %v350
        %v3550 = vpop.f32.mrf.mxu0
        %v3551 = vadd.f32 %v3531, %v3550
        %3552 = vdwg.mxu0
        %3553 = vmatpush.xpose.msra.mxu0 0.0
        %3554 = vmatpush.xpose.msra.mxu0 0.0
        %3555 = vmatpush.xpose.msra.mxu0 0.0
        %3556 = vmatpush.xpose.msra.mxu0 0.0
        %3557 = vmatpush.xpose.msra.mxu0 0.0
        %3558 = vmatpush.xpose.msra.mxu0 0.0
        %3559 = vmatpush.xpose.msra.mxu0 0.0
        %3560 = vmatpush.xpose.msra.mxu0 0.0
        %3561 = vmatpush.xpose.msra.mxu0 0.0
        %3562 = vmatpush.xpose.msra.mxu0 0.0
        %3563 = vmatpush.xpose.msra.mxu0 0.0
        %3564 = vmatpush.xpose.msra.mxu0 0.0
        %3565 = vmatpush.xpose.msra.mxu0 0.0
        %3566 = vmatpush.xpose.msra.mxu0 0.0
        %3567 = vmatpush.xpose.msra.mxu0 0.0
        %3568 = vmatpush.xpose.msra.mxu0 %v351
        %3569 = vmatmul.f32.gmra.mxu0 %v351
        %v3570 = vpop.f32.mrf.mxu0
        %v3571 = vadd.f32 %v3551, %v3570
        %3572 = vdwg.mxu0
        %3573 = vmatpush.xpose.msra.mxu0 0.0
        %3574 = vmatpush.xpose.msra.mxu0 0.0
        %3575 = vmatpush.xpose.msra.mxu0 0.0
        %3576 = vmatpush.xpose.msra.mxu0 0.0
        %3577 = vmatpush.xpose.msra.mxu0 0.0
        %3578 = vmatpush.xpose.msra.mxu0 0.0
        %3579 = vmatpush.xpose.msra.mxu0 0.0
        %3580 = vmatpush.xpose.msra.mxu0 0.0
        %3581 = vmatpush.xpose.msra.mxu0 0.0
        %3582 = vmatpush.xpose.msra.mxu0 0.0
        %3583 = vmatpush.xpose.msra.mxu0 0.0
        %3584 = vmatpush.xpose.msra.mxu0 0.0
        %3585 = vmatpush.xpose.msra.mxu0 0.0
        %3586 = vmatpush.xpose.msra.mxu0 0.0
        %3587 = vmatpush.xpose.msra.mxu0 0.0
        %3588 = vmatpush.xpose.msra.mxu0 %v352
        %3589 = vmatmul.f32.gmra.mxu0 %v352
        %v3590 = vpop.f32.mrf.mxu0
        %v3591 = vadd.f32 %v3571, %v3590
        %3592 = vdwg.mxu0
        %3593 = vmatpush.xpose.msra.mxu0 0.0
        %3594 = vmatpush.xpose.msra.mxu0 0.0
        %3595 = vmatpush.xpose.msra.mxu0 0.0
        %3596 = vmatpush.xpose.msra.mxu0 0.0
        %3597 = vmatpush.xpose.msra.mxu0 0.0
        %3598 = vmatpush.xpose.msra.mxu0 0.0
        %3599 = vmatpush.xpose.msra.mxu0 0.0
        %3600 = vmatpush.xpose.msra.mxu0 0.0
        %3601 = vmatpush.xpose.msra.mxu0 0.0
        %3602 = vmatpush.xpose.msra.mxu0 0.0
        %3603 = vmatpush.xpose.msra.mxu0 0.0
        %3604 = vmatpush.xpose.msra.mxu0 0.0
        %3605 = vmatpush.xpose.msra.mxu0 0.0
        %3606 = vmatpush.xpose.msra.mxu0 0.0
        %3607 = vmatpush.xpose.msra.mxu0 0.0
        %3608 = vmatpush.xpose.msra.mxu0 %v353
        %3609 = vmatmul.f32.gmra.mxu0 %v353
        %v3610 = vpop.f32.mrf.mxu0
        %v3611 = vadd.f32 %v3591, %v3610
        %3612 = vdwg.mxu0
        %3613 = vmatpush.xpose.msra.mxu0 0.0
        %3614 = vmatpush.xpose.msra.mxu0 0.0
        %3615 = vmatpush.xpose.msra.mxu0 0.0
        %3616 = vmatpush.xpose.msra.mxu0 0.0
        %3617 = vmatpush.xpose.msra.mxu0 0.0
        %3618 = vmatpush.xpose.msra.mxu0 0.0
        %3619 = vmatpush.xpose.msra.mxu0 0.0
        %3620 = vmatpush.xpose.msra.mxu0 0.0
        %3621 = vmatpush.xpose.msra.mxu0 0.0
        %3622 = vmatpush.xpose.msra.mxu0 0.0
        %3623 = vmatpush.xpose.msra.mxu0 0.0
        %3624 = vmatpush.xpose.msra.mxu0 0.0
        %3625 = vmatpush.xpose.msra.mxu0 0.0
        %3626 = vmatpush.xpose.msra.mxu0 0.0
        %3627 = vmatpush.xpose.msra.mxu0 0.0
        %3628 = vmatpush.xpose.msra.mxu0 %v354
        %3629 = vmatmul.f32.gmra.mxu0 %v354
        %v3630 = vpop.f32.mrf.mxu0
        %v3631 = vadd.f32 %v3611, %v3630
        %3632 = vdwg.mxu0
        %3633 = vmatpush.xpose.msra.mxu0 0.0
        %3634 = vmatpush.xpose.msra.mxu0 0.0
        %3635 = vmatpush.xpose.msra.mxu0 0.0
        %3636 = vmatpush.xpose.msra.mxu0 0.0
        %3637 = vmatpush.xpose.msra.mxu0 0.0
        %3638 = vmatpush.xpose.msra.mxu0 0.0
        %3639 = vmatpush.xpose.msra.mxu0 0.0
        %3640 = vmatpush.xpose.msra.mxu0 0.0
        %3641 = vmatpush.xpose.msra.mxu0 0.0
        %3642 = vmatpush.xpose.msra.mxu0 0.0
        %3643 = vmatpush.xpose.msra.mxu0 0.0
        %3644 = vmatpush.xpose.msra.mxu0 0.0
        %3645 = vmatpush.xpose.msra.mxu0 0.0
        %3646 = vmatpush.xpose.msra.mxu0 0.0
        %3647 = vmatpush.xpose.msra.mxu0 0.0
        %3648 = vmatpush.xpose.msra.mxu0 %v355
        %3649 = vmatmul.f32.gmra.mxu0 %v355
        %v3650 = vpop.f32.mrf.mxu0
        %v3651 = vadd.f32 %v3631, %v3650
        %3652 = vdwg.mxu0
        %3653 = vmatpush.xpose.msra.mxu0 0.0
        %3654 = vmatpush.xpose.msra.mxu0 0.0
        %3655 = vmatpush.xpose.msra.mxu0 0.0
        %3656 = vmatpush.xpose.msra.mxu0 0.0
        %3657 = vmatpush.xpose.msra.mxu0 0.0
        %3658 = vmatpush.xpose.msra.mxu0 0.0
        %3659 = vmatpush.xpose.msra.mxu0 0.0
        %3660 = vmatpush.xpose.msra.mxu0 0.0
        %3661 = vmatpush.xpose.msra.mxu0 0.0
        %3662 = vmatpush.xpose.msra.mxu0 0.0
        %3663 = vmatpush.xpose.msra.mxu0 0.0
        %3664 = vmatpush.xpose.msra.mxu0 0.0
        %3665 = vmatpush.xpose.msra.mxu0 0.0
        %3666 = vmatpush.xpose.msra.mxu0 0.0
        %3667 = vmatpush.xpose.msra.mxu0 0.0
        %3668 = vmatpush.xpose.msra.mxu0 %v356
        %3669 = vmatmul.f32.gmra.mxu0 %v356
        %v3670 = vpop.f32.mrf.mxu0
        %v3671 = vadd.f32 %v3651, %v3670
        %3672 = vdwg.mxu0
        %3673 = vmatpush.xpose.msra.mxu0 0.0
        %3674 = vmatpush.xpose.msra.mxu0 0.0
        %3675 = vmatpush.xpose.msra.mxu0 0.0
        %3676 = vmatpush.xpose.msra.mxu0 0.0
        %3677 = vmatpush.xpose.msra.mxu0 0.0
        %3678 = vmatpush.xpose.msra.mxu0 0.0
        %3679 = vmatpush.xpose.msra.mxu0 0.0
        %3680 = vmatpush.xpose.msra.mxu0 0.0
        %3681 = vmatpush.xpose.msra.mxu0 0.0
        %3682 = vmatpush.xpose.msra.mxu0 0.0
        %3683 = vmatpush.xpose.msra.mxu0 0.0
        %3684 = vmatpush.xpose.msra.mxu0 0.0
        %3685 = vmatpush.xpose.msra.mxu0 0.0
        %3686 = vmatpush.xpose.msra.mxu0 0.0
        %3687 = vmatpush.xpose.msra.mxu0 0.0
        %3688 = vmatpush.xpose.msra.mxu0 %v357
        %3689 = vmatmul.f32.gmra.mxu0 %v357
        %v3690 = vpop.f32.mrf.mxu0
        %v3691 = vadd.f32 %v3671, %v3690
        %3692 = vdwg.mxu0
        %3693 = vmatpush.xpose.msra.mxu0 0.0
        %3694 = vmatpush.xpose.msra.mxu0 0.0
        %3695 = vmatpush.xpose.msra.mxu0 0.0
        %3696 = vmatpush.xpose.msra.mxu0 0.0
        %3697 = vmatpush.xpose.msra.mxu0 0.0
        %3698 = vmatpush.xpose.msra.mxu0 0.0
        %3699 = vmatpush.xpose.msra.mxu0 0.0
        %3700 = vmatpush.xpose.msra.mxu0 0.0
        %3701 = vmatpush.xpose.msra.mxu0 0.0
        %3702 = vmatpush.xpose.msra.mxu0 0.0
        %3703 = vmatpush.xpose.msra.mxu0 0.0
        %3704 = vmatpush.xpose.msra.mxu0 0.0
        %3705 = vmatpush.xpose.msra.mxu0 0.0
        %3706 = vmatpush.xpose.msra.mxu0 0.0
        %3707 = vmatpush.xpose.msra.mxu0 0.0
        %3708 = vmatpush.xpose.msra.mxu0 %v358
        %3709 = vmatmul.f32.gmra.mxu0 %v358
        %v3710 = vpop.f32.mrf.mxu0
        %v3711 = vadd.f32 %v3691, %v3710
        %3712 = vdwg.mxu0
        %3713 = vmatpush.xpose.msra.mxu0 0.0
        %3714 = vmatpush.xpose.msra.mxu0 0.0
        %3715 = vmatpush.xpose.msra.mxu0 0.0
        %3716 = vmatpush.xpose.msra.mxu0 0.0
        %3717 = vmatpush.xpose.msra.mxu0 0.0
        %3718 = vmatpush.xpose.msra.mxu0 0.0
        %3719 = vmatpush.xpose.msra.mxu0 0.0
        %3720 = vmatpush.xpose.msra.mxu0 0.0
        %3721 = vmatpush.xpose.msra.mxu0 0.0
        %3722 = vmatpush.xpose.msra.mxu0 0.0
        %3723 = vmatpush.xpose.msra.mxu0 0.0
        %3724 = vmatpush.xpose.msra.mxu0 0.0
        %3725 = vmatpush.xpose.msra.mxu0 0.0
        %3726 = vmatpush.xpose.msra.mxu0 0.0
        %3727 = vmatpush.xpose.msra.mxu0 0.0
        %3728 = vmatpush.xpose.msra.mxu0 %v359
        %3729 = vmatmul.f32.gmra.mxu0 %v359
        %v3730 = vpop.f32.mrf.mxu0
        %v3731 = vadd.f32 %v3711, %v3730
        %3732 = vdwg.mxu0
        %3733 = vmatpush.xpose.msra.mxu0 0.0
        %3734 = vmatpush.xpose.msra.mxu0 0.0
        %3735 = vmatpush.xpose.msra.mxu0 0.0
        %3736 = vmatpush.xpose.msra.mxu0 0.0
        %3737 = vmatpush.xpose.msra.mxu0 0.0
        %3738 = vmatpush.xpose.msra.mxu0 0.0
        %3739 = vmatpush.xpose.msra.mxu0 0.0
        %3740 = vmatpush.xpose.msra.mxu0 0.0
        %3741 = vmatpush.xpose.msra.mxu0 0.0
        %3742 = vmatpush.xpose.msra.mxu0 0.0
        %3743 = vmatpush.xpose.msra.mxu0 0.0
        %3744 = vmatpush.xpose.msra.mxu0 0.0
        %3745 = vmatpush.xpose.msra.mxu0 0.0
        %3746 = vmatpush.xpose.msra.mxu0 0.0
        %3747 = vmatpush.xpose.msra.mxu0 0.0
        %3748 = vmatpush.xpose.msra.mxu0 %v360
        %3749 = vmatmul.f32.gmra.mxu0 %v360
        %v3750 = vpop.f32.mrf.mxu0
        %v3751 = vadd.f32 %v3731, %v3750
        %3752 = vdwg.mxu0
        %3753 = vmatpush.xpose.msra.mxu0 0.0
        %3754 = vmatpush.xpose.msra.mxu0 0.0
        %3755 = vmatpush.xpose.msra.mxu0 0.0
        %3756 = vmatpush.xpose.msra.mxu0 0.0
        %3757 = vmatpush.xpose.msra.mxu0 0.0
        %3758 = vmatpush.xpose.msra.mxu0 0.0
        %3759 = vmatpush.xpose.msra.mxu0 0.0
        %3760 = vmatpush.xpose.msra.mxu0 0.0
        %3761 = vmatpush.xpose.msra.mxu0 0.0
        %3762 = vmatpush.xpose.msra.mxu0 0.0
        %3763 = vmatpush.xpose.msra.mxu0 0.0
        %3764 = vmatpush.xpose.msra.mxu0 0.0
        %3765 = vmatpush.xpose.msra.mxu0 0.0
        %3766 = vmatpush.xpose.msra.mxu0 0.0
        %3767 = vmatpush.xpose.msra.mxu0 0.0
        %3768 = vmatpush.xpose.msra.mxu0 %v361
        %3769 = vmatmul.f32.gmra.mxu0 %v361
        %v3770 = vpop.f32.mrf.mxu0
        %v3771 = vadd.f32 %v3751, %v3770
        %3772 = vdwg.mxu0
        %3773 = vmatpush.xpose.msra.mxu0 0.0
        %3774 = vmatpush.xpose.msra.mxu0 0.0
        %3775 = vmatpush.xpose.msra.mxu0 0.0
        %3776 = vmatpush.xpose.msra.mxu0 0.0
        %3777 = vmatpush.xpose.msra.mxu0 0.0
        %3778 = vmatpush.xpose.msra.mxu0 0.0
        %3779 = vmatpush.xpose.msra.mxu0 0.0
        %3780 = vmatpush.xpose.msra.mxu0 0.0
        %3781 = vmatpush.xpose.msra.mxu0 0.0
        %3782 = vmatpush.xpose.msra.mxu0 0.0
        %3783 = vmatpush.xpose.msra.mxu0 0.0
        %3784 = vmatpush.xpose.msra.mxu0 0.0
        %3785 = vmatpush.xpose.msra.mxu0 0.0
        %3786 = vmatpush.xpose.msra.mxu0 0.0
        %3787 = vmatpush.xpose.msra.mxu0 0.0
        %3788 = vmatpush.xpose.msra.mxu0 %v362
        %3789 = vmatmul.f32.gmra.mxu0 %v362
        %v3790 = vpop.f32.mrf.mxu0
        %v3791 = vadd.f32 %v3771, %v3790
        %3792 = vdwg.mxu0
        %3793 = vmatpush.xpose.msra.mxu0 0.0
        %3794 = vmatpush.xpose.msra.mxu0 0.0
        %3795 = vmatpush.xpose.msra.mxu0 0.0
        %3796 = vmatpush.xpose.msra.mxu0 0.0
        %3797 = vmatpush.xpose.msra.mxu0 0.0
        %3798 = vmatpush.xpose.msra.mxu0 0.0
        %3799 = vmatpush.xpose.msra.mxu0 0.0
        %3800 = vmatpush.xpose.msra.mxu0 0.0
        %3801 = vmatpush.xpose.msra.mxu0 0.0
        %3802 = vmatpush.xpose.msra.mxu0 0.0
        %3803 = vmatpush.xpose.msra.mxu0 0.0
        %3804 = vmatpush.xpose.msra.mxu0 0.0
        %3805 = vmatpush.xpose.msra.mxu0 0.0
        %3806 = vmatpush.xpose.msra.mxu0 0.0
        %3807 = vmatpush.xpose.msra.mxu0 0.0
        %3808 = vmatpush.xpose.msra.mxu0 %v363
        %3809 = vmatmul.f32.gmra.mxu0 %v363
        %v3810 = vpop.f32.mrf.mxu0
        %v3811 = vadd.f32 %v3791, %v3810
        %3812 = vdwg.mxu0
        %3813 = vmatpush.xpose.msra.mxu0 0.0
        %3814 = vmatpush.xpose.msra.mxu0 0.0
        %3815 = vmatpush.xpose.msra.mxu0 0.0
        %3816 = vmatpush.xpose.msra.mxu0 0.0
        %3817 = vmatpush.xpose.msra.mxu0 0.0
        %3818 = vmatpush.xpose.msra.mxu0 0.0
        %3819 = vmatpush.xpose.msra.mxu0 0.0
        %3820 = vmatpush.xpose.msra.mxu0 0.0
        %3821 = vmatpush.xpose.msra.mxu0 0.0
        %3822 = vmatpush.xpose.msra.mxu0 0.0
        %3823 = vmatpush.xpose.msra.mxu0 0.0
        %3824 = vmatpush.xpose.msra.mxu0 0.0
        %3825 = vmatpush.xpose.msra.mxu0 0.0
        %3826 = vmatpush.xpose.msra.mxu0 0.0
        %3827 = vmatpush.xpose.msra.mxu0 0.0
        %3828 = vmatpush.xpose.msra.mxu0 %v364
        %3829 = vmatmul.f32.gmra.mxu0 %v364
        %v3830 = vpop.f32.mrf.mxu0
        %v3831 = vadd.f32 %v3811, %v3830
        %3832 = vdwg.mxu0
        %3833 = vmatpush.xpose.msra.mxu0 0.0
        %3834 = vmatpush.xpose.msra.mxu0 0.0
        %3835 = vmatpush.xpose.msra.mxu0 0.0
        %3836 = vmatpush.xpose.msra.mxu0 0.0
        %3837 = vmatpush.xpose.msra.mxu0 0.0
        %3838 = vmatpush.xpose.msra.mxu0 0.0
        %3839 = vmatpush.xpose.msra.mxu0 0.0
        %3840 = vmatpush.xpose.msra.mxu0 0.0
        %3841 = vmatpush.xpose.msra.mxu0 0.0
        %3842 = vmatpush.xpose.msra.mxu0 0.0
        %3843 = vmatpush.xpose.msra.mxu0 0.0
        %3844 = vmatpush.xpose.msra.mxu0 0.0
        %3845 = vmatpush.xpose.msra.mxu0 0.0
        %3846 = vmatpush.xpose.msra.mxu0 0.0
        %3847 = vmatpush.xpose.msra.mxu0 0.0
        %3848 = vmatpush.xpose.msra.mxu0 %v365
        %3849 = vmatmul.f32.gmra.mxu0 %v365
        %v3850 = vpop.f32.mrf.mxu0
        %v3851 = vadd.f32 %v3831, %v3850
        %3852 = vdwg.mxu0
        %3853 = vmatpush.xpose.msra.mxu0 0.0
        %3854 = vmatpush.xpose.msra.mxu0 0.0
        %3855 = vmatpush.xpose.msra.mxu0 0.0
        %3856 = vmatpush.xpose.msra.mxu0 0.0
        %3857 = vmatpush.xpose.msra.mxu0 0.0
        %3858 = vmatpush.xpose.msra.mxu0 0.0
        %3859 = vmatpush.xpose.msra.mxu0 0.0
        %3860 = vmatpush.xpose.msra.mxu0 0.0
        %3861 = vmatpush.xpose.msra.mxu0 0.0
        %3862 = vmatpush.xpose.msra.mxu0 0.0
        %3863 = vmatpush.xpose.msra.mxu0 0.0
        %3864 = vmatpush.xpose.msra.mxu0 0.0
        %3865 = vmatpush.xpose.msra.mxu0 0.0
        %3866 = vmatpush.xpose.msra.mxu0 0.0
        %3867 = vmatpush.xpose.msra.mxu0 0.0
        %3868 = vmatpush.xpose.msra.mxu0 %v366
        %3869 = vmatmul.f32.gmra.mxu0 %v366
        %v3870 = vpop.f32.mrf.mxu0
        %v3871 = vadd.f32 %v3851, %v3870
        %3872 = vdwg.mxu0
        %3873 = vmatpush.xpose.msra.mxu0 0.0
        %3874 = vmatpush.xpose.msra.mxu0 0.0
        %3875 = vmatpush.xpose.msra.mxu0 0.0
        %3876 = vmatpush.xpose.msra.mxu0 0.0
        %3877 = vmatpush.xpose.msra.mxu0 0.0
        %3878 = vmatpush.xpose.msra.mxu0 0.0
        %3879 = vmatpush.xpose.msra.mxu0 0.0
        %3880 = vmatpush.xpose.msra.mxu0 0.0
        %3881 = vmatpush.xpose.msra.mxu0 0.0
        %3882 = vmatpush.xpose.msra.mxu0 0.0
        %3883 = vmatpush.xpose.msra.mxu0 0.0
        %3884 = vmatpush.xpose.msra.mxu0 0.0
        %3885 = vmatpush.xpose.msra.mxu0 0.0
        %3886 = vmatpush.xpose.msra.mxu0 0.0
        %3887 = vmatpush.xpose.msra.mxu0 0.0
        %3888 = vmatpush.xpose.msra.mxu0 %v367
        %3889 = vmatmul.f32.gmra.mxu0 %v367
        %v3890 = vpop.f32.mrf.mxu0
        %v3891 = vadd.f32 %v3871, %v3890
        %3892 = vdwg.mxu0
        %3893 = vmatpush.xpose.msra.mxu0 0.0
        %3894 = vmatpush.xpose.msra.mxu0 0.0
        %3895 = vmatpush.xpose.msra.mxu0 0.0
        %3896 = vmatpush.xpose.msra.mxu0 0.0
        %3897 = vmatpush.xpose.msra.mxu0 0.0
        %3898 = vmatpush.xpose.msra.mxu0 0.0
        %3899 = vmatpush.xpose.msra.mxu0 0.0
        %3900 = vmatpush.xpose.msra.mxu0 0.0
        %3901 = vmatpush.xpose.msra.mxu0 0.0
        %3902 = vmatpush.xpose.msra.mxu0 0.0
        %3903 = vmatpush.xpose.msra.mxu0 0.0
        %3904 = vmatpush.xpose.msra.mxu0 0.0
        %3905 = vmatpush.xpose.msra.mxu0 0.0
        %3906 = vmatpush.xpose.msra.mxu0 0.0
        %3907 = vmatpush.xpose.msra.mxu0 0.0
        %3908 = vmatpush.xpose.msra.mxu0 %v368
        %3909 = vmatmul.f32.gmra.mxu0 %v368
        %v3910 = vpop.f32.mrf.mxu0
        %v3911 = vadd.f32 %v3891, %v3910
        %3912 = vdwg.mxu0
        %3913 = vmatpush.xpose.msra.mxu0 0.0
        %3914 = vmatpush.xpose.msra.mxu0 0.0
        %3915 = vmatpush.xpose.msra.mxu0 0.0
        %3916 = vmatpush.xpose.msra.mxu0 0.0
        %3917 = vmatpush.xpose.msra.mxu0 0.0
        %3918 = vmatpush.xpose.msra.mxu0 0.0
        %3919 = vmatpush.xpose.msra.mxu0 0.0
        %3920 = vmatpush.xpose.msra.mxu0 0.0
        %3921 = vmatpush.xpose.msra.mxu0 0.0
        %3922 = vmatpush.xpose.msra.mxu0 0.0
        %3923 = vmatpush.xpose.msra.mxu0 0.0
        %3924 = vmatpush.xpose.msra.mxu0 0.0
        %3925 = vmatpush.xpose.msra.mxu0 0.0
        %3926 = vmatpush.xpose.msra.mxu0 0.0
        %3927 = vmatpush.xpose.msra.mxu0 0.0
        %3928 = vmatpush.xpose.msra.mxu0 %v369
        %3929 = vmatmul.f32.gmra.mxu0 %v369
        %v3930 = vpop.f32.mrf.mxu0
        %v3931 = vadd.f32 %v3911, %v3930
        %3932 = vdwg.mxu0
        %3933 = vmatpush.xpose.msra.mxu0 0.0
        %3934 = vmatpush.xpose.msra.mxu0 0.0
        %3935 = vmatpush.xpose.msra.mxu0 0.0
        %3936 = vmatpush.xpose.msra.mxu0 0.0
        %3937 = vmatpush.xpose.msra.mxu0 0.0
        %3938 = vmatpush.xpose.msra.mxu0 0.0
        %3939 = vmatpush.xpose.msra.mxu0 0.0
        %3940 = vmatpush.xpose.msra.mxu0 0.0
        %3941 = vmatpush.xpose.msra.mxu0 0.0
        %3942 = vmatpush.xpose.msra.mxu0 0.0
        %3943 = vmatpush.xpose.msra.mxu0 0.0
        %3944 = vmatpush.xpose.msra.mxu0 0.0
        %3945 = vmatpush.xpose.msra.mxu0 0.0
        %3946 = vmatpush.xpose.msra.mxu0 0.0
        %3947 = vmatpush.xpose.msra.mxu0 0.0
        %3948 = vmatpush.xpose.msra.mxu0 %v370
        %3949 = vmatmul.f32.gmra.mxu0 %v370
        %v3950 = vpop.f32.mrf.mxu0
        %v3951 = vadd.f32 %v3931, %v3950
        %3952 = vdwg.mxu0
        %3953 = vmatpush.xpose.msra.mxu0 0.0
        %3954 = vmatpush.xpose.msra.mxu0 0.0
        %3955 = vmatpush.xpose.msra.mxu0 0.0
        %3956 = vmatpush.xpose.msra.mxu0 0.0
        %3957 = vmatpush.xpose.msra.mxu0 0.0
        %3958 = vmatpush.xpose.msra.mxu0 0.0
        %3959 = vmatpush.xpose.msra.mxu0 0.0
        %3960 = vmatpush.xpose.msra.mxu0 0.0
        %3961 = vmatpush.xpose.msra.mxu0 0.0
        %3962 = vmatpush.xpose.msra.mxu0 0.0
        %3963 = vmatpush.xpose.msra.mxu0 0.0
        %3964 = vmatpush.xpose.msra.mxu0 0.0
        %3965 = vmatpush.xpose.msra.mxu0 0.0
        %3966 = vmatpush.xpose.msra.mxu0 0.0
        %3967 = vmatpush.xpose.msra.mxu0 0.0
        %3968 = vmatpush.xpose.msra.mxu0 %v371
        %3969 = vmatmul.f32.gmra.mxu0 %v371
        %v3970 = vpop.f32.mrf.mxu0
        %v3971 = vadd.f32 %v3951, %v3970
        %3972 = vdwg.mxu0
        %3973 = vmatpush.xpose.msra.mxu0 0.0
        %3974 = vmatpush.xpose.msra.mxu0 0.0
        %3975 = vmatpush.xpose.msra.mxu0 0.0
        %3976 = vmatpush.xpose.msra.mxu0 0.0
        %3977 = vmatpush.xpose.msra.mxu0 0.0
        %3978 = vmatpush.xpose.msra.mxu0 0.0
        %3979 = vmatpush.xpose.msra.mxu0 0.0
        %3980 = vmatpush.xpose.msra.mxu0 0.0
        %3981 = vmatpush.xpose.msra.mxu0 0.0
        %3982 = vmatpush.xpose.msra.mxu0 0.0
        %3983 = vmatpush.xpose.msra.mxu0 0.0
        %3984 = vmatpush.xpose.msra.mxu0 0.0
        %3985 = vmatpush.xpose.msra.mxu0 0.0
        %3986 = vmatpush.xpose.msra.mxu0 0.0
        %3987 = vmatpush.xpose.msra.mxu0 0.0
        %3988 = vmatpush.xpose.msra.mxu0 %v372
        %3989 = vmatmul.f32.gmra.mxu0 %v372
        %v3990 = vpop.f32.mrf.mxu0
        %v3991 = vadd.f32 %v3971, %v3990
        %3992 = vdwg.mxu0
        %3993 = vmatpush.xpose.msra.mxu0 0.0
        %3994 = vmatpush.xpose.msra.mxu0 0.0
        %3995 = vmatpush.xpose.msra.mxu0 0.0
        %3996 = vmatpush.xpose.msra.mxu0 0.0
        %3997 = vmatpush.xpose.msra.mxu0 0.0
        %3998 = vmatpush.xpose.msra.mxu0 0.0
        %3999 = vmatpush.xpose.msra.mxu0 0.0
        %4000 = vmatpush.xpose.msra.mxu0 0.0
        %4001 = vmatpush.xpose.msra.mxu0 0.0
        %4002 = vmatpush.xpose.msra.mxu0 0.0
        %4003 = vmatpush.xpose.msra.mxu0 0.0
        %4004 = vmatpush.xpose.msra.mxu0 0.0
        %4005 = vmatpush.xpose.msra.mxu0 0.0
        %4006 = vmatpush.xpose.msra.mxu0 0.0
        %4007 = vmatpush.xpose.msra.mxu0 0.0
        %4008 = vmatpush.xpose.msra.mxu0 %v373
        %4009 = vmatmul.f32.gmra.mxu0 %v373
        %v4010 = vpop.f32.mrf.mxu0
        %v4011 = vadd.f32 %v3991, %v4010
        %4012 = vdwg.mxu0
        %4013 = vmatpush.xpose.msra.mxu0 0.0
        %4014 = vmatpush.xpose.msra.mxu0 0.0
        %4015 = vmatpush.xpose.msra.mxu0 0.0
        %4016 = vmatpush.xpose.msra.mxu0 0.0
        %4017 = vmatpush.xpose.msra.mxu0 0.0
        %4018 = vmatpush.xpose.msra.mxu0 0.0
        %4019 = vmatpush.xpose.msra.mxu0 0.0
        %4020 = vmatpush.xpose.msra.mxu0 0.0
        %4021 = vmatpush.xpose.msra.mxu0 0.0
        %4022 = vmatpush.xpose.msra.mxu0 0.0
        %4023 = vmatpush.xpose.msra.mxu0 0.0
        %4024 = vmatpush.xpose.msra.mxu0 0.0
        %4025 = vmatpush.xpose.msra.mxu0 0.0
        %4026 = vmatpush.xpose.msra.mxu0 0.0
        %4027 = vmatpush.xpose.msra.mxu0 0.0
        %4028 = vmatpush.xpose.msra.mxu0 %v374
        %4029 = vmatmul.f32.gmra.mxu0 %v374
        %v4030 = vpop.f32.mrf.mxu0
        %v4031 = vadd.f32 %v4011, %v4030
        %4032 = vdwg.mxu0
        %4033 = vmatpush.xpose.msra.mxu0 0.0
        %4034 = vmatpush.xpose.msra.mxu0 0.0
        %4035 = vmatpush.xpose.msra.mxu0 0.0
        %4036 = vmatpush.xpose.msra.mxu0 0.0
        %4037 = vmatpush.xpose.msra.mxu0 0.0
        %4038 = vmatpush.xpose.msra.mxu0 0.0
        %4039 = vmatpush.xpose.msra.mxu0 0.0
        %4040 = vmatpush.xpose.msra.mxu0 0.0
        %4041 = vmatpush.xpose.msra.mxu0 0.0
        %4042 = vmatpush.xpose.msra.mxu0 0.0
        %4043 = vmatpush.xpose.msra.mxu0 0.0
        %4044 = vmatpush.xpose.msra.mxu0 0.0
        %4045 = vmatpush.xpose.msra.mxu0 0.0
        %4046 = vmatpush.xpose.msra.mxu0 0.0
        %4047 = vmatpush.xpose.msra.mxu0 0.0
        %4048 = vmatpush.xpose.msra.mxu0 %v375
        %4049 = vmatmul.f32.gmra.mxu0 %v375
        %v4050 = vpop.f32.mrf.mxu0
        %v4051 = vadd.f32 %v4031, %v4050
        %4052 = vdwg.mxu0
        %4053 = vmatpush.xpose.msra.mxu0 0.0
        %4054 = vmatpush.xpose.msra.mxu0 0.0
        %4055 = vmatpush.xpose.msra.mxu0 0.0
        %4056 = vmatpush.xpose.msra.mxu0 0.0
        %4057 = vmatpush.xpose.msra.mxu0 0.0
        %4058 = vmatpush.xpose.msra.mxu0 0.0
        %4059 = vmatpush.xpose.msra.mxu0 0.0
        %4060 = vmatpush.xpose.msra.mxu0 0.0
        %4061 = vmatpush.xpose.msra.mxu0 0.0
        %4062 = vmatpush.xpose.msra.mxu0 0.0
        %4063 = vmatpush.xpose.msra.mxu0 0.0
        %4064 = vmatpush.xpose.msra.mxu0 0.0
        %4065 = vmatpush.xpose.msra.mxu0 0.0
        %4066 = vmatpush.xpose.msra.mxu0 0.0
        %4067 = vmatpush.xpose.msra.mxu0 0.0
        %4068 = vmatpush.xpose.msra.mxu0 %v376
        %4069 = vmatmul.f32.gmra.mxu0 %v376
        %v4070 = vpop.f32.mrf.mxu0
        %v4071 = vadd.f32 %v4051, %v4070
        %4072 = vdwg.mxu0
        %4073 = vmatpush.xpose.msra.mxu0 0.0
        %4074 = vmatpush.xpose.msra.mxu0 0.0
        %4075 = vmatpush.xpose.msra.mxu0 0.0
        %4076 = vmatpush.xpose.msra.mxu0 0.0
        %4077 = vmatpush.xpose.msra.mxu0 0.0
        %4078 = vmatpush.xpose.msra.mxu0 0.0
        %4079 = vmatpush.xpose.msra.mxu0 0.0
        %4080 = vmatpush.xpose.msra.mxu0 0.0
        %4081 = vmatpush.xpose.msra.mxu0 0.0
        %4082 = vmatpush.xpose.msra.mxu0 0.0
        %4083 = vmatpush.xpose.msra.mxu0 0.0
        %4084 = vmatpush.xpose.msra.mxu0 0.0
        %4085 = vmatpush.xpose.msra.mxu0 0.0
        %4086 = vmatpush.xpose.msra.mxu0 0.0
        %4087 = vmatpush.xpose.msra.mxu0 0.0
        %4088 = vmatpush.xpose.msra.mxu0 %v377
        %4089 = vmatmul.f32.gmra.mxu0 %v377
        %v4090 = vpop.f32.mrf.mxu0
        %v4091 = vadd.f32 %v4071, %v4090
        %4092 = vdwg.mxu0
        %4093 = vmatpush.xpose.msra.mxu0 0.0
        %4094 = vmatpush.xpose.msra.mxu0 0.0
        %4095 = vmatpush.xpose.msra.mxu0 0.0
        %4096 = vmatpush.xpose.msra.mxu0 0.0
        %4097 = vmatpush.xpose.msra.mxu0 0.0
        %4098 = vmatpush.xpose.msra.mxu0 0.0
        %4099 = vmatpush.xpose.msra.mxu0 0.0
        %4100 = vmatpush.xpose.msra.mxu0 0.0
        %4101 = vmatpush.xpose.msra.mxu0 0.0
        %4102 = vmatpush.xpose.msra.mxu0 0.0
        %4103 = vmatpush.xpose.msra.mxu0 0.0
        %4104 = vmatpush.xpose.msra.mxu0 0.0
        %4105 = vmatpush.xpose.msra.mxu0 0.0
        %4106 = vmatpush.xpose.msra.mxu0 0.0
        %4107 = vmatpush.xpose.msra.mxu0 0.0
        %4108 = vmatpush.xpose.msra.mxu0 %v378
        %4109 = vmatmul.f32.gmra.mxu0 %v378
        %v4110 = vpop.f32.mrf.mxu0
        %v4111 = vadd.f32 %v4091, %v4110
        %4112 = vdwg.mxu0
        %4113 = vmatpush.xpose.msra.mxu0 0.0
        %4114 = vmatpush.xpose.msra.mxu0 0.0
        %4115 = vmatpush.xpose.msra.mxu0 0.0
        %4116 = vmatpush.xpose.msra.mxu0 0.0
        %4117 = vmatpush.xpose.msra.mxu0 0.0
        %4118 = vmatpush.xpose.msra.mxu0 0.0
        %4119 = vmatpush.xpose.msra.mxu0 0.0
        %4120 = vmatpush.xpose.msra.mxu0 0.0
        %4121 = vmatpush.xpose.msra.mxu0 0.0
        %4122 = vmatpush.xpose.msra.mxu0 0.0
        %4123 = vmatpush.xpose.msra.mxu0 0.0
        %4124 = vmatpush.xpose.msra.mxu0 0.0
        %4125 = vmatpush.xpose.msra.mxu0 0.0
        %4126 = vmatpush.xpose.msra.mxu0 0.0
        %4127 = vmatpush.xpose.msra.mxu0 0.0
        %4128 = vmatpush.xpose.msra.mxu0 %v379
        %4129 = vmatmul.f32.gmra.mxu0 %v379
        %v4130 = vpop.f32.mrf.mxu0
        %v4131 = vadd.f32 %v4111, %v4130
        %4132 = vdwg.mxu0
        %4133 = vmatpush.xpose.msra.mxu0 0.0
        %4134 = vmatpush.xpose.msra.mxu0 0.0
        %4135 = vmatpush.xpose.msra.mxu0 0.0
        %4136 = vmatpush.xpose.msra.mxu0 0.0
        %4137 = vmatpush.xpose.msra.mxu0 0.0
        %4138 = vmatpush.xpose.msra.mxu0 0.0
        %4139 = vmatpush.xpose.msra.mxu0 0.0
        %4140 = vmatpush.xpose.msra.mxu0 0.0
        %4141 = vmatpush.xpose.msra.mxu0 0.0
        %4142 = vmatpush.xpose.msra.mxu0 0.0
        %4143 = vmatpush.xpose.msra.mxu0 0.0
        %4144 = vmatpush.xpose.msra.mxu0 0.0
        %4145 = vmatpush.xpose.msra.mxu0 0.0
        %4146 = vmatpush.xpose.msra.mxu0 0.0
        %4147 = vmatpush.xpose.msra.mxu0 0.0
        %4148 = vmatpush.xpose.msra.mxu0 %v380
        %4149 = vmatmul.f32.gmra.mxu0 %v380
        %v4150 = vpop.f32.mrf.mxu0
        %v4151 = vadd.f32 %v4131, %v4150
        %4152 = vdwg.mxu0
        %4153 = vmatpush.xpose.msra.mxu0 0.0
        %4154 = vmatpush.xpose.msra.mxu0 0.0
        %4155 = vmatpush.xpose.msra.mxu0 0.0
        %4156 = vmatpush.xpose.msra.mxu0 0.0
        %4157 = vmatpush.xpose.msra.mxu0 0.0
        %4158 = vmatpush.xpose.msra.mxu0 0.0
        %4159 = vmatpush.xpose.msra.mxu0 0.0
        %4160 = vmatpush.xpose.msra.mxu0 0.0
        %4161 = vmatpush.xpose.msra.mxu0 0.0
        %4162 = vmatpush.xpose.msra.mxu0 0.0
        %4163 = vmatpush.xpose.msra.mxu0 0.0
        %4164 = vmatpush.xpose.msra.mxu0 0.0
        %4165 = vmatpush.xpose.msra.mxu0 0.0
        %4166 = vmatpush.xpose.msra.mxu0 0.0
        %4167 = vmatpush.xpose.msra.mxu0 0.0
        %4168 = vmatpush.xpose.msra.mxu0 %v381
        %4169 = vmatmul.f32.gmra.mxu0 %v381
        %v4170 = vpop.f32.mrf.mxu0
        %v4171 = vadd.f32 %v4151, %v4170
        %4172 = vdwg.mxu0
        %4173 = vmatpush.xpose.msra.mxu0 0.0
        %4174 = vmatpush.xpose.msra.mxu0 0.0
        %4175 = vmatpush.xpose.msra.mxu0 0.0
        %4176 = vmatpush.xpose.msra.mxu0 0.0
        %4177 = vmatpush.xpose.msra.mxu0 0.0
        %4178 = vmatpush.xpose.msra.mxu0 0.0
        %4179 = vmatpush.xpose.msra.mxu0 0.0
        %4180 = vmatpush.xpose.msra.mxu0 0.0
        %4181 = vmatpush.xpose.msra.mxu0 0.0
        %4182 = vmatpush.xpose.msra.mxu0 0.0
        %4183 = vmatpush.xpose.msra.mxu0 0.0
        %4184 = vmatpush.xpose.msra.mxu0 0.0
        %4185 = vmatpush.xpose.msra.mxu0 0.0
        %4186 = vmatpush.xpose.msra.mxu0 0.0
        %4187 = vmatpush.xpose.msra.mxu0 0.0
        %4188 = vmatpush.xpose.msra.mxu0 %v382
        %4189 = vmatmul.f32.gmra.mxu0 %v382
        %v4190 = vpop.f32.mrf.mxu0
        %v4191 = vadd.f32 %v4171, %v4190
        %4192 = vdwg.mxu0
        %4193 = vmatpush.xpose.msra.mxu0 0.0
        %4194 = vmatpush.xpose.msra.mxu0 0.0
        %4195 = vmatpush.xpose.msra.mxu0 0.0
        %4196 = vmatpush.xpose.msra.mxu0 0.0
        %4197 = vmatpush.xpose.msra.mxu0 0.0
        %4198 = vmatpush.xpose.msra.mxu0 0.0
        %4199 = vmatpush.xpose.msra.mxu0 0.0
        %4200 = vmatpush.xpose.msra.mxu0 0.0
        %4201 = vmatpush.xpose.msra.mxu0 0.0
        %4202 = vmatpush.xpose.msra.mxu0 0.0
        %4203 = vmatpush.xpose.msra.mxu0 0.0
        %4204 = vmatpush.xpose.msra.mxu0 0.0
        %4205 = vmatpush.xpose.msra.mxu0 0.0
        %4206 = vmatpush.xpose.msra.mxu0 0.0
        %4207 = vmatpush.xpose.msra.mxu0 0.0
        %4208 = vmatpush.xpose.msra.mxu0 %v383
        %4209 = vmatmul.f32.gmra.mxu0 %v383
        %v4210 = vpop.f32.mrf.mxu0
        %v4211 = vadd.f32 %v4191, %v4210
        %4212 = vdwg.mxu0
        %4213 = vmatpush.xpose.msra.mxu0 0.0
        %4214 = vmatpush.xpose.msra.mxu0 0.0
        %4215 = vmatpush.xpose.msra.mxu0 0.0
        %4216 = vmatpush.xpose.msra.mxu0 0.0
        %4217 = vmatpush.xpose.msra.mxu0 0.0
        %4218 = vmatpush.xpose.msra.mxu0 0.0
        %4219 = vmatpush.xpose.msra.mxu0 0.0
        %4220 = vmatpush.xpose.msra.mxu0 0.0
        %4221 = vmatpush.xpose.msra.mxu0 0.0
        %4222 = vmatpush.xpose.msra.mxu0 0.0
        %4223 = vmatpush.xpose.msra.mxu0 0.0
        %4224 = vmatpush.xpose.msra.mxu0 0.0
        %4225 = vmatpush.xpose.msra.mxu0 0.0
        %4226 = vmatpush.xpose.msra.mxu0 0.0
        %4227 = vmatpush.xpose.msra.mxu0 0.0
        %4228 = vmatpush.xpose.msra.mxu0 %v384
        %4229 = vmatmul.f32.gmra.mxu0 %v384
        %v4230 = vpop.f32.mrf.mxu0
        %v4231 = vadd.f32 %v4211, %v4230
        %4232 = vdwg.mxu0
        %4233 = vmatpush.xpose.msra.mxu0 0.0
        %4234 = vmatpush.xpose.msra.mxu0 0.0
        %4235 = vmatpush.xpose.msra.mxu0 0.0
        %4236 = vmatpush.xpose.msra.mxu0 0.0
        %4237 = vmatpush.xpose.msra.mxu0 0.0
        %4238 = vmatpush.xpose.msra.mxu0 0.0
        %4239 = vmatpush.xpose.msra.mxu0 0.0
        %4240 = vmatpush.xpose.msra.mxu0 0.0
        %4241 = vmatpush.xpose.msra.mxu0 0.0
        %4242 = vmatpush.xpose.msra.mxu0 0.0
        %4243 = vmatpush.xpose.msra.mxu0 0.0
        %4244 = vmatpush.xpose.msra.mxu0 0.0
        %4245 = vmatpush.xpose.msra.mxu0 0.0
        %4246 = vmatpush.xpose.msra.mxu0 0.0
        %4247 = vmatpush.xpose.msra.mxu0 0.0
        %4248 = vmatpush.xpose.msra.mxu0 %v385
        %4249 = vmatmul.f32.gmra.mxu0 %v385
        %v4250 = vpop.f32.mrf.mxu0
        %v4251 = vadd.f32 %v4231, %v4250
        %4252 = vdwg.mxu0
        %4253 = vmatpush.xpose.msra.mxu0 0.0
        %4254 = vmatpush.xpose.msra.mxu0 0.0
        %4255 = vmatpush.xpose.msra.mxu0 0.0
        %4256 = vmatpush.xpose.msra.mxu0 0.0
        %4257 = vmatpush.xpose.msra.mxu0 0.0
        %4258 = vmatpush.xpose.msra.mxu0 0.0
        %4259 = vmatpush.xpose.msra.mxu0 0.0
        %4260 = vmatpush.xpose.msra.mxu0 0.0
        %4261 = vmatpush.xpose.msra.mxu0 0.0
        %4262 = vmatpush.xpose.msra.mxu0 0.0
        %4263 = vmatpush.xpose.msra.mxu0 0.0
        %4264 = vmatpush.xpose.msra.mxu0 0.0
        %4265 = vmatpush.xpose.msra.mxu0 0.0
        %4266 = vmatpush.xpose.msra.mxu0 0.0
        %4267 = vmatpush.xpose.msra.mxu0 0.0
        %4268 = vmatpush.xpose.msra.mxu0 %v386
        %4269 = vmatmul.f32.gmra.mxu0 %v386
        %v4270 = vpop.f32.mrf.mxu0
        %v4271 = vadd.f32 %v4251, %v4270
        %4272 = vdwg.mxu0
        %4273 = vmatpush.xpose.msra.mxu0 0.0
        %4274 = vmatpush.xpose.msra.mxu0 0.0
        %4275 = vmatpush.xpose.msra.mxu0 0.0
        %4276 = vmatpush.xpose.msra.mxu0 0.0
        %4277 = vmatpush.xpose.msra.mxu0 0.0
        %4278 = vmatpush.xpose.msra.mxu0 0.0
        %4279 = vmatpush.xpose.msra.mxu0 0.0
        %4280 = vmatpush.xpose.msra.mxu0 0.0
        %4281 = vmatpush.xpose.msra.mxu0 0.0
        %4282 = vmatpush.xpose.msra.mxu0 0.0
        %4283 = vmatpush.xpose.msra.mxu0 0.0
        %4284 = vmatpush.xpose.msra.mxu0 0.0
        %4285 = vmatpush.xpose.msra.mxu0 0.0
        %4286 = vmatpush.xpose.msra.mxu0 0.0
        %4287 = vmatpush.xpose.msra.mxu0 0.0
        %4288 = vmatpush.xpose.msra.mxu0 %v387
        %4289 = vmatmul.f32.gmra.mxu0 %v387
        %v4290 = vpop.f32.mrf.mxu0
        %v4291 = vadd.f32 %v4271, %v4290
        %4292 = vdwg.mxu0
        %4293 = vmatpush.xpose.msra.mxu0 0.0
        %4294 = vmatpush.xpose.msra.mxu0 0.0
        %4295 = vmatpush.xpose.msra.mxu0 0.0
        %4296 = vmatpush.xpose.msra.mxu0 0.0
        %4297 = vmatpush.xpose.msra.mxu0 0.0
        %4298 = vmatpush.xpose.msra.mxu0 0.0
        %4299 = vmatpush.xpose.msra.mxu0 0.0
        %4300 = vmatpush.xpose.msra.mxu0 0.0
        %4301 = vmatpush.xpose.msra.mxu0 0.0
        %4302 = vmatpush.xpose.msra.mxu0 0.0
        %4303 = vmatpush.xpose.msra.mxu0 0.0
        %4304 = vmatpush.xpose.msra.mxu0 0.0
        %4305 = vmatpush.xpose.msra.mxu0 0.0
        %4306 = vmatpush.xpose.msra.mxu0 0.0
        %4307 = vmatpush.xpose.msra.mxu0 0.0
        %4308 = vmatpush.xpose.msra.mxu0 %v388
        %4309 = vmatmul.f32.gmra.mxu0 %v388
        %v4310 = vpop.f32.mrf.mxu0
        %v4311 = vadd.f32 %v4291, %v4310
        %4312 = vdwg.mxu0
        %4313 = vmatpush.xpose.msra.mxu0 0.0
        %4314 = vmatpush.xpose.msra.mxu0 0.0
        %4315 = vmatpush.xpose.msra.mxu0 0.0
        %4316 = vmatpush.xpose.msra.mxu0 0.0
        %4317 = vmatpush.xpose.msra.mxu0 0.0
        %4318 = vmatpush.xpose.msra.mxu0 0.0
        %4319 = vmatpush.xpose.msra.mxu0 0.0
        %4320 = vmatpush.xpose.msra.mxu0 0.0
        %4321 = vmatpush.xpose.msra.mxu0 0.0
        %4322 = vmatpush.xpose.msra.mxu0 0.0
        %4323 = vmatpush.xpose.msra.mxu0 0.0
        %4324 = vmatpush.xpose.msra.mxu0 0.0
        %4325 = vmatpush.xpose.msra.mxu0 0.0
        %4326 = vmatpush.xpose.msra.mxu0 0.0
        %4327 = vmatpush.xpose.msra.mxu0 0.0
        %4328 = vmatpush.xpose.msra.mxu0 %v389
        %4329 = vmatmul.f32.gmra.mxu0 %v389
        %v4330 = vpop.f32.mrf.mxu0
        %v4331 = vadd.f32 %v4311, %v4330
        %4332 = vdwg.mxu0
        %4333 = vmatpush.xpose.msra.mxu0 0.0
        %4334 = vmatpush.xpose.msra.mxu0 0.0
        %4335 = vmatpush.xpose.msra.mxu0 0.0
        %4336 = vmatpush.xpose.msra.mxu0 0.0
        %4337 = vmatpush.xpose.msra.mxu0 0.0
        %4338 = vmatpush.xpose.msra.mxu0 0.0
        %4339 = vmatpush.xpose.msra.mxu0 0.0
        %4340 = vmatpush.xpose.msra.mxu0 0.0
        %4341 = vmatpush.xpose.msra.mxu0 0.0
        %4342 = vmatpush.xpose.msra.mxu0 0.0
        %4343 = vmatpush.xpose.msra.mxu0 0.0
        %4344 = vmatpush.xpose.msra.mxu0 0.0
        %4345 = vmatpush.xpose.msra.mxu0 0.0
        %4346 = vmatpush.xpose.msra.mxu0 0.0
        %4347 = vmatpush.xpose.msra.mxu0 0.0
        %4348 = vmatpush.xpose.msra.mxu0 %v390
        %4349 = vmatmul.f32.gmra.mxu0 %v390
        %v4350 = vpop.f32.mrf.mxu0
        %v4351 = vadd.f32 %v4331, %v4350
        %4352 = vdwg.mxu0
        %4353 = vmatpush.xpose.msra.mxu0 0.0
        %4354 = vmatpush.xpose.msra.mxu0 0.0
        %4355 = vmatpush.xpose.msra.mxu0 0.0
        %4356 = vmatpush.xpose.msra.mxu0 0.0
        %4357 = vmatpush.xpose.msra.mxu0 0.0
        %4358 = vmatpush.xpose.msra.mxu0 0.0
        %4359 = vmatpush.xpose.msra.mxu0 0.0
        %4360 = vmatpush.xpose.msra.mxu0 0.0
        %4361 = vmatpush.xpose.msra.mxu0 0.0
        %4362 = vmatpush.xpose.msra.mxu0 0.0
        %4363 = vmatpush.xpose.msra.mxu0 0.0
        %4364 = vmatpush.xpose.msra.mxu0 0.0
        %4365 = vmatpush.xpose.msra.mxu0 0.0
        %4366 = vmatpush.xpose.msra.mxu0 0.0
        %4367 = vmatpush.xpose.msra.mxu0 0.0
        %4368 = vmatpush.xpose.msra.mxu0 %v391
        %4369 = vmatmul.f32.gmra.mxu0 %v391
        %v4370 = vpop.f32.mrf.mxu0
        %v4371 = vadd.f32 %v4351, %v4370
        %4372 = vdwg.mxu0
        %4373 = vmatpush.xpose.msra.mxu0 0.0
        %4374 = vmatpush.xpose.msra.mxu0 0.0
        %4375 = vmatpush.xpose.msra.mxu0 0.0
        %4376 = vmatpush.xpose.msra.mxu0 0.0
        %4377 = vmatpush.xpose.msra.mxu0 0.0
        %4378 = vmatpush.xpose.msra.mxu0 0.0
        %4379 = vmatpush.xpose.msra.mxu0 0.0
        %4380 = vmatpush.xpose.msra.mxu0 0.0
        %4381 = vmatpush.xpose.msra.mxu0 0.0
        %4382 = vmatpush.xpose.msra.mxu0 0.0
        %4383 = vmatpush.xpose.msra.mxu0 0.0
        %4384 = vmatpush.xpose.msra.mxu0 0.0
        %4385 = vmatpush.xpose.msra.mxu0 0.0
        %4386 = vmatpush.xpose.msra.mxu0 0.0
        %4387 = vmatpush.xpose.msra.mxu0 0.0
        %4388 = vmatpush.xpose.msra.mxu0 %v392
        %4389 = vmatmul.f32.gmra.mxu0 %v392
        %v4390 = vpop.f32.mrf.mxu0
        %v4391 = vadd.f32 %v4371, %v4390
        %4392 = vdwg.mxu0
        %4393 = vmatpush.xpose.msra.mxu0 0.0
        %4394 = vmatpush.xpose.msra.mxu0 0.0
        %4395 = vmatpush.xpose.msra.mxu0 0.0
        %4396 = vmatpush.xpose.msra.mxu0 0.0
        %4397 = vmatpush.xpose.msra.mxu0 0.0
        %4398 = vmatpush.xpose.msra.mxu0 0.0
        %4399 = vmatpush.xpose.msra.mxu0 0.0
        %4400 = vmatpush.xpose.msra.mxu0 0.0
        %4401 = vmatpush.xpose.msra.mxu0 0.0
        %4402 = vmatpush.xpose.msra.mxu0 0.0
        %4403 = vmatpush.xpose.msra.mxu0 0.0
        %4404 = vmatpush.xpose.msra.mxu0 0.0
        %4405 = vmatpush.xpose.msra.mxu0 0.0
        %4406 = vmatpush.xpose.msra.mxu0 0.0
        %4407 = vmatpush.xpose.msra.mxu0 0.0
        %4408 = vmatpush.xpose.msra.mxu0 %v393
        %4409 = vmatmul.f32.gmra.mxu0 %v393
        %v4410 = vpop.f32.mrf.mxu0
        %v4411 = vadd.f32 %v4391, %v4410
        %4412 = vdwg.mxu0
        %4413 = vmatpush.xpose.msra.mxu0 0.0
        %4414 = vmatpush.xpose.msra.mxu0 0.0
        %4415 = vmatpush.xpose.msra.mxu0 0.0
        %4416 = vmatpush.xpose.msra.mxu0 0.0
        %4417 = vmatpush.xpose.msra.mxu0 0.0
        %4418 = vmatpush.xpose.msra.mxu0 0.0
        %4419 = vmatpush.xpose.msra.mxu0 0.0
        %4420 = vmatpush.xpose.msra.mxu0 0.0
        %4421 = vmatpush.xpose.msra.mxu0 0.0
        %4422 = vmatpush.xpose.msra.mxu0 0.0
        %4423 = vmatpush.xpose.msra.mxu0 0.0
        %4424 = vmatpush.xpose.msra.mxu0 0.0
        %4425 = vmatpush.xpose.msra.mxu0 0.0
        %4426 = vmatpush.xpose.msra.mxu0 0.0
        %4427 = vmatpush.xpose.msra.mxu0 0.0
        %4428 = vmatpush.xpose.msra.mxu0 %v394
        %4429 = vmatmul.f32.gmra.mxu0 %v394
        %v4430 = vpop.f32.mrf.mxu0
        %v4431 = vadd.f32 %v4411, %v4430
        %4432 = vdwg.mxu0
        %4433 = vmatpush.xpose.msra.mxu0 0.0
        %4434 = vmatpush.xpose.msra.mxu0 0.0
        %4435 = vmatpush.xpose.msra.mxu0 0.0
        %4436 = vmatpush.xpose.msra.mxu0 0.0
        %4437 = vmatpush.xpose.msra.mxu0 0.0
        %4438 = vmatpush.xpose.msra.mxu0 0.0
        %4439 = vmatpush.xpose.msra.mxu0 0.0
        %4440 = vmatpush.xpose.msra.mxu0 0.0
        %4441 = vmatpush.xpose.msra.mxu0 0.0
        %4442 = vmatpush.xpose.msra.mxu0 0.0
        %4443 = vmatpush.xpose.msra.mxu0 0.0
        %4444 = vmatpush.xpose.msra.mxu0 0.0
        %4445 = vmatpush.xpose.msra.mxu0 0.0
        %4446 = vmatpush.xpose.msra.mxu0 0.0
        %4447 = vmatpush.xpose.msra.mxu0 0.0
        %4448 = vmatpush.xpose.msra.mxu0 %v395
        %4449 = vmatmul.f32.gmra.mxu0 %v395
        %v4450 = vpop.f32.mrf.mxu0
        %v4451 = vadd.f32 %v4431, %v4450
        %4452 = vdwg.mxu0
        %4453 = vmatpush.xpose.msra.mxu0 0.0
        %4454 = vmatpush.xpose.msra.mxu0 0.0
        %4455 = vmatpush.xpose.msra.mxu0 0.0
        %4456 = vmatpush.xpose.msra.mxu0 0.0
        %4457 = vmatpush.xpose.msra.mxu0 0.0
        %4458 = vmatpush.xpose.msra.mxu0 0.0
        %4459 = vmatpush.xpose.msra.mxu0 0.0
        %4460 = vmatpush.xpose.msra.mxu0 0.0
        %4461 = vmatpush.xpose.msra.mxu0 0.0
        %4462 = vmatpush.xpose.msra.mxu0 0.0
        %4463 = vmatpush.xpose.msra.mxu0 0.0
        %4464 = vmatpush.xpose.msra.mxu0 0.0
        %4465 = vmatpush.xpose.msra.mxu0 0.0
        %4466 = vmatpush.xpose.msra.mxu0 0.0
        %4467 = vmatpush.xpose.msra.mxu0 0.0
        %4468 = vmatpush.xpose.msra.mxu0 %v396
        %4469 = vmatmul.f32.gmra.mxu0 %v396
        %v4470 = vpop.f32.mrf.mxu0
        %v4471 = vadd.f32 %v4451, %v4470
        %4472 = vdwg.mxu0
        %4473 = vmatpush.xpose.msra.mxu0 0.0
        %4474 = vmatpush.xpose.msra.mxu0 0.0
        %4475 = vmatpush.xpose.msra.mxu0 0.0
        %4476 = vmatpush.xpose.msra.mxu0 0.0
        %4477 = vmatpush.xpose.msra.mxu0 0.0
        %4478 = vmatpush.xpose.msra.mxu0 0.0
        %4479 = vmatpush.xpose.msra.mxu0 0.0
        %4480 = vmatpush.xpose.msra.mxu0 0.0
        %4481 = vmatpush.xpose.msra.mxu0 0.0
        %4482 = vmatpush.xpose.msra.mxu0 0.0
        %4483 = vmatpush.xpose.msra.mxu0 0.0
        %4484 = vmatpush.xpose.msra.mxu0 0.0
        %4485 = vmatpush.xpose.msra.mxu0 0.0
        %4486 = vmatpush.xpose.msra.mxu0 0.0
        %4487 = vmatpush.xpose.msra.mxu0 0.0
        %4488 = vmatpush.xpose.msra.mxu0 %v397
        %4489 = vmatmul.f32.gmra.mxu0 %v397
        %v4490 = vpop.f32.mrf.mxu0
        %v4491 = vadd.f32 %v4471, %v4490
        %4492 = vdwg.mxu0
        %4493 = vmatpush.xpose.msra.mxu0 0.0
        %4494 = vmatpush.xpose.msra.mxu0 0.0
        %4495 = vmatpush.xpose.msra.mxu0 0.0
        %4496 = vmatpush.xpose.msra.mxu0 0.0
        %4497 = vmatpush.xpose.msra.mxu0 0.0
        %4498 = vmatpush.xpose.msra.mxu0 0.0
        %4499 = vmatpush.xpose.msra.mxu0 0.0
        %4500 = vmatpush.xpose.msra.mxu0 0.0
        %4501 = vmatpush.xpose.msra.mxu0 0.0
        %4502 = vmatpush.xpose.msra.mxu0 0.0
        %4503 = vmatpush.xpose.msra.mxu0 0.0
        %4504 = vmatpush.xpose.msra.mxu0 0.0
        %4505 = vmatpush.xpose.msra.mxu0 0.0
        %4506 = vmatpush.xpose.msra.mxu0 0.0
        %4507 = vmatpush.xpose.msra.mxu0 0.0
        %4508 = vmatpush.xpose.msra.mxu0 %v398
        %4509 = vmatmul.f32.gmra.mxu0 %v398
        %v4510 = vpop.f32.mrf.mxu0
        %v4511 = vadd.f32 %v4491, %v4510
        %4512 = vdwg.mxu0
        %4513 = vmatpush.xpose.msra.mxu0 0.0
        %4514 = vmatpush.xpose.msra.mxu0 0.0
        %4515 = vmatpush.xpose.msra.mxu0 0.0
        %4516 = vmatpush.xpose.msra.mxu0 0.0
        %4517 = vmatpush.xpose.msra.mxu0 0.0
        %4518 = vmatpush.xpose.msra.mxu0 0.0
        %4519 = vmatpush.xpose.msra.mxu0 0.0
        %4520 = vmatpush.xpose.msra.mxu0 0.0
        %4521 = vmatpush.xpose.msra.mxu0 0.0
        %4522 = vmatpush.xpose.msra.mxu0 0.0
        %4523 = vmatpush.xpose.msra.mxu0 0.0
        %4524 = vmatpush.xpose.msra.mxu0 0.0
        %4525 = vmatpush.xpose.msra.mxu0 0.0
        %4526 = vmatpush.xpose.msra.mxu0 0.0
        %4527 = vmatpush.xpose.msra.mxu0 0.0
        %4528 = vmatpush.xpose.msra.mxu0 %v399
        %4529 = vmatmul.f32.gmra.mxu0 %v399
        %v4530 = vpop.f32.mrf.mxu0
        %v4531 = vadd.f32 %v4511, %v4530
        %4532 = vdwg.mxu0
        %4533 = vmatpush.xpose.msra.mxu0 0.0
        %4534 = vmatpush.xpose.msra.mxu0 0.0
        %4535 = vmatpush.xpose.msra.mxu0 0.0
        %4536 = vmatpush.xpose.msra.mxu0 0.0
        %4537 = vmatpush.xpose.msra.mxu0 0.0
        %4538 = vmatpush.xpose.msra.mxu0 0.0
        %4539 = vmatpush.xpose.msra.mxu0 0.0
        %4540 = vmatpush.xpose.msra.mxu0 0.0
        %4541 = vmatpush.xpose.msra.mxu0 0.0
        %4542 = vmatpush.xpose.msra.mxu0 0.0
        %4543 = vmatpush.xpose.msra.mxu0 0.0
        %4544 = vmatpush.xpose.msra.mxu0 0.0
        %4545 = vmatpush.xpose.msra.mxu0 0.0
        %4546 = vmatpush.xpose.msra.mxu0 0.0
        %4547 = vmatpush.xpose.msra.mxu0 0.0
        %4548 = vmatpush.xpose.msra.mxu0 %v400
        %4549 = vmatmul.f32.gmra.mxu0 %v400
        %v4550 = vpop.f32.mrf.mxu0
        %v4551 = vadd.f32 %v4531, %v4550
        %4552 = vdwg.mxu0
        %4553 = vmatpush.xpose.msra.mxu0 0.0
        %4554 = vmatpush.xpose.msra.mxu0 0.0
        %4555 = vmatpush.xpose.msra.mxu0 0.0
        %4556 = vmatpush.xpose.msra.mxu0 0.0
        %4557 = vmatpush.xpose.msra.mxu0 0.0
        %4558 = vmatpush.xpose.msra.mxu0 0.0
        %4559 = vmatpush.xpose.msra.mxu0 0.0
        %4560 = vmatpush.xpose.msra.mxu0 0.0
        %4561 = vmatpush.xpose.msra.mxu0 0.0
        %4562 = vmatpush.xpose.msra.mxu0 0.0
        %4563 = vmatpush.xpose.msra.mxu0 0.0
        %4564 = vmatpush.xpose.msra.mxu0 0.0
        %4565 = vmatpush.xpose.msra.mxu0 0.0
        %4566 = vmatpush.xpose.msra.mxu0 0.0
        %4567 = vmatpush.xpose.msra.mxu0 0.0
        %4568 = vmatpush.xpose.msra.mxu0 %v401
        %4569 = vmatmul.f32.gmra.mxu0 %v401
        %v4570 = vpop.f32.mrf.mxu0
        %v4571 = vadd.f32 %v4551, %v4570
        %4572 = vdwg.mxu0
        %4573 = vmatpush.xpose.msra.mxu0 0.0
        %4574 = vmatpush.xpose.msra.mxu0 0.0
        %4575 = vmatpush.xpose.msra.mxu0 0.0
        %4576 = vmatpush.xpose.msra.mxu0 0.0
        %4577 = vmatpush.xpose.msra.mxu0 0.0
        %4578 = vmatpush.xpose.msra.mxu0 0.0
        %4579 = vmatpush.xpose.msra.mxu0 0.0
        %4580 = vmatpush.xpose.msra.mxu0 0.0
        %4581 = vmatpush.xpose.msra.mxu0 0.0
        %4582 = vmatpush.xpose.msra.mxu0 0.0
        %4583 = vmatpush.xpose.msra.mxu0 0.0
        %4584 = vmatpush.xpose.msra.mxu0 0.0
        %4585 = vmatpush.xpose.msra.mxu0 0.0
        %4586 = vmatpush.xpose.msra.mxu0 0.0
        %4587 = vmatpush.xpose.msra.mxu0 0.0
        %4588 = vmatpush.xpose.msra.mxu0 %v402
        %4589 = vmatmul.f32.gmra.mxu0 %v402
        %v4590 = vpop.f32.mrf.mxu0
        %v4591 = vadd.f32 %v4571, %v4590
        %4592 = vdwg.mxu0
        %4593 = vmatpush.xpose.msra.mxu0 0.0
        %4594 = vmatpush.xpose.msra.mxu0 0.0
        %4595 = vmatpush.xpose.msra.mxu0 0.0
        %4596 = vmatpush.xpose.msra.mxu0 0.0
        %4597 = vmatpush.xpose.msra.mxu0 0.0
        %4598 = vmatpush.xpose.msra.mxu0 0.0
        %4599 = vmatpush.xpose.msra.mxu0 0.0
        %4600 = vmatpush.xpose.msra.mxu0 0.0
        %4601 = vmatpush.xpose.msra.mxu0 0.0
        %4602 = vmatpush.xpose.msra.mxu0 0.0
        %4603 = vmatpush.xpose.msra.mxu0 0.0
        %4604 = vmatpush.xpose.msra.mxu0 0.0
        %4605 = vmatpush.xpose.msra.mxu0 0.0
        %4606 = vmatpush.xpose.msra.mxu0 0.0
        %4607 = vmatpush.xpose.msra.mxu0 0.0
        %4608 = vmatpush.xpose.msra.mxu0 %v403
        %4609 = vmatmul.f32.gmra.mxu0 %v403
        %v4610 = vpop.f32.mrf.mxu0
        %v4611 = vadd.f32 %v4591, %v4610
        %4612 = vdwg.mxu0
        %4613 = vmatpush.xpose.msra.mxu0 0.0
        %4614 = vmatpush.xpose.msra.mxu0 0.0
        %4615 = vmatpush.xpose.msra.mxu0 0.0
        %4616 = vmatpush.xpose.msra.mxu0 0.0
        %4617 = vmatpush.xpose.msra.mxu0 0.0
        %4618 = vmatpush.xpose.msra.mxu0 0.0
        %4619 = vmatpush.xpose.msra.mxu0 0.0
        %4620 = vmatpush.xpose.msra.mxu0 0.0
        %4621 = vmatpush.xpose.msra.mxu0 0.0
        %4622 = vmatpush.xpose.msra.mxu0 0.0
        %4623 = vmatpush.xpose.msra.mxu0 0.0
        %4624 = vmatpush.xpose.msra.mxu0 0.0
        %4625 = vmatpush.xpose.msra.mxu0 0.0
        %4626 = vmatpush.xpose.msra.mxu0 0.0
        %4627 = vmatpush.xpose.msra.mxu0 0.0
        %4628 = vmatpush.xpose.msra.mxu0 %v404
        %4629 = vmatmul.f32.gmra.mxu0 %v404
        %v4630 = vpop.f32.mrf.mxu0
        %v4631 = vadd.f32 %v4611, %v4630
        %4632 = vdwg.mxu0
        %4633 = vmatpush.xpose.msra.mxu0 0.0
        %4634 = vmatpush.xpose.msra.mxu0 0.0
        %4635 = vmatpush.xpose.msra.mxu0 0.0
        %4636 = vmatpush.xpose.msra.mxu0 0.0
        %4637 = vmatpush.xpose.msra.mxu0 0.0
        %4638 = vmatpush.xpose.msra.mxu0 0.0
        %4639 = vmatpush.xpose.msra.mxu0 0.0
        %4640 = vmatpush.xpose.msra.mxu0 0.0
        %4641 = vmatpush.xpose.msra.mxu0 0.0
        %4642 = vmatpush.xpose.msra.mxu0 0.0
        %4643 = vmatpush.xpose.msra.mxu0 0.0
        %4644 = vmatpush.xpose.msra.mxu0 0.0
        %4645 = vmatpush.xpose.msra.mxu0 0.0
        %4646 = vmatpush.xpose.msra.mxu0 0.0
        %4647 = vmatpush.xpose.msra.mxu0 0.0
        %4648 = vmatpush.xpose.msra.mxu0 %v405
        %4649 = vmatmul.f32.gmra.mxu0 %v405
        %v4650 = vpop.f32.mrf.mxu0
        %v4651 = vadd.f32 %v4631, %v4650
        %4652 = vdwg.mxu0
        %4653 = vmatpush.xpose.msra.mxu0 0.0
        %4654 = vmatpush.xpose.msra.mxu0 0.0
        %4655 = vmatpush.xpose.msra.mxu0 0.0
        %4656 = vmatpush.xpose.msra.mxu0 0.0
        %4657 = vmatpush.xpose.msra.mxu0 0.0
        %4658 = vmatpush.xpose.msra.mxu0 0.0
        %4659 = vmatpush.xpose.msra.mxu0 0.0
        %4660 = vmatpush.xpose.msra.mxu0 0.0
        %4661 = vmatpush.xpose.msra.mxu0 0.0
        %4662 = vmatpush.xpose.msra.mxu0 0.0
        %4663 = vmatpush.xpose.msra.mxu0 0.0
        %4664 = vmatpush.xpose.msra.mxu0 0.0
        %4665 = vmatpush.xpose.msra.mxu0 0.0
        %4666 = vmatpush.xpose.msra.mxu0 0.0
        %4667 = vmatpush.xpose.msra.mxu0 0.0
        %4668 = vmatpush.xpose.msra.mxu0 %v406
        %4669 = vmatmul.f32.gmra.mxu0 %v406
        %v4670 = vpop.f32.mrf.mxu0
        %v4671 = vadd.f32 %v4651, %v4670
        %4672 = vdwg.mxu0
        %4673 = vmatpush.xpose.msra.mxu0 0.0
        %4674 = vmatpush.xpose.msra.mxu0 0.0
        %4675 = vmatpush.xpose.msra.mxu0 0.0
        %4676 = vmatpush.xpose.msra.mxu0 0.0
        %4677 = vmatpush.xpose.msra.mxu0 0.0
        %4678 = vmatpush.xpose.msra.mxu0 0.0
        %4679 = vmatpush.xpose.msra.mxu0 0.0
        %4680 = vmatpush.xpose.msra.mxu0 0.0
        %4681 = vmatpush.xpose.msra.mxu0 0.0
        %4682 = vmatpush.xpose.msra.mxu0 0.0
        %4683 = vmatpush.xpose.msra.mxu0 0.0
        %4684 = vmatpush.xpose.msra.mxu0 0.0
        %4685 = vmatpush.xpose.msra.mxu0 0.0
        %4686 = vmatpush.xpose.msra.mxu0 0.0
        %4687 = vmatpush.xpose.msra.mxu0 0.0
        %4688 = vmatpush.xpose.msra.mxu0 %v407
        %4689 = vmatmul.f32.gmra.mxu0 %v407
        %v4690 = vpop.f32.mrf.mxu0
        %v4691 = vadd.f32 %v4671, %v4690
        %4692 = vdwg.mxu0
        %4693 = vmatpush.xpose.msra.mxu0 0.0
        %4694 = vmatpush.xpose.msra.mxu0 0.0
        %4695 = vmatpush.xpose.msra.mxu0 0.0
        %4696 = vmatpush.xpose.msra.mxu0 0.0
        %4697 = vmatpush.xpose.msra.mxu0 0.0
        %4698 = vmatpush.xpose.msra.mxu0 0.0
        %4699 = vmatpush.xpose.msra.mxu0 0.0
        %4700 = vmatpush.xpose.msra.mxu0 0.0
        %4701 = vmatpush.xpose.msra.mxu0 0.0
        %4702 = vmatpush.xpose.msra.mxu0 0.0
        %4703 = vmatpush.xpose.msra.mxu0 0.0
        %4704 = vmatpush.xpose.msra.mxu0 0.0
        %4705 = vmatpush.xpose.msra.mxu0 0.0
        %4706 = vmatpush.xpose.msra.mxu0 0.0
        %4707 = vmatpush.xpose.msra.mxu0 0.0
        %4708 = vmatpush.xpose.msra.mxu0 %v408
        %4709 = vmatmul.f32.gmra.mxu0 %v408
        %v4710 = vpop.f32.mrf.mxu0
        %v4711 = vadd.f32 %v4691, %v4710
        %4712 = vdwg.mxu0
        %4713 = vmatpush.xpose.msra.mxu0 0.0
        %4714 = vmatpush.xpose.msra.mxu0 0.0
        %4715 = vmatpush.xpose.msra.mxu0 0.0
        %4716 = vmatpush.xpose.msra.mxu0 0.0
        %4717 = vmatpush.xpose.msra.mxu0 0.0
        %4718 = vmatpush.xpose.msra.mxu0 0.0
        %4719 = vmatpush.xpose.msra.mxu0 0.0
        %4720 = vmatpush.xpose.msra.mxu0 0.0
        %4721 = vmatpush.xpose.msra.mxu0 0.0
        %4722 = vmatpush.xpose.msra.mxu0 0.0
        %4723 = vmatpush.xpose.msra.mxu0 0.0
        %4724 = vmatpush.xpose.msra.mxu0 0.0
        %4725 = vmatpush.xpose.msra.mxu0 0.0
        %4726 = vmatpush.xpose.msra.mxu0 0.0
        %4727 = vmatpush.xpose.msra.mxu0 0.0
        %4728 = vmatpush.xpose.msra.mxu0 %v409
        %4729 = vmatmul.f32.gmra.mxu0 %v409
        %v4730 = vpop.f32.mrf.mxu0
        %v4731 = vadd.f32 %v4711, %v4730
        %4732 = vdwg.mxu0
        %4733 = vmatpush.xpose.msra.mxu0 0.0
        %4734 = vmatpush.xpose.msra.mxu0 0.0
        %4735 = vmatpush.xpose.msra.mxu0 0.0
        %4736 = vmatpush.xpose.msra.mxu0 0.0
        %4737 = vmatpush.xpose.msra.mxu0 0.0
        %4738 = vmatpush.xpose.msra.mxu0 0.0
        %4739 = vmatpush.xpose.msra.mxu0 0.0
        %4740 = vmatpush.xpose.msra.mxu0 0.0
        %4741 = vmatpush.xpose.msra.mxu0 0.0
        %4742 = vmatpush.xpose.msra.mxu0 0.0
        %4743 = vmatpush.xpose.msra.mxu0 0.0
        %4744 = vmatpush.xpose.msra.mxu0 0.0
        %4745 = vmatpush.xpose.msra.mxu0 0.0
        %4746 = vmatpush.xpose.msra.mxu0 0.0
        %4747 = vmatpush.xpose.msra.mxu0 0.0
        %4748 = vmatpush.xpose.msra.mxu0 %v410
        %4749 = vmatmul.f32.gmra.mxu0 %v410
        %v4750 = vpop.f32.mrf.mxu0
        %v4751 = vadd.f32 %v4731, %v4750
        %4752 = vdwg.mxu0
        %4753 = vmatpush.xpose.msra.mxu0 0.0
        %4754 = vmatpush.xpose.msra.mxu0 0.0
        %4755 = vmatpush.xpose.msra.mxu0 0.0
        %4756 = vmatpush.xpose.msra.mxu0 0.0
        %4757 = vmatpush.xpose.msra.mxu0 0.0
        %4758 = vmatpush.xpose.msra.mxu0 0.0
        %4759 = vmatpush.xpose.msra.mxu0 0.0
        %4760 = vmatpush.xpose.msra.mxu0 0.0
        %4761 = vmatpush.xpose.msra.mxu0 0.0
        %4762 = vmatpush.xpose.msra.mxu0 0.0
        %4763 = vmatpush.xpose.msra.mxu0 0.0
        %4764 = vmatpush.xpose.msra.mxu0 0.0
        %4765 = vmatpush.xpose.msra.mxu0 0.0
        %4766 = vmatpush.xpose.msra.mxu0 0.0
        %4767 = vmatpush.xpose.msra.mxu0 0.0
        %4768 = vmatpush.xpose.msra.mxu0 %v411
        %4769 = vmatmul.f32.gmra.mxu0 %v411
        %v4770 = vpop.f32.mrf.mxu0
        %v4771 = vadd.f32 %v4751, %v4770
        %4772 = vdwg.mxu0
        %4773 = vmatpush.xpose.msra.mxu0 0.0
        %4774 = vmatpush.xpose.msra.mxu0 0.0
        %4775 = vmatpush.xpose.msra.mxu0 0.0
        %4776 = vmatpush.xpose.msra.mxu0 0.0
        %4777 = vmatpush.xpose.msra.mxu0 0.0
        %4778 = vmatpush.xpose.msra.mxu0 0.0
        %4779 = vmatpush.xpose.msra.mxu0 0.0
        %4780 = vmatpush.xpose.msra.mxu0 0.0
        %4781 = vmatpush.xpose.msra.mxu0 0.0
        %4782 = vmatpush.xpose.msra.mxu0 0.0
        %4783 = vmatpush.xpose.msra.mxu0 0.0
        %4784 = vmatpush.xpose.msra.mxu0 0.0
        %4785 = vmatpush.xpose.msra.mxu0 0.0
        %4786 = vmatpush.xpose.msra.mxu0 0.0
        %4787 = vmatpush.xpose.msra.mxu0 0.0
        %4788 = vmatpush.xpose.msra.mxu0 %v412
        %4789 = vmatmul.f32.gmra.mxu0 %v412
        %v4790 = vpop.f32.mrf.mxu0
        %v4791 = vadd.f32 %v4771, %v4790
        %4792 = vdwg.mxu0
        %4793 = vmatpush.xpose.msra.mxu0 0.0
        %4794 = vmatpush.xpose.msra.mxu0 0.0
        %4795 = vmatpush.xpose.msra.mxu0 0.0
        %4796 = vmatpush.xpose.msra.mxu0 0.0
        %4797 = vmatpush.xpose.msra.mxu0 0.0
        %4798 = vmatpush.xpose.msra.mxu0 0.0
        %4799 = vmatpush.xpose.msra.mxu0 0.0
        %4800 = vmatpush.xpose.msra.mxu0 0.0
        %4801 = vmatpush.xpose.msra.mxu0 0.0
        %4802 = vmatpush.xpose.msra.mxu0 0.0
        %4803 = vmatpush.xpose.msra.mxu0 0.0
        %4804 = vmatpush.xpose.msra.mxu0 0.0
        %4805 = vmatpush.xpose.msra.mxu0 0.0
        %4806 = vmatpush.xpose.msra.mxu0 0.0
        %4807 = vmatpush.xpose.msra.mxu0 0.0
        %4808 = vmatpush.xpose.msra.mxu0 %v413
        %4809 = vmatmul.f32.gmra.mxu0 %v413
        %v4810 = vpop.f32.mrf.mxu0
        %v4811 = vadd.f32 %v4791, %v4810
        %4812 = vdwg.mxu0
        %4813 = vmatpush.xpose.msra.mxu0 0.0
        %4814 = vmatpush.xpose.msra.mxu0 0.0
        %4815 = vmatpush.xpose.msra.mxu0 0.0
        %4816 = vmatpush.xpose.msra.mxu0 0.0
        %4817 = vmatpush.xpose.msra.mxu0 0.0
        %4818 = vmatpush.xpose.msra.mxu0 0.0
        %4819 = vmatpush.xpose.msra.mxu0 0.0
        %4820 = vmatpush.xpose.msra.mxu0 0.0
        %4821 = vmatpush.xpose.msra.mxu0 0.0
        %4822 = vmatpush.xpose.msra.mxu0 0.0
        %4823 = vmatpush.xpose.msra.mxu0 0.0
        %4824 = vmatpush.xpose.msra.mxu0 0.0
        %4825 = vmatpush.xpose.msra.mxu0 0.0
        %4826 = vmatpush.xpose.msra.mxu0 0.0
        %4827 = vmatpush.xpose.msra.mxu0 0.0
        %4828 = vmatpush.xpose.msra.mxu0 %v414
        %4829 = vmatmul.f32.gmra.mxu0 %v414
        %v4830 = vpop.f32.mrf.mxu0
        %v4831 = vadd.f32 %v4811, %v4830
        %4832 = vdwg.mxu0
        %4833 = vmatpush.xpose.msra.mxu0 0.0
        %4834 = vmatpush.xpose.msra.mxu0 0.0
        %4835 = vmatpush.xpose.msra.mxu0 0.0
        %4836 = vmatpush.xpose.msra.mxu0 0.0
        %4837 = vmatpush.xpose.msra.mxu0 0.0
        %4838 = vmatpush.xpose.msra.mxu0 0.0
        %4839 = vmatpush.xpose.msra.mxu0 0.0
        %4840 = vmatpush.xpose.msra.mxu0 0.0
        %4841 = vmatpush.xpose.msra.mxu0 0.0
        %4842 = vmatpush.xpose.msra.mxu0 0.0
        %4843 = vmatpush.xpose.msra.mxu0 0.0
        %4844 = vmatpush.xpose.msra.mxu0 0.0
        %4845 = vmatpush.xpose.msra.mxu0 0.0
        %4846 = vmatpush.xpose.msra.mxu0 0.0
        %4847 = vmatpush.xpose.msra.mxu0 0.0
        %4848 = vmatpush.xpose.msra.mxu0 %v415
        %4849 = vmatmul.f32.gmra.mxu0 %v415
        %v4850 = vpop.f32.mrf.mxu0
        %v4851 = vadd.f32 %v4831, %v4850
        %4852 = vdwg.mxu0
        %4853 = vmatpush.xpose.msra.mxu0 0.0
        %4854 = vmatpush.xpose.msra.mxu0 0.0
        %4855 = vmatpush.xpose.msra.mxu0 0.0
        %4856 = vmatpush.xpose.msra.mxu0 0.0
        %4857 = vmatpush.xpose.msra.mxu0 0.0
        %4858 = vmatpush.xpose.msra.mxu0 0.0
        %4859 = vmatpush.xpose.msra.mxu0 0.0
        %4860 = vmatpush.xpose.msra.mxu0 0.0
        %4861 = vmatpush.xpose.msra.mxu0 0.0
        %4862 = vmatpush.xpose.msra.mxu0 0.0
        %4863 = vmatpush.xpose.msra.mxu0 0.0
        %4864 = vmatpush.xpose.msra.mxu0 0.0
        %4865 = vmatpush.xpose.msra.mxu0 0.0
        %4866 = vmatpush.xpose.msra.mxu0 0.0
        %4867 = vmatpush.xpose.msra.mxu0 0.0
        %4868 = vmatpush.xpose.msra.mxu0 %v416
        %4869 = vmatmul.f32.gmra.mxu0 %v416
        %v4870 = vpop.f32.mrf.mxu0
        %v4871 = vadd.f32 %v4851, %v4870
        %4872 = vdwg.mxu0
        %4873 = vmatpush.xpose.msra.mxu0 0.0
        %4874 = vmatpush.xpose.msra.mxu0 0.0
        %4875 = vmatpush.xpose.msra.mxu0 0.0
        %4876 = vmatpush.xpose.msra.mxu0 0.0
        %4877 = vmatpush.xpose.msra.mxu0 0.0
        %4878 = vmatpush.xpose.msra.mxu0 0.0
        %4879 = vmatpush.xpose.msra.mxu0 0.0
        %4880 = vmatpush.xpose.msra.mxu0 0.0
        %4881 = vmatpush.xpose.msra.mxu0 0.0
        %4882 = vmatpush.xpose.msra.mxu0 0.0
        %4883 = vmatpush.xpose.msra.mxu0 0.0
        %4884 = vmatpush.xpose.msra.mxu0 0.0
        %4885 = vmatpush.xpose.msra.mxu0 0.0
        %4886 = vmatpush.xpose.msra.mxu0 0.0
        %4887 = vmatpush.xpose.msra.mxu0 0.0
        %4888 = vmatpush.xpose.msra.mxu0 %v417
        %4889 = vmatmul.f32.gmra.mxu0 %v417
        %v4890 = vpop.f32.mrf.mxu0
        %v4891 = vadd.f32 %v4871, %v4890
        %4892 = vdwg.mxu0
        %4893 = vmatpush.xpose.msra.mxu0 0.0
        %4894 = vmatpush.xpose.msra.mxu0 0.0
        %4895 = vmatpush.xpose.msra.mxu0 0.0
        %4896 = vmatpush.xpose.msra.mxu0 0.0
        %4897 = vmatpush.xpose.msra.mxu0 0.0
        %4898 = vmatpush.xpose.msra.mxu0 0.0
        %4899 = vmatpush.xpose.msra.mxu0 0.0
        %4900 = vmatpush.xpose.msra.mxu0 0.0
        %4901 = vmatpush.xpose.msra.mxu0 0.0
        %4902 = vmatpush.xpose.msra.mxu0 0.0
        %4903 = vmatpush.xpose.msra.mxu0 0.0
        %4904 = vmatpush.xpose.msra.mxu0 0.0
        %4905 = vmatpush.xpose.msra.mxu0 0.0
        %4906 = vmatpush.xpose.msra.mxu0 0.0
        %4907 = vmatpush.xpose.msra.mxu0 0.0
        %4908 = vmatpush.xpose.msra.mxu0 %v418
        %4909 = vmatmul.f32.gmra.mxu0 %v418
        %v4910 = vpop.f32.mrf.mxu0
        %v4911 = vadd.f32 %v4891, %v4910
        %4912 = vdwg.mxu0
        %4913 = vmatpush.xpose.msra.mxu0 0.0
        %4914 = vmatpush.xpose.msra.mxu0 0.0
        %4915 = vmatpush.xpose.msra.mxu0 0.0
        %4916 = vmatpush.xpose.msra.mxu0 0.0
        %4917 = vmatpush.xpose.msra.mxu0 0.0
        %4918 = vmatpush.xpose.msra.mxu0 0.0
        %4919 = vmatpush.xpose.msra.mxu0 0.0
        %4920 = vmatpush.xpose.msra.mxu0 0.0
        %4921 = vmatpush.xpose.msra.mxu0 0.0
        %4922 = vmatpush.xpose.msra.mxu0 0.0
        %4923 = vmatpush.xpose.msra.mxu0 0.0
        %4924 = vmatpush.xpose.msra.mxu0 0.0
        %4925 = vmatpush.xpose.msra.mxu0 0.0
        %4926 = vmatpush.xpose.msra.mxu0 0.0
        %4927 = vmatpush.xpose.msra.mxu0 0.0
        %4928 = vmatpush.xpose.msra.mxu0 %v419
        %4929 = vmatmul.f32.gmra.mxu0 %v419
        %v4930 = vpop.f32.mrf.mxu0
        %v4931 = vadd.f32 %v4911, %v4930
        %4932 = vdwg.mxu0
        %4933 = vmatpush.xpose.msra.mxu0 0.0
        %4934 = vmatpush.xpose.msra.mxu0 0.0
        %4935 = vmatpush.xpose.msra.mxu0 0.0
        %4936 = vmatpush.xpose.msra.mxu0 0.0
        %4937 = vmatpush.xpose.msra.mxu0 0.0
        %4938 = vmatpush.xpose.msra.mxu0 0.0
        %4939 = vmatpush.xpose.msra.mxu0 0.0
        %4940 = vmatpush.xpose.msra.mxu0 0.0
        %4941 = vmatpush.xpose.msra.mxu0 0.0
        %4942 = vmatpush.xpose.msra.mxu0 0.0
        %4943 = vmatpush.xpose.msra.mxu0 0.0
        %4944 = vmatpush.xpose.msra.mxu0 0.0
        %4945 = vmatpush.xpose.msra.mxu0 0.0
        %4946 = vmatpush.xpose.msra.mxu0 0.0
        %4947 = vmatpush.xpose.msra.mxu0 0.0
        %4948 = vmatpush.xpose.msra.mxu0 %v420
        %4949 = vmatmul.f32.gmra.mxu0 %v420
        %v4950 = vpop.f32.mrf.mxu0
        %v4951 = vadd.f32 %v4931, %v4950
        %4952 = vdwg.mxu0
        %4953 = vmatpush.xpose.msra.mxu0 0.0
        %4954 = vmatpush.xpose.msra.mxu0 0.0
        %4955 = vmatpush.xpose.msra.mxu0 0.0
        %4956 = vmatpush.xpose.msra.mxu0 0.0
        %4957 = vmatpush.xpose.msra.mxu0 0.0
        %4958 = vmatpush.xpose.msra.mxu0 0.0
        %4959 = vmatpush.xpose.msra.mxu0 0.0
        %4960 = vmatpush.xpose.msra.mxu0 0.0
        %4961 = vmatpush.xpose.msra.mxu0 0.0
        %4962 = vmatpush.xpose.msra.mxu0 0.0
        %4963 = vmatpush.xpose.msra.mxu0 0.0
        %4964 = vmatpush.xpose.msra.mxu0 0.0
        %4965 = vmatpush.xpose.msra.mxu0 0.0
        %4966 = vmatpush.xpose.msra.mxu0 0.0
        %4967 = vmatpush.xpose.msra.mxu0 0.0
        %4968 = vmatpush.xpose.msra.mxu0 %v421
        %4969 = vmatmul.f32.gmra.mxu0 %v421
        %v4970 = vpop.f32.mrf.mxu0
        %v4971 = vadd.f32 %v4951, %v4970
        %4972 = vdwg.mxu0
        %4973 = vmatpush.xpose.msra.mxu0 0.0
        %4974 = vmatpush.xpose.msra.mxu0 0.0
        %4975 = vmatpush.xpose.msra.mxu0 0.0
        %4976 = vmatpush.xpose.msra.mxu0 0.0
        %4977 = vmatpush.xpose.msra.mxu0 0.0
        %4978 = vmatpush.xpose.msra.mxu0 0.0
        %4979 = vmatpush.xpose.msra.mxu0 0.0
        %4980 = vmatpush.xpose.msra.mxu0 0.0
        %4981 = vmatpush.xpose.msra.mxu0 0.0
        %4982 = vmatpush.xpose.msra.mxu0 0.0
        %4983 = vmatpush.xpose.msra.mxu0 0.0
        %4984 = vmatpush.xpose.msra.mxu0 0.0
        %4985 = vmatpush.xpose.msra.mxu0 0.0
        %4986 = vmatpush.xpose.msra.mxu0 0.0
        %4987 = vmatpush.xpose.msra.mxu0 0.0
        %4988 = vmatpush.xpose.msra.mxu0 %v422
        %4989 = vmatmul.f32.gmra.mxu0 %v422
        %v4990 = vpop.f32.mrf.mxu0
        %v4991 = vadd.f32 %v4971, %v4990
        %4992 = vdwg.mxu0
        %4993 = vmatpush.xpose.msra.mxu0 0.0
        %4994 = vmatpush.xpose.msra.mxu0 0.0
        %4995 = vmatpush.xpose.msra.mxu0 0.0
        %4996 = vmatpush.xpose.msra.mxu0 0.0
        %4997 = vmatpush.xpose.msra.mxu0 0.0
        %4998 = vmatpush.xpose.msra.mxu0 0.0
        %4999 = vmatpush.xpose.msra.mxu0 0.0
        %5000 = vmatpush.xpose.msra.mxu0 0.0
        %5001 = vmatpush.xpose.msra.mxu0 0.0
        %5002 = vmatpush.xpose.msra.mxu0 0.0
        %5003 = vmatpush.xpose.msra.mxu0 0.0
        %5004 = vmatpush.xpose.msra.mxu0 0.0
        %5005 = vmatpush.xpose.msra.mxu0 0.0
        %5006 = vmatpush.xpose.msra.mxu0 0.0
        %5007 = vmatpush.xpose.msra.mxu0 0.0
        %5008 = vmatpush.xpose.msra.mxu0 %v423
        %5009 = vmatmul.f32.gmra.mxu0 %v423
        %v5010 = vpop.f32.mrf.mxu0
        %v5011 = vadd.f32 %v4991, %v5010
        %5012 = vdwg.mxu0
        %5013 = vmatpush.xpose.msra.mxu0 0.0
        %5014 = vmatpush.xpose.msra.mxu0 0.0
        %5015 = vmatpush.xpose.msra.mxu0 0.0
        %5016 = vmatpush.xpose.msra.mxu0 0.0
        %5017 = vmatpush.xpose.msra.mxu0 0.0
        %5018 = vmatpush.xpose.msra.mxu0 0.0
        %5019 = vmatpush.xpose.msra.mxu0 0.0
        %5020 = vmatpush.xpose.msra.mxu0 0.0
        %5021 = vmatpush.xpose.msra.mxu0 0.0
        %5022 = vmatpush.xpose.msra.mxu0 0.0
        %5023 = vmatpush.xpose.msra.mxu0 0.0
        %5024 = vmatpush.xpose.msra.mxu0 0.0
        %5025 = vmatpush.xpose.msra.mxu0 0.0
        %5026 = vmatpush.xpose.msra.mxu0 0.0
        %5027 = vmatpush.xpose.msra.mxu0 0.0
        %5028 = vmatpush.xpose.msra.mxu0 %v424
        %5029 = vmatmul.f32.gmra.mxu0 %v424
        %v5030 = vpop.f32.mrf.mxu0
        %v5031 = vadd.f32 %v5011, %v5030
        %5032 = vdwg.mxu0
        %5033 = vmatpush.xpose.msra.mxu0 0.0
        %5034 = vmatpush.xpose.msra.mxu0 0.0
        %5035 = vmatpush.xpose.msra.mxu0 0.0
        %5036 = vmatpush.xpose.msra.mxu0 0.0
        %5037 = vmatpush.xpose.msra.mxu0 0.0
        %5038 = vmatpush.xpose.msra.mxu0 0.0
        %5039 = vmatpush.xpose.msra.mxu0 0.0
        %5040 = vmatpush.xpose.msra.mxu0 0.0
        %5041 = vmatpush.xpose.msra.mxu0 0.0
        %5042 = vmatpush.xpose.msra.mxu0 0.0
        %5043 = vmatpush.xpose.msra.mxu0 0.0
        %5044 = vmatpush.xpose.msra.mxu0 0.0
        %5045 = vmatpush.xpose.msra.mxu0 0.0
        %5046 = vmatpush.xpose.msra.mxu0 0.0
        %5047 = vmatpush.xpose.msra.mxu0 0.0
        %5048 = vmatpush.xpose.msra.mxu0 %v425
        %5049 = vmatmul.f32.gmra.mxu0 %v425
        %v5050 = vpop.f32.mrf.mxu0
        %v5051 = vadd.f32 %v5031, %v5050
        %5052 = vdwg.mxu0
        %5053 = vmatpush.xpose.msra.mxu0 0.0
        %5054 = vmatpush.xpose.msra.mxu0 0.0
        %5055 = vmatpush.xpose.msra.mxu0 0.0
        %5056 = vmatpush.xpose.msra.mxu0 0.0
        %5057 = vmatpush.xpose.msra.mxu0 0.0
        %5058 = vmatpush.xpose.msra.mxu0 0.0
        %5059 = vmatpush.xpose.msra.mxu0 0.0
        %5060 = vmatpush.xpose.msra.mxu0 0.0
        %5061 = vmatpush.xpose.msra.mxu0 0.0
        %5062 = vmatpush.xpose.msra.mxu0 0.0
        %5063 = vmatpush.xpose.msra.mxu0 0.0
        %5064 = vmatpush.xpose.msra.mxu0 0.0
        %5065 = vmatpush.xpose.msra.mxu0 0.0
        %5066 = vmatpush.xpose.msra.mxu0 0.0
        %5067 = vmatpush.xpose.msra.mxu0 0.0
        %5068 = vmatpush.xpose.msra.mxu0 %v426
        %5069 = vmatmul.f32.gmra.mxu0 %v426
        %v5070 = vpop.f32.mrf.mxu0
        %v5071 = vadd.f32 %v5051, %v5070
        %5072 = vdwg.mxu0
        %5073 = vmatpush.xpose.msra.mxu0 0.0
        %5074 = vmatpush.xpose.msra.mxu0 0.0
        %5075 = vmatpush.xpose.msra.mxu0 0.0
        %5076 = vmatpush.xpose.msra.mxu0 0.0
        %5077 = vmatpush.xpose.msra.mxu0 0.0
        %5078 = vmatpush.xpose.msra.mxu0 0.0
        %5079 = vmatpush.xpose.msra.mxu0 0.0
        %5080 = vmatpush.xpose.msra.mxu0 0.0
        %5081 = vmatpush.xpose.msra.mxu0 0.0
        %5082 = vmatpush.xpose.msra.mxu0 0.0
        %5083 = vmatpush.xpose.msra.mxu0 0.0
        %5084 = vmatpush.xpose.msra.mxu0 0.0
        %5085 = vmatpush.xpose.msra.mxu0 0.0
        %5086 = vmatpush.xpose.msra.mxu0 0.0
        %5087 = vmatpush.xpose.msra.mxu0 0.0
        %5088 = vmatpush.xpose.msra.mxu0 %v427
        %5089 = vmatmul.f32.gmra.mxu0 %v427
        %v5090 = vpop.f32.mrf.mxu0
        %v5091 = vadd.f32 %v5071, %v5090
        %5092 = vdwg.mxu0
        %5093 = vmatpush.xpose.msra.mxu0 0.0
        %5094 = vmatpush.xpose.msra.mxu0 0.0
        %5095 = vmatpush.xpose.msra.mxu0 0.0
        %5096 = vmatpush.xpose.msra.mxu0 0.0
        %5097 = vmatpush.xpose.msra.mxu0 0.0
        %5098 = vmatpush.xpose.msra.mxu0 0.0
        %5099 = vmatpush.xpose.msra.mxu0 0.0
        %5100 = vmatpush.xpose.msra.mxu0 0.0
        %5101 = vmatpush.xpose.msra.mxu0 0.0
        %5102 = vmatpush.xpose.msra.mxu0 0.0
        %5103 = vmatpush.xpose.msra.mxu0 0.0
        %5104 = vmatpush.xpose.msra.mxu0 0.0
        %5105 = vmatpush.xpose.msra.mxu0 0.0
        %5106 = vmatpush.xpose.msra.mxu0 0.0
        %5107 = vmatpush.xpose.msra.mxu0 0.0
        %5108 = vmatpush.xpose.msra.mxu0 %v428
        %5109 = vmatmul.f32.gmra.mxu0 %v428
        %v5110 = vpop.f32.mrf.mxu0
        %v5111 = vadd.f32 %v5091, %v5110
        %5112 = vdwg.mxu0
        %5113 = vmatpush.xpose.msra.mxu0 0.0
        %5114 = vmatpush.xpose.msra.mxu0 0.0
        %5115 = vmatpush.xpose.msra.mxu0 0.0
        %5116 = vmatpush.xpose.msra.mxu0 0.0
        %5117 = vmatpush.xpose.msra.mxu0 0.0
        %5118 = vmatpush.xpose.msra.mxu0 0.0
        %5119 = vmatpush.xpose.msra.mxu0 0.0
        %5120 = vmatpush.xpose.msra.mxu0 0.0
        %5121 = vmatpush.xpose.msra.mxu0 0.0
        %5122 = vmatpush.xpose.msra.mxu0 0.0
        %5123 = vmatpush.xpose.msra.mxu0 0.0
        %5124 = vmatpush.xpose.msra.mxu0 0.0
        %5125 = vmatpush.xpose.msra.mxu0 0.0
        %5126 = vmatpush.xpose.msra.mxu0 0.0
        %5127 = vmatpush.xpose.msra.mxu0 0.0
        %5128 = vmatpush.xpose.msra.mxu0 %v429
        %5129 = vmatmul.f32.gmra.mxu0 %v429
        %v5130 = vpop.f32.mrf.mxu0
        %v5131 = vadd.f32 %v5111, %v5130
        %5132 = vdwg.mxu0
        %5133 = vmatpush.xpose.msra.mxu0 0.0
        %5134 = vmatpush.xpose.msra.mxu0 0.0
        %5135 = vmatpush.xpose.msra.mxu0 0.0
        %5136 = vmatpush.xpose.msra.mxu0 0.0
        %5137 = vmatpush.xpose.msra.mxu0 0.0
        %5138 = vmatpush.xpose.msra.mxu0 0.0
        %5139 = vmatpush.xpose.msra.mxu0 0.0
        %5140 = vmatpush.xpose.msra.mxu0 0.0
        %5141 = vmatpush.xpose.msra.mxu0 0.0
        %5142 = vmatpush.xpose.msra.mxu0 0.0
        %5143 = vmatpush.xpose.msra.mxu0 0.0
        %5144 = vmatpush.xpose.msra.mxu0 0.0
        %5145 = vmatpush.xpose.msra.mxu0 0.0
        %5146 = vmatpush.xpose.msra.mxu0 0.0
        %5147 = vmatpush.xpose.msra.mxu0 0.0
        %5148 = vmatpush.xpose.msra.mxu0 %v430
        %5149 = vmatmul.f32.gmra.mxu0 %v430
        %v5150 = vpop.f32.mrf.mxu0
        %v5151 = vadd.f32 %v5131, %v5150
        %5152 = vdwg.mxu0
        %5153 = vmatpush.xpose.msra.mxu0 0.0
        %5154 = vmatpush.xpose.msra.mxu0 0.0
        %5155 = vmatpush.xpose.msra.mxu0 0.0
        %5156 = vmatpush.xpose.msra.mxu0 0.0
        %5157 = vmatpush.xpose.msra.mxu0 0.0
        %5158 = vmatpush.xpose.msra.mxu0 0.0
        %5159 = vmatpush.xpose.msra.mxu0 0.0
        %5160 = vmatpush.xpose.msra.mxu0 0.0
        %5161 = vmatpush.xpose.msra.mxu0 0.0
        %5162 = vmatpush.xpose.msra.mxu0 0.0
        %5163 = vmatpush.xpose.msra.mxu0 0.0
        %5164 = vmatpush.xpose.msra.mxu0 0.0
        %5165 = vmatpush.xpose.msra.mxu0 0.0
        %5166 = vmatpush.xpose.msra.mxu0 0.0
        %5167 = vmatpush.xpose.msra.mxu0 0.0
        %5168 = vmatpush.xpose.msra.mxu0 %v431
        %5169 = vmatmul.f32.gmra.mxu0 %v431
        %v5170 = vpop.f32.mrf.mxu0
        %v5171 = vadd.f32 %v5151, %v5170
        %5172 = vdwg.mxu0
        %5173 = vmatpush.xpose.msra.mxu0 0.0
        %5174 = vmatpush.xpose.msra.mxu0 0.0
        %5175 = vmatpush.xpose.msra.mxu0 0.0
        %5176 = vmatpush.xpose.msra.mxu0 0.0
        %5177 = vmatpush.xpose.msra.mxu0 0.0
        %5178 = vmatpush.xpose.msra.mxu0 0.0
        %5179 = vmatpush.xpose.msra.mxu0 0.0
        %5180 = vmatpush.xpose.msra.mxu0 0.0
        %5181 = vmatpush.xpose.msra.mxu0 0.0
        %5182 = vmatpush.xpose.msra.mxu0 0.0
        %5183 = vmatpush.xpose.msra.mxu0 0.0
        %5184 = vmatpush.xpose.msra.mxu0 0.0
        %5185 = vmatpush.xpose.msra.mxu0 0.0
        %5186 = vmatpush.xpose.msra.mxu0 0.0
        %5187 = vmatpush.xpose.msra.mxu0 0.0
        %5188 = vmatpush.xpose.msra.mxu0 %v432
        %5189 = vmatmul.f32.gmra.mxu0 %v432
        %v5190 = vpop.f32.mrf.mxu0
        %v5191 = vadd.f32 %v5171, %v5190
        %5192 = vdwg.mxu0
        %5193 = vmatpush.xpose.msra.mxu0 0.0
        %5194 = vmatpush.xpose.msra.mxu0 0.0
        %5195 = vmatpush.xpose.msra.mxu0 0.0
        %5196 = vmatpush.xpose.msra.mxu0 0.0
        %5197 = vmatpush.xpose.msra.mxu0 0.0
        %5198 = vmatpush.xpose.msra.mxu0 0.0
        %5199 = vmatpush.xpose.msra.mxu0 0.0
        %5200 = vmatpush.xpose.msra.mxu0 0.0
        %5201 = vmatpush.xpose.msra.mxu0 0.0
        %5202 = vmatpush.xpose.msra.mxu0 0.0
        %5203 = vmatpush.xpose.msra.mxu0 0.0
        %5204 = vmatpush.xpose.msra.mxu0 0.0
        %5205 = vmatpush.xpose.msra.mxu0 0.0
        %5206 = vmatpush.xpose.msra.mxu0 0.0
        %5207 = vmatpush.xpose.msra.mxu0 0.0
        %5208 = vmatpush.xpose.msra.mxu0 %v433
        %5209 = vmatmul.f32.gmra.mxu0 %v433
        %v5210 = vpop.f32.mrf.mxu0
        %v5211 = vadd.f32 %v5191, %v5210
        %5212 = vdwg.mxu0
        %5213 = vmatpush.xpose.msra.mxu0 0.0
        %5214 = vmatpush.xpose.msra.mxu0 0.0
        %5215 = vmatpush.xpose.msra.mxu0 0.0
        %5216 = vmatpush.xpose.msra.mxu0 0.0
        %5217 = vmatpush.xpose.msra.mxu0 0.0
        %5218 = vmatpush.xpose.msra.mxu0 0.0
        %5219 = vmatpush.xpose.msra.mxu0 0.0
        %5220 = vmatpush.xpose.msra.mxu0 0.0
        %5221 = vmatpush.xpose.msra.mxu0 0.0
        %5222 = vmatpush.xpose.msra.mxu0 0.0
        %5223 = vmatpush.xpose.msra.mxu0 0.0
        %5224 = vmatpush.xpose.msra.mxu0 0.0
        %5225 = vmatpush.xpose.msra.mxu0 0.0
        %5226 = vmatpush.xpose.msra.mxu0 0.0
        %5227 = vmatpush.xpose.msra.mxu0 0.0
        %5228 = vmatpush.xpose.msra.mxu0 %v434
        %5229 = vmatmul.f32.gmra.mxu0 %v434
        %v5230 = vpop.f32.mrf.mxu0
        %v5231 = vadd.f32 %v5211, %v5230
        %5232 = vdwg.mxu0
        %5233 = vmatpush.xpose.msra.mxu0 0.0
        %5234 = vmatpush.xpose.msra.mxu0 0.0
        %5235 = vmatpush.xpose.msra.mxu0 0.0
        %5236 = vmatpush.xpose.msra.mxu0 0.0
        %5237 = vmatpush.xpose.msra.mxu0 0.0
        %5238 = vmatpush.xpose.msra.mxu0 0.0
        %5239 = vmatpush.xpose.msra.mxu0 0.0
        %5240 = vmatpush.xpose.msra.mxu0 0.0
        %5241 = vmatpush.xpose.msra.mxu0 0.0
        %5242 = vmatpush.xpose.msra.mxu0 0.0
        %5243 = vmatpush.xpose.msra.mxu0 0.0
        %5244 = vmatpush.xpose.msra.mxu0 0.0
        %5245 = vmatpush.xpose.msra.mxu0 0.0
        %5246 = vmatpush.xpose.msra.mxu0 0.0
        %5247 = vmatpush.xpose.msra.mxu0 0.0
        %5248 = vmatpush.xpose.msra.mxu0 %v435
        %5249 = vmatmul.f32.gmra.mxu0 %v435
        %v5250 = vpop.f32.mrf.mxu0
        %v5251 = vadd.f32 %v5231, %v5250
        %5252 = vdwg.mxu0
        %5253 = vmatpush.xpose.msra.mxu0 0.0
        %5254 = vmatpush.xpose.msra.mxu0 0.0
        %5255 = vmatpush.xpose.msra.mxu0 0.0
        %5256 = vmatpush.xpose.msra.mxu0 0.0
        %5257 = vmatpush.xpose.msra.mxu0 0.0
        %5258 = vmatpush.xpose.msra.mxu0 0.0
        %5259 = vmatpush.xpose.msra.mxu0 0.0
        %5260 = vmatpush.xpose.msra.mxu0 0.0
        %5261 = vmatpush.xpose.msra.mxu0 0.0
        %5262 = vmatpush.xpose.msra.mxu0 0.0
        %5263 = vmatpush.xpose.msra.mxu0 0.0
        %5264 = vmatpush.xpose.msra.mxu0 0.0
        %5265 = vmatpush.xpose.msra.mxu0 0.0
        %5266 = vmatpush.xpose.msra.mxu0 0.0
        %5267 = vmatpush.xpose.msra.mxu0 0.0
        %5268 = vmatpush.xpose.msra.mxu0 %v436
        %5269 = vmatmul.f32.gmra.mxu0 %v436
        %v5270 = vpop.f32.mrf.mxu0
        %v5271 = vadd.f32 %v5251, %v5270
        %5272 = vdwg.mxu0
        %5273 = vmatpush.xpose.msra.mxu0 0.0
        %5274 = vmatpush.xpose.msra.mxu0 0.0
        %5275 = vmatpush.xpose.msra.mxu0 0.0
        %5276 = vmatpush.xpose.msra.mxu0 0.0
        %5277 = vmatpush.xpose.msra.mxu0 0.0
        %5278 = vmatpush.xpose.msra.mxu0 0.0
        %5279 = vmatpush.xpose.msra.mxu0 0.0
        %5280 = vmatpush.xpose.msra.mxu0 0.0
        %5281 = vmatpush.xpose.msra.mxu0 0.0
        %5282 = vmatpush.xpose.msra.mxu0 0.0
        %5283 = vmatpush.xpose.msra.mxu0 0.0
        %5284 = vmatpush.xpose.msra.mxu0 0.0
        %5285 = vmatpush.xpose.msra.mxu0 0.0
        %5286 = vmatpush.xpose.msra.mxu0 0.0
        %5287 = vmatpush.xpose.msra.mxu0 0.0
        %5288 = vmatpush.xpose.msra.mxu0 %v437
        %5289 = vmatmul.f32.gmra.mxu0 %v437
        %v5290 = vpop.f32.mrf.mxu0
        %v5291 = vadd.f32 %v5271, %v5290
        %5292 = vdwg.mxu0
        %5293 = vmatpush.xpose.msra.mxu0 0.0
        %5294 = vmatpush.xpose.msra.mxu0 0.0
        %5295 = vmatpush.xpose.msra.mxu0 0.0
        %5296 = vmatpush.xpose.msra.mxu0 0.0
        %5297 = vmatpush.xpose.msra.mxu0 0.0
        %5298 = vmatpush.xpose.msra.mxu0 0.0
        %5299 = vmatpush.xpose.msra.mxu0 0.0
        %5300 = vmatpush.xpose.msra.mxu0 0.0
        %5301 = vmatpush.xpose.msra.mxu0 0.0
        %5302 = vmatpush.xpose.msra.mxu0 0.0
        %5303 = vmatpush.xpose.msra.mxu0 0.0
        %5304 = vmatpush.xpose.msra.mxu0 0.0
        %5305 = vmatpush.xpose.msra.mxu0 0.0
        %5306 = vmatpush.xpose.msra.mxu0 0.0
        %5307 = vmatpush.xpose.msra.mxu0 0.0
        %5308 = vmatpush.xpose.msra.mxu0 %v438
        %5309 = vmatmul.f32.gmra.mxu0 %v438
        %v5310 = vpop.f32.mrf.mxu0
        %v5311 = vadd.f32 %v5291, %v5310
        %5312 = vdwg.mxu0
        %5313 = vmatpush.xpose.msra.mxu0 0.0
        %5314 = vmatpush.xpose.msra.mxu0 0.0
        %5315 = vmatpush.xpose.msra.mxu0 0.0
        %5316 = vmatpush.xpose.msra.mxu0 0.0
        %5317 = vmatpush.xpose.msra.mxu0 0.0
        %5318 = vmatpush.xpose.msra.mxu0 0.0
        %5319 = vmatpush.xpose.msra.mxu0 0.0
        %5320 = vmatpush.xpose.msra.mxu0 0.0
        %5321 = vmatpush.xpose.msra.mxu0 0.0
        %5322 = vmatpush.xpose.msra.mxu0 0.0
        %5323 = vmatpush.xpose.msra.mxu0 0.0
        %5324 = vmatpush.xpose.msra.mxu0 0.0
        %5325 = vmatpush.xpose.msra.mxu0 0.0
        %5326 = vmatpush.xpose.msra.mxu0 0.0
        %5327 = vmatpush.xpose.msra.mxu0 0.0
        %5328 = vmatpush.xpose.msra.mxu0 %v439
        %5329 = vmatmul.f32.gmra.mxu0 %v439
        %v5330 = vpop.f32.mrf.mxu0
        %v5331 = vadd.f32 %v5311, %v5330
        %5332 = vdwg.mxu0
        %5333 = vmatpush.xpose.msra.mxu0 0.0
        %5334 = vmatpush.xpose.msra.mxu0 0.0
        %5335 = vmatpush.xpose.msra.mxu0 0.0
        %5336 = vmatpush.xpose.msra.mxu0 0.0
        %5337 = vmatpush.xpose.msra.mxu0 0.0
        %5338 = vmatpush.xpose.msra.mxu0 0.0
        %5339 = vmatpush.xpose.msra.mxu0 0.0
        %5340 = vmatpush.xpose.msra.mxu0 0.0
        %5341 = vmatpush.xpose.msra.mxu0 0.0
        %5342 = vmatpush.xpose.msra.mxu0 0.0
        %5343 = vmatpush.xpose.msra.mxu0 0.0
        %5344 = vmatpush.xpose.msra.mxu0 0.0
        %5345 = vmatpush.xpose.msra.mxu0 0.0
        %5346 = vmatpush.xpose.msra.mxu0 0.0
        %5347 = vmatpush.xpose.msra.mxu0 0.0
        %5348 = vmatpush.xpose.msra.mxu0 %v440
        %5349 = vmatmul.f32.gmra.mxu0 %v440
        %v5350 = vpop.f32.mrf.mxu0
        %v5351 = vadd.f32 %v5331, %v5350
        %5352 = vdwg.mxu0
        %5353 = vmatpush.xpose.msra.mxu0 0.0
        %5354 = vmatpush.xpose.msra.mxu0 0.0
        %5355 = vmatpush.xpose.msra.mxu0 0.0
        %5356 = vmatpush.xpose.msra.mxu0 0.0
        %5357 = vmatpush.xpose.msra.mxu0 0.0
        %5358 = vmatpush.xpose.msra.mxu0 0.0
        %5359 = vmatpush.xpose.msra.mxu0 0.0
        %5360 = vmatpush.xpose.msra.mxu0 0.0
        %5361 = vmatpush.xpose.msra.mxu0 0.0
        %5362 = vmatpush.xpose.msra.mxu0 0.0
        %5363 = vmatpush.xpose.msra.mxu0 0.0
        %5364 = vmatpush.xpose.msra.mxu0 0.0
        %5365 = vmatpush.xpose.msra.mxu0 0.0
        %5366 = vmatpush.xpose.msra.mxu0 0.0
        %5367 = vmatpush.xpose.msra.mxu0 0.0
        %5368 = vmatpush.xpose.msra.mxu0 %v441
        %5369 = vmatmul.f32.gmra.mxu0 %v441
        %v5370 = vpop.f32.mrf.mxu0
        %v5371 = vadd.f32 %v5351, %v5370
        %5372 = vdwg.mxu0
        %5373 = vmatpush.xpose.msra.mxu0 0.0
        %5374 = vmatpush.xpose.msra.mxu0 0.0
        %5375 = vmatpush.xpose.msra.mxu0 0.0
        %5376 = vmatpush.xpose.msra.mxu0 0.0
        %5377 = vmatpush.xpose.msra.mxu0 0.0
        %5378 = vmatpush.xpose.msra.mxu0 0.0
        %5379 = vmatpush.xpose.msra.mxu0 0.0
        %5380 = vmatpush.xpose.msra.mxu0 0.0
        %5381 = vmatpush.xpose.msra.mxu0 0.0
        %5382 = vmatpush.xpose.msra.mxu0 0.0
        %5383 = vmatpush.xpose.msra.mxu0 0.0
        %5384 = vmatpush.xpose.msra.mxu0 0.0
        %5385 = vmatpush.xpose.msra.mxu0 0.0
        %5386 = vmatpush.xpose.msra.mxu0 0.0
        %5387 = vmatpush.xpose.msra.mxu0 0.0
        %5388 = vmatpush.xpose.msra.mxu0 %v442
        %5389 = vmatmul.f32.gmra.mxu0 %v442
        %v5390 = vpop.f32.mrf.mxu0
        %v5391 = vadd.f32 %v5371, %v5390
        %5392 = vdwg.mxu0
        %5393 = vmatpush.xpose.msra.mxu0 0.0
        %5394 = vmatpush.xpose.msra.mxu0 0.0
        %5395 = vmatpush.xpose.msra.mxu0 0.0
        %5396 = vmatpush.xpose.msra.mxu0 0.0
        %5397 = vmatpush.xpose.msra.mxu0 0.0
        %5398 = vmatpush.xpose.msra.mxu0 0.0
        %5399 = vmatpush.xpose.msra.mxu0 0.0
        %5400 = vmatpush.xpose.msra.mxu0 0.0
        %5401 = vmatpush.xpose.msra.mxu0 0.0
        %5402 = vmatpush.xpose.msra.mxu0 0.0
        %5403 = vmatpush.xpose.msra.mxu0 0.0
        %5404 = vmatpush.xpose.msra.mxu0 0.0
        %5405 = vmatpush.xpose.msra.mxu0 0.0
        %5406 = vmatpush.xpose.msra.mxu0 0.0
        %5407 = vmatpush.xpose.msra.mxu0 0.0
        %5408 = vmatpush.xpose.msra.mxu0 %v443
        %5409 = vmatmul.f32.gmra.mxu0 %v443
        %v5410 = vpop.f32.mrf.mxu0
        %v5411 = vadd.f32 %v5391, %v5410
        %5412 = vdwg.mxu0
        %5413 = vmatpush.xpose.msra.mxu0 0.0
        %5414 = vmatpush.xpose.msra.mxu0 0.0
        %5415 = vmatpush.xpose.msra.mxu0 0.0
        %5416 = vmatpush.xpose.msra.mxu0 0.0
        %5417 = vmatpush.xpose.msra.mxu0 0.0
        %5418 = vmatpush.xpose.msra.mxu0 0.0
        %5419 = vmatpush.xpose.msra.mxu0 0.0
        %5420 = vmatpush.xpose.msra.mxu0 0.0
        %5421 = vmatpush.xpose.msra.mxu0 0.0
        %5422 = vmatpush.xpose.msra.mxu0 0.0
        %5423 = vmatpush.xpose.msra.mxu0 0.0
        %5424 = vmatpush.xpose.msra.mxu0 0.0
        %5425 = vmatpush.xpose.msra.mxu0 0.0
        %5426 = vmatpush.xpose.msra.mxu0 0.0
        %5427 = vmatpush.xpose.msra.mxu0 0.0
        %5428 = vmatpush.xpose.msra.mxu0 %v444
        %5429 = vmatmul.f32.gmra.mxu0 %v444
        %v5430 = vpop.f32.mrf.mxu0
        %v5431 = vadd.f32 %v5411, %v5430
        %5432 = vdwg.mxu0
        %5433 = vmatpush.xpose.msra.mxu0 0.0
        %5434 = vmatpush.xpose.msra.mxu0 0.0
        %5435 = vmatpush.xpose.msra.mxu0 0.0
        %5436 = vmatpush.xpose.msra.mxu0 0.0
        %5437 = vmatpush.xpose.msra.mxu0 0.0
        %5438 = vmatpush.xpose.msra.mxu0 0.0
        %5439 = vmatpush.xpose.msra.mxu0 0.0
        %5440 = vmatpush.xpose.msra.mxu0 0.0
        %5441 = vmatpush.xpose.msra.mxu0 0.0
        %5442 = vmatpush.xpose.msra.mxu0 0.0
        %5443 = vmatpush.xpose.msra.mxu0 0.0
        %5444 = vmatpush.xpose.msra.mxu0 0.0
        %5445 = vmatpush.xpose.msra.mxu0 0.0
        %5446 = vmatpush.xpose.msra.mxu0 0.0
        %5447 = vmatpush.xpose.msra.mxu0 0.0
        %5448 = vmatpush.xpose.msra.mxu0 %v445
        %5449 = vmatmul.f32.gmra.mxu0 %v445
        %v5450 = vpop.f32.mrf.mxu0
        %v5451 = vadd.f32 %v5431, %v5450
        %5452 = vdwg.mxu0
        %5453 = vmatpush.xpose.msra.mxu0 0.0
        %5454 = vmatpush.xpose.msra.mxu0 0.0
        %5455 = vmatpush.xpose.msra.mxu0 0.0
        %5456 = vmatpush.xpose.msra.mxu0 0.0
        %5457 = vmatpush.xpose.msra.mxu0 0.0
        %5458 = vmatpush.xpose.msra.mxu0 0.0
        %5459 = vmatpush.xpose.msra.mxu0 0.0
        %5460 = vmatpush.xpose.msra.mxu0 0.0
        %5461 = vmatpush.xpose.msra.mxu0 0.0
        %5462 = vmatpush.xpose.msra.mxu0 0.0
        %5463 = vmatpush.xpose.msra.mxu0 0.0
        %5464 = vmatpush.xpose.msra.mxu0 0.0
        %5465 = vmatpush.xpose.msra.mxu0 0.0
        %5466 = vmatpush.xpose.msra.mxu0 0.0
        %5467 = vmatpush.xpose.msra.mxu0 0.0
        %5468 = vmatpush.xpose.msra.mxu0 %v446
        %5469 = vmatmul.f32.gmra.mxu0 %v446
        %v5470 = vpop.f32.mrf.mxu0
        %v5471 = vadd.f32 %v5451, %v5470
        %5472 = vdwg.mxu0
        %5473 = vmatpush.xpose.msra.mxu0 0.0
        %5474 = vmatpush.xpose.msra.mxu0 0.0
        %5475 = vmatpush.xpose.msra.mxu0 0.0
        %5476 = vmatpush.xpose.msra.mxu0 0.0
        %5477 = vmatpush.xpose.msra.mxu0 0.0
        %5478 = vmatpush.xpose.msra.mxu0 0.0
        %5479 = vmatpush.xpose.msra.mxu0 0.0
        %5480 = vmatpush.xpose.msra.mxu0 0.0
        %5481 = vmatpush.xpose.msra.mxu0 0.0
        %5482 = vmatpush.xpose.msra.mxu0 0.0
        %5483 = vmatpush.xpose.msra.mxu0 0.0
        %5484 = vmatpush.xpose.msra.mxu0 0.0
        %5485 = vmatpush.xpose.msra.mxu0 0.0
        %5486 = vmatpush.xpose.msra.mxu0 0.0
        %5487 = vmatpush.xpose.msra.mxu0 0.0
        %5488 = vmatpush.xpose.msra.mxu0 %v447
        %5489 = vmatmul.f32.gmra.mxu0 %v447
        %v5490 = vpop.f32.mrf.mxu0
        %v5491 = vadd.f32 %v5471, %v5490
        %5492 = vdwg.mxu0
        %5493 = vmatpush.xpose.msra.mxu0 0.0
        %5494 = vmatpush.xpose.msra.mxu0 0.0
        %5495 = vmatpush.xpose.msra.mxu0 0.0
        %5496 = vmatpush.xpose.msra.mxu0 0.0
        %5497 = vmatpush.xpose.msra.mxu0 0.0
        %5498 = vmatpush.xpose.msra.mxu0 0.0
        %5499 = vmatpush.xpose.msra.mxu0 0.0
        %5500 = vmatpush.xpose.msra.mxu0 0.0
        %5501 = vmatpush.xpose.msra.mxu0 0.0
        %5502 = vmatpush.xpose.msra.mxu0 0.0
        %5503 = vmatpush.xpose.msra.mxu0 0.0
        %5504 = vmatpush.xpose.msra.mxu0 0.0
        %5505 = vmatpush.xpose.msra.mxu0 0.0
        %5506 = vmatpush.xpose.msra.mxu0 0.0
        %5507 = vmatpush.xpose.msra.mxu0 0.0
        %5508 = vmatpush.xpose.msra.mxu0 %v448
        %5509 = vmatmul.f32.gmra.mxu0 %v448
        %v5510 = vpop.f32.mrf.mxu0
        %v5511 = vadd.f32 %v5491, %v5510
        %5512 = vdwg.mxu0
        %5513 = vmatpush.xpose.msra.mxu0 0.0
        %5514 = vmatpush.xpose.msra.mxu0 0.0
        %5515 = vmatpush.xpose.msra.mxu0 0.0
        %5516 = vmatpush.xpose.msra.mxu0 0.0
        %5517 = vmatpush.xpose.msra.mxu0 0.0
        %5518 = vmatpush.xpose.msra.mxu0 0.0
        %5519 = vmatpush.xpose.msra.mxu0 0.0
        %5520 = vmatpush.xpose.msra.mxu0 0.0
        %5521 = vmatpush.xpose.msra.mxu0 0.0
        %5522 = vmatpush.xpose.msra.mxu0 0.0
        %5523 = vmatpush.xpose.msra.mxu0 0.0
        %5524 = vmatpush.xpose.msra.mxu0 0.0
        %5525 = vmatpush.xpose.msra.mxu0 0.0
        %5526 = vmatpush.xpose.msra.mxu0 0.0
        %5527 = vmatpush.xpose.msra.mxu0 0.0
        %5528 = vmatpush.xpose.msra.mxu0 %v449
        %5529 = vmatmul.f32.gmra.mxu0 %v449
        %v5530 = vpop.f32.mrf.mxu0
        %v5531 = vadd.f32 %v5511, %v5530
        %5532 = vdwg.mxu0
        %5533 = vmatpush.xpose.msra.mxu0 0.0
        %5534 = vmatpush.xpose.msra.mxu0 0.0
        %5535 = vmatpush.xpose.msra.mxu0 0.0
        %5536 = vmatpush.xpose.msra.mxu0 0.0
        %5537 = vmatpush.xpose.msra.mxu0 0.0
        %5538 = vmatpush.xpose.msra.mxu0 0.0
        %5539 = vmatpush.xpose.msra.mxu0 0.0
        %5540 = vmatpush.xpose.msra.mxu0 0.0
        %5541 = vmatpush.xpose.msra.mxu0 0.0
        %5542 = vmatpush.xpose.msra.mxu0 0.0
        %5543 = vmatpush.xpose.msra.mxu0 0.0
        %5544 = vmatpush.xpose.msra.mxu0 0.0
        %5545 = vmatpush.xpose.msra.mxu0 0.0
        %5546 = vmatpush.xpose.msra.mxu0 0.0
        %5547 = vmatpush.xpose.msra.mxu0 0.0
        %5548 = vmatpush.xpose.msra.mxu0 %v450
        %5549 = vmatmul.f32.gmra.mxu0 %v450
        %v5550 = vpop.f32.mrf.mxu0
        %v5551 = vadd.f32 %v5531, %v5550
        %5552 = vdwg.mxu0
        %5553 = vmatpush.xpose.msra.mxu0 0.0
        %5554 = vmatpush.xpose.msra.mxu0 0.0
        %5555 = vmatpush.xpose.msra.mxu0 0.0
        %5556 = vmatpush.xpose.msra.mxu0 0.0
        %5557 = vmatpush.xpose.msra.mxu0 0.0
        %5558 = vmatpush.xpose.msra.mxu0 0.0
        %5559 = vmatpush.xpose.msra.mxu0 0.0
        %5560 = vmatpush.xpose.msra.mxu0 0.0
        %5561 = vmatpush.xpose.msra.mxu0 0.0
        %5562 = vmatpush.xpose.msra.mxu0 0.0
        %5563 = vmatpush.xpose.msra.mxu0 0.0
        %5564 = vmatpush.xpose.msra.mxu0 0.0
        %5565 = vmatpush.xpose.msra.mxu0 0.0
        %5566 = vmatpush.xpose.msra.mxu0 0.0
        %5567 = vmatpush.xpose.msra.mxu0 0.0
        %5568 = vmatpush.xpose.msra.mxu0 %v451
        %5569 = vmatmul.f32.gmra.mxu0 %v451
        %v5570 = vpop.f32.mrf.mxu0
        %v5571 = vadd.f32 %v5551, %v5570
        %5572 = vdwg.mxu0
        %v5573 = vadd.f32 %v452, %v5571
        %vm5574 = vcmask 64512
        %5575 = vst.msk [vmem:[%s181] sm:$0xff] %vm5574, %v5573
        // Predicated region
        $region33: #{tpu_custom_call.1} parent=23 // pred_check
          %p5576 = pneg %p190
        $region34: #{tpu_custom_call.1} parent=23 // pred_check_branch
          %5578 = sbr.rel (%p5576) target = $region36
        $region35: #{tpu_custom_call.1} parent=23 // pred_region
          %v5579 = vld [vmem:[%s181] sm:$0xff]
          %v5580 = vlaneseq
          %v5581 = vshrl.u32 %v5580, 7
          %v5582 = vlaneseq
          %v5583 = vand.u32 %v5582, 127
          %vm5584 = vcmp.eq.s32.totalorder %v5581, %v5583
          %v5585 = vsel %vm5584, %v5579, 0.0
          %v5586 = vsel %vm5574, %v5585, 0.0
          %5587 = vadd.xlane.f32.xlu0 %v5586
          %v5588 = vpop.xlane.xlu0 %5587
          %v5589 = vrot.slane %v5586, 4
          %v5590 = vadd.f32 %v5586, %v5589
          %v5591 = vrot.slane %v5590, 2
          %v5592 = vadd.f32 %v5590, %v5591
          %v5593 = vrot.slane %v5592, 1
          %v5594 = vadd.f32 %v5592, %v5593
          %v5595 = vrsqrt.pop %v5588
          %v5596 = vmul.f32 %v5595, %v5588
          %v5597 = vmul.f32 %v5596, %v5595
          %v5598 = vmul.f32 0.5, %v5597
          %v5599 = vsub.f32 1.5, %v5598
          %v5600 = vmul.f32 %v5595, %v5599
          %v5601 = vmul.f32 %v5588, %v5600
          %vm5602 = vcmp.eq.f32.partialorder %v5588, inf
          %v5603 = vsel %vm5602, %v5588, %v5601
          %vm5604 = vcmp.eq.f32.partialorder %v5588, 0.0
          %v5605 = vand.u32 %v5588, 2147483648
          %v5606 = vsel %vm5604, %v5605, %v5603
          %v5607 = vadd.f32 %v5606, 1.1920929e-07
          %v5608 = vrcp.pop %v5607
          %v5609 = vmul.f32 %v5607, %v5608
          %v5610 = vsub.f32 1.0, %v5609
          %v5611 = vmul.f32 %v5608, %v5610
          %v5612 = vadd.f32 %v5608, %v5611
          %vm5613 = vweird.f32 %v5607
          %vm5614 = vweird.f32 %v5608
          %vm5615 = vmor %vm5613, %vm5614
          %v5616 = vsel %vm5615, %v5608, %v5612
          %v5617 = vand.u32 2147483647, %v5607
          %vm5618 = vcmp.eq.f32.partialorder %v5617, 8.507059e+37
          %v5619 = vand.u32 %v5607, 2147483648
          %v5620 = vor.u32 1.1754944e-38, %v5619
          %v5621 = vsel %vm5618, %v5620, %v5616
          %v5622 = vmul.f32 1.0, %v5621
          %v5623 = vrsqrt.pop %v5594
          %v5624 = vmul.f32 %v5623, %v5594
          %v5625 = vmul.f32 %v5624, %v5623
          %v5626 = vmul.f32 0.5, %v5625
          %v5627 = vsub.f32 1.5, %v5626
          %v5628 = vmul.f32 %v5623, %v5627
          %v5629 = vmul.f32 %v5594, %v5628
          %vm5630 = vcmp.eq.f32.partialorder %v5594, inf
          %v5631 = vsel %vm5630, %v5594, %v5629
          %vm5632 = vcmp.eq.f32.partialorder %v5594, 0.0
          %v5633 = vand.u32 %v5594, 2147483648
          %v5634 = vsel %vm5632, %v5633, %v5631
          %v5635 = vadd.f32 %v5634, 1.1920929e-07
          %v5636 = vrcp.pop %v5635
          %v5637 = vmul.f32 %v5635, %v5636
          %v5638 = vsub.f32 1.0, %v5637
          %v5639 = vmul.f32 %v5636, %v5638
          %v5640 = vadd.f32 %v5636, %v5639
          %vm5641 = vweird.f32 %v5635
          %vm5642 = vweird.f32 %v5636
          %vm5643 = vmor %vm5641, %vm5642
          %v5644 = vsel %vm5643, %v5636, %v5640
          %v5645 = vand.u32 2147483647, %v5635
          %vm5646 = vcmp.eq.f32.partialorder %v5645, 8.507059e+37
          %v5647 = vand.u32 %v5635, 2147483648
          %v5648 = vor.u32 1.1754944e-38, %v5647
          %v5649 = vsel %vm5646, %v5648, %v5644
          %v5650 = vmul.f32 1.0, %v5649
          %v5651 = vmul.f32 %v5579, %v5622
          %v5652 = vmul.f32 %v5651, %v5650
          %5653 = vst.msk [vmem:[%s188] sm:$0xff] %vm5574, %v5652
        $region36: #{tpu_custom_call.1} parent=23 // pred_fallthru
          _
        %s5654 = sand.u32 %s71, 1
        %s5655 = scalar_lea.sflag [#allocation4], %s5654
        %s5656 = sand.u32 %s71, 1
        %s5657 = smul.addr %s5656, 8
        %s5658 = scalar_lea.vmem [#allocation5], %s5657
        %s5659 = sand.u32 %s97, 1
        %s5660 = scalar_lea.sflag [#allocation7], %s5659
        %s5661 = sand.u32 %s97, 1
        %s5662 = smul.addr %s5661, 8
        %s5663 = scalar_lea.vmem [#allocation6], %s5662
        // Predicated region
        $region37: #{tpu_custom_call.1} parent=23 // pred_check
          %p5664 = pneg %p81
        $region38: #{tpu_custom_call.1} parent=23 // pred_check_branch
          %5666 = sbr.rel (%p5664) target = $region40
        $region39: #{tpu_custom_call.1} parent=23 // pred_region
          %5668 = vsyncadd %s5655, 0
          %s5669 = smul.addr %s27, 8
          %s5670 = scalar_lea.hbm %s1, %s5669
          %s5672 = sshll.u32 %s5658, 4
          %s5673 = int_to_ptr.vmem [resolvable:$true] %s5672
          %s5674 = sshll.u32 %s5670, 4
          %s5675 = int_to_ptr.hbm [resolvable:$true] %s5674
          %5677 = dma.vmem_to_hbm [thread:$0]  %s5673, 128, %s5675, %s5655
        $region40: #{tpu_custom_call.1} parent=23 // pred_fallthru
          _
        // Predicated region
        $region41: #{tpu_custom_call.1} parent=23 // pred_check
          %p5678 = pneg %p107
        $region42: #{tpu_custom_call.1} parent=23 // pred_check_branch
          %5680 = sbr.rel (%p5678) target = $region44
        $region43: #{tpu_custom_call.1} parent=23 // pred_region
          %5682 = vsyncadd %s5660, 0
          %s5683 = smul.addr %s27, 8
          %s5684 = scalar_lea.hbm %s2, %s5683
          %s5686 = sshll.u32 %s5663, 4
          %s5687 = int_to_ptr.vmem [resolvable:$true] %s5686
          %s5688 = sshll.u32 %s5684, 4
          %s5689 = int_to_ptr.hbm [resolvable:$true] %s5688
          %5691 = dma.vmem_to_hbm [thread:$0]  %s5687, 128, %s5689, %s5660
        $region44: #{tpu_custom_call.1} parent=23 // pred_fallthru
          _
      $region24: #{tpu_custom_call.1} parent=5 // pred_fallthru
        _
      %p5692 = scmp.le.s32.totalorder 2, %s18
      // Predicated region
      $region45: #{tpu_custom_call.1} parent=5 // pred_check
        %p5693 = pneg %p5692
      $region46: #{tpu_custom_call.1} parent=5 // pred_check_branch
        %5695 = sbr.rel (%p5693) target = $region48
      $region47: #{tpu_custom_call.1} parent=5 // pred_region
        %s5696 = ssub.s32 %s18, 2
        // Predicated region
        $region49: #{tpu_custom_call.1} parent=47 // pred_check
          %p5697 = pneg %p87
        $region50: #{tpu_custom_call.1} parent=47 // pred_check_branch
          %5699 = sbr.rel (%p5697) target = $region52
        $region51: #{tpu_custom_call.1} parent=47 // pred_region
          %s5700 = sand.u32 %s72, 1
          %s5701 = scalar_lea.sflag [#allocation4], %s5700
          %s5702 = sand.u32 %s72, 1
          %s5703 = smul.addr %s5702, 8
          %s5704 = scalar_lea.vmem [#allocation5], %s5703
          %5706 = dma.done %s5701, 128
        $region52: #{tpu_custom_call.1} parent=47 // pred_fallthru
          _
        // Predicated region
        $region53: #{tpu_custom_call.1} parent=47 // pred_check
          %p5707 = pneg %p113
        $region54: #{tpu_custom_call.1} parent=47 // pred_check_branch
          %5709 = sbr.rel (%p5707) target = $region56
        $region55: #{tpu_custom_call.1} parent=47 // pred_region
          %s5710 = sand.u32 %s98, 1
          %s5711 = scalar_lea.sflag [#allocation7], %s5710
          %s5712 = sand.u32 %s98, 1
          %s5713 = smul.addr %s5712, 8
          %s5714 = scalar_lea.vmem [#allocation6], %s5713
          %5716 = dma.done %s5711, 128
        $region56: #{tpu_custom_call.1} parent=47 // pred_fallthru
          _
      $region48: #{tpu_custom_call.1} parent=5 // pred_fallthru
        _
    $region6: #{tpu_custom_call.1} parent=1 // loop_footer
      %s22 = sadd.s32 1, %s18
    $region7: #{tpu_custom_call.1} parent=1 // loop_footer_branch
      %17 = sbr.rel target = $region3
    $region8: #{tpu_custom_call.1} parent=1 // loop_exit
      _
    %5717 = vsyncpa [#allocation3], 1
    %s5718 = scalar_lea.sflag [#allocation3], 1
    %5719 = vsyncpa %s5718, 1
    %5720 = vsyncpa [#allocation4], 1
    %s5721 = scalar_lea.sflag [#allocation4], 1
    %5722 = vsyncpa %s5721, 1
    %5723 = vsyncpa [#allocation7], 1
    %s5724 = scalar_lea.sflag [#allocation7], 1
    %5725 = vsyncpa %s5724, 1

</llo_original>
